<compile_context>
chip_gen: v6e
topology: v6e:2x2x1
jax: 0.10.0
libtpu: 0.0.40
codegen_flags: <defaults>
</compile_context>

<pallas_src>
import jax
import jax.numpy as jnp
from jax.experimental import pallas as pl
from jax.experimental.pallas import tpu as pltpu


def _features_downsample_kernel(x_ref, w1_ref, b1_ref, w2_ref, b2_ref, o_ref,
                                xpad_ref, ypad_ref, a1_ref, a2_ref):
    """One batch element per grid step.

    x_ref   : (1, H, W, Cin)          unpadded NHWC input block
    w1_ref  : (9*Cin, C1)             conv1 weights in im2col layout
    b1_ref  : (1, C1)
    w2_ref  : (9*C1 + Cin, Cout)      conv2 weights with the 1x1 bottleneck
                                      weights stacked underneath
    b2_ref  : (1, Cout)               b2 + bb (pre-summed)
    o_ref   : (1, H//2, W//2, Cout)
    xpad_ref: VMEM (H+2, W+2, Cin)    zero-padded input
    ypad_ref: VMEM (H+2, W+2, C1)     zero-padded intermediate activation
    a1_ref  : VMEM (H*W, 9*Cin)       im2col operand for conv1
    a2_ref  : VMEM (H*W, 9*C1 + Cin)  im2col operand for conv2 (+ skip cols)
    """
    H, W, Cin = x_ref.shape[1], x_ref.shape[2], x_ref.shape[3]
    C1 = b1_ref.shape[1]
    Cout = b2_ref.shape[1]
    HW = H * W
    taps = [(dy, dx) for dy in range(3) for dx in range(3)]

    # Zero only the 1-pixel border ring of the pad scratches (interiors are
    # fully overwritten every step).  Done per-step rather than under
    # program_id == 0 so every grid step is self-contained -> safe under
    # "parallel" semantics / megacore sharding; the cost is a few hundred
    # elements per step.
    for ref, c in ((xpad_ref, Cin), (ypad_ref, C1)):
        ref[0:1, :, :] = jnp.zeros((1, W + 2, c), jnp.float32)
        ref[H + 1:H + 2, :, :] = jnp.zeros((1, W + 2, c), jnp.float32)
        ref[:, 0:1, :] = jnp.zeros((H + 2, 1, c), jnp.float32)
        ref[:, W + 1:W + 2, :] = jnp.zeros((H + 2, 1, c), jnp.float32)

    # In-kernel zero pad of the input (replaces the wrapper-side jnp.pad).
    xpad_ref[1:H + 1, 1:W + 1, :] = x_ref[0]

    # ---- conv1: 3x3, Cin -> 2*Cin, as ONE im2col matmul + bias + ReLU ------
    for t, (dy, dx) in enumerate(taps):
        a1_ref[:, t * Cin:(t + 1) * Cin] = (
            xpad_ref[dy:dy + H, dx:dx + W, :].reshape(HW, Cin))
    y1 = jnp.dot(a1_ref[...], w1_ref[...], preferred_element_type=jnp.float32)
    y1 = jnp.maximum(y1 + b1_ref[0], 0.0)
    ypad_ref[1:H + 1, 1:W + 1, :] = y1.reshape(H, W, C1)

    # ---- conv2 (3x3, 2*Cin -> Cout) fused with the 1x1 bottleneck skip -----
    for t, (dy, dx) in enumerate(taps):
        a2_ref[:, t * C1:(t + 1) * C1] = (
            ypad_ref[dy:dy + H, dx:dx + W, :].reshape(HW, C1))
    a2_ref[:, 9 * C1:9 * C1 + Cin] = (
        xpad_ref[1:H + 1, 1:W + 1, :].reshape(HW, Cin))
    y = jnp.dot(a2_ref[...], w2_ref[...], preferred_element_type=jnp.float32)
    y = jnp.maximum(y + b2_ref[0], 0.0).reshape(H, W, Cout)

    # ---- 2x2 max pool, stride 2 --------------------------------------------
    yh = jnp.max(y.reshape(H // 2, 2, W, Cout), axis=1)       # pool over rows
    yp = jnp.max(yh.reshape(H // 2, W // 2, 2, Cout), axis=2)  # pool over cols
    o_ref[0] = yp.astype(o_ref.dtype)


@jax.jit
def features_downsample(x_nchw, w1, b1, w2, b2, wb, bb):
    """x_nchw: (B, Cin, H, W) float32 -> (B, Cout, H//2, W//2) float32.

    Weights use HWIO layout: w1 (3,3,Cin,2*Cin), w2 (3,3,2*Cin,Cout),
    wb (Cin,Cout); biases are (1, channels).
    """
    B, Cin, H, W = x_nchw.shape
    C1 = w1.shape[3]
    Cout = w2.shape[3]

    # Parameter prep (tiny, once per call): im2col weight layout, fusion of the
    # 1x1 bottleneck into conv2's matmul, and of the two output biases.
    w1r = w1.reshape(9 * Cin, C1)                                # (9*Cin, C1)
    w2r = jnp.concatenate([w2.reshape(9 * C1, Cout), wb], axis=0)  # (9*C1+Cin, Cout)
    b2r = b2 + bb                                                # (1, Cout)

    # NCHW -> NHWC for the kernel (channels on the lane axis).
    x = jnp.transpose(x_nchw, (0, 2, 3, 1))

    out_nhwc = pl.pallas_call(
        _features_downsample_kernel,
        out_shape=jax.ShapeDtypeStruct((B, H // 2, W // 2, Cout), x.dtype),
        grid=(B,),
        in_specs=[
            pl.BlockSpec((1, H, W, Cin), lambda b: (b, 0, 0, 0)),
            pl.BlockSpec((9 * Cin, C1), lambda b: (0, 0)),
            pl.BlockSpec((1, C1), lambda b: (0, 0)),
            pl.BlockSpec((9 * C1 + Cin, Cout), lambda b: (0, 0)),
            pl.BlockSpec((1, Cout), lambda b: (0, 0)),
        ],
        out_specs=pl.BlockSpec((1, H // 2, W // 2, Cout),
                               lambda b: (b, 0, 0, 0)),
        scratch_shapes=[
            pltpu.VMEM((H + 2, W + 2, Cin), jnp.float32),
            pltpu.VMEM((H + 2, W + 2, C1), jnp.float32),
            pltpu.VMEM((H * W, 9 * Cin), jnp.float32),
            pltpu.VMEM((H * W, 9 * C1 + Cin), jnp.float32),
        ],
        compiler_params=pltpu.CompilerParams(
            dimension_semantics=("parallel",),
            vmem_limit_bytes=32 * 1024 * 1024),
    )(x, w1r, b1, w2r, b2r)

    # Back to NCHW to match the PyTorch module (pooled output is 4x smaller
    # than the input, so this pass is cheap relative to the input read).
    return jnp.transpose(out_nhwc, (0, 3, 1, 2))


def _reference(x_nchw, w1, b1, w2, b2, wb, bb):
    """Pure-JAX reference (lax.conv) for validation."""
    x = jnp.transpose(x_nchw, (0, 2, 3, 1))
    B, H, W, Cin = x.shape
    Cout = w2.shape[3]
    dn1 = jax.lax.conv_dimension_numbers(x.shape, w1.shape,
                                         ('NHWC', 'HWIO', 'NHWC'))
    y1 = jax.lax.conv_general_dilated(
        x, w1, (1, 1), 'SAME', dimension_numbers=dn1,
        precision=jax.lax.Precision.HIGHEST) + b1[0]
    y1 = jnp.maximum(y1, 0.0)
    dn2 = jax.lax.conv_dimension_numbers(y1.shape, w2.shape,
                                         ('NHWC', 'HWIO', 'NHWC'))
    y2 = jax.lax.conv_general_dilated(
        y1, w2, (1, 1), 'SAME', dimension_numbers=dn2,
        precision=jax.lax.Precision.HIGHEST) + b2[0]
    skip = jnp.einsum('bhwc,cd->bhwd', x, wb,
                      precision=jax.lax.Precision.HIGHEST) + bb[0]
    y = jnp.maximum(y2 + skip, 0.0)
    pooled = jnp.max(y.reshape(B, H // 2, 2, W // 2, 2, Cout), axis=(2, 4))
    return jnp.transpose(pooled, (0, 3, 1, 2))


if __name__ == "__main__":
    # small shapes consistent with the module's forward
    B, Cin, H, W = 2, 4, 16, 16
    Cout = 8
    C1 = Cin * 2

    key = jax.random.PRNGKey(0)
    ks = jax.random.split(key, 7)
    x = jax.random.normal(ks[0], (B, Cin, H, W), jnp.float32)
    # deterministic synthetic parameters (HWIO weight layout for the kernel)
    w1 = jax.random.normal(ks[1], (3, 3, Cin, C1), jnp.float32) * 0.2
    b1 = jax.random.normal(ks[2], (1, C1), jnp.float32) * 0.1
    w2 = jax.random.normal(ks[3], (3, 3, C1, Cout), jnp.float32) * 0.2
    b2 = jax.random.normal(ks[4], (1, Cout), jnp.float32) * 0.1
    wb = jax.random.normal(ks[5], (Cin, Cout), jnp.float32) * 0.2
    bb = jax.random.normal(ks[6], (1, Cout), jnp.float32) * 0.1

    out = features_downsample(x, w1, b1, w2, b2, wb, bb)
    out = jax.block_until_ready(out)

    ref = _reference(x, w1, b1, w2, b2, wb, bb)
    assert out.shape == (B, Cout, H // 2, W // 2), out.shape
    assert jnp.allclose(out, ref, rtol=1e-3, atol=1e-3), \
        float(jnp.max(jnp.abs(out - ref)))

    print("KERNEL_OK")
</pallas_src>

<mosaic_0001>
module attributes {stable_mosaic.version = 11 : i64} {
  func.func @_features_downsample_kernel(%arg0: i32, %arg1: memref<1x16x16x4xf32, #tpu.memory_space<vmem>>, %arg2: memref<36x8xf32, #tpu.memory_space<vmem>>, %arg3: memref<1x8xf32, #tpu.memory_space<vmem>>, %arg4: memref<76x8xf32, #tpu.memory_space<vmem>>, %arg5: memref<1x8xf32, #tpu.memory_space<vmem>>, %arg6: memref<1x8x8x8xf32, #tpu.memory_space<vmem>>, %arg7: memref<18x18x4xf32, #tpu.memory_space<vmem>>, %arg8: memref<18x18x8xf32, #tpu.memory_space<vmem>>, %arg9: memref<256x36xf32, #tpu.memory_space<vmem>>, %arg10: memref<256x76xf32, #tpu.memory_space<vmem>>) attributes {dimension_semantics = [#tpu.dimension_semantics<parallel>], iteration_bounds = array<i64: 2>, scalar_prefetch = 0 : i64, scratch_operands = 4 : i64, tpu.core_type = #tpu.core_type<tc>, window_params = [{transform_indices = @transform_0, window_bounds = array<i64: 1, 16, 16, 4>}, {pipeline_mode = #tpu.pipeline_mode<synchronous>, transform_indices = @transform_1, window_bounds = array<i64: 36, 8>}, {pipeline_mode = #tpu.pipeline_mode<synchronous>, transform_indices = @transform_2, window_bounds = array<i64: 1, 8>}, {pipeline_mode = #tpu.pipeline_mode<synchronous>, transform_indices = @transform_3, window_bounds = array<i64: 76, 8>}, {pipeline_mode = #tpu.pipeline_mode<synchronous>, transform_indices = @transform_4, window_bounds = array<i64: 1, 8>}, {transform_indices = @transform_5, window_bounds = array<i64: 1, 8, 8, 8>}]} {
    %cst = arith.constant 0.000000e+00 : f32
    %0 = vector.broadcast %cst : f32 to vector<1x18x4xf32>
    %c0 = arith.constant 0 : index
    %c0_0 = arith.constant 0 : index
    %c0_1 = arith.constant 0 : index
    %1 = vector.load %arg7[%c0, %c0_0, %c0_1] : memref<18x18x4xf32, #tpu.memory_space<vmem>>, vector<1x18x4xf32>
    tpu.vector_store %arg7[%c0, %c0_0, %c0_1], %0 {strides = array<i32>} : memref<18x18x4xf32, #tpu.memory_space<vmem>>, vector<1x18x4xf32>,
    %cst_2 = arith.constant 0.000000e+00 : f32
    %2 = vector.broadcast %cst_2 : f32 to vector<1x18x4xf32>
    %c17 = arith.constant 17 : index
    %c0_3 = arith.constant 0 : index
    %c0_4 = arith.constant 0 : index
    %3 = vector.load %arg7[%c17, %c0_3, %c0_4] : memref<18x18x4xf32, #tpu.memory_space<vmem>>, vector<1x18x4xf32>
    tpu.vector_store %arg7[%c17, %c0_3, %c0_4], %2 {strides = array<i32>} : memref<18x18x4xf32, #tpu.memory_space<vmem>>, vector<1x18x4xf32>,
    %cst_5 = arith.constant 0.000000e+00 : f32
    %4 = vector.broadcast %cst_5 : f32 to vector<18x1x4xf32>
    %c0_6 = arith.constant 0 : index
    %c0_7 = arith.constant 0 : index
    %c0_8 = arith.constant 0 : index
    %5 = vector.load %arg7[%c0_6, %c0_7, %c0_8] : memref<18x18x4xf32, #tpu.memory_space<vmem>>, vector<18x1x4xf32>
    tpu.vector_store %arg7[%c0_6, %c0_7, %c0_8], %4 {strides = array<i32>} : memref<18x18x4xf32, #tpu.memory_space<vmem>>, vector<18x1x4xf32>,
    %cst_9 = arith.constant 0.000000e+00 : f32
    %6 = vector.broadcast %cst_9 : f32 to vector<18x1x4xf32>
    %c0_10 = arith.constant 0 : index
    %c17_11 = arith.constant 17 : index
    %c0_12 = arith.constant 0 : index
    %7 = vector.load %arg7[%c0_10, %c17_11, %c0_12] : memref<18x18x4xf32, #tpu.memory_space<vmem>>, vector<18x1x4xf32>
    tpu.vector_store %arg7[%c0_10, %c17_11, %c0_12], %6 {strides = array<i32>} : memref<18x18x4xf32, #tpu.memory_space<vmem>>, vector<18x1x4xf32>,
    %cst_13 = arith.constant 0.000000e+00 : f32
    %8 = vector.broadcast %cst_13 : f32 to vector<1x18x8xf32>
    %c0_14 = arith.constant 0 : index
    %c0_15 = arith.constant 0 : index
    %c0_16 = arith.constant 0 : index
    %9 = vector.load %arg8[%c0_14, %c0_15, %c0_16] : memref<18x18x8xf32, #tpu.memory_space<vmem>>, vector<1x18x8xf32>
    tpu.vector_store %arg8[%c0_14, %c0_15, %c0_16], %8 {strides = array<i32>} : memref<18x18x8xf32, #tpu.memory_space<vmem>>, vector<1x18x8xf32>,
    %cst_17 = arith.constant 0.000000e+00 : f32
    %10 = vector.broadcast %cst_17 : f32 to vector<1x18x8xf32>
    %c17_18 = arith.constant 17 : index
    %c0_19 = arith.constant 0 : index
    %c0_20 = arith.constant 0 : index
    %11 = vector.load %arg8[%c17_18, %c0_19, %c0_20] : memref<18x18x8xf32, #tpu.memory_space<vmem>>, vector<1x18x8xf32>
    tpu.vector_store %arg8[%c17_18, %c0_19, %c0_20], %10 {strides = array<i32>} : memref<18x18x8xf32, #tpu.memory_space<vmem>>, vector<1x18x8xf32>,
    %cst_21 = arith.constant 0.000000e+00 : f32
    %12 = vector.broadcast %cst_21 : f32 to vector<18x1x8xf32>
    %c0_22 = arith.constant 0 : index
    %c0_23 = arith.constant 0 : index
    %c0_24 = arith.constant 0 : index
    %13 = vector.load %arg8[%c0_22, %c0_23, %c0_24] : memref<18x18x8xf32, #tpu.memory_space<vmem>>, vector<18x1x8xf32>
    tpu.vector_store %arg8[%c0_22, %c0_23, %c0_24], %12 {strides = array<i32>} : memref<18x18x8xf32, #tpu.memory_space<vmem>>, vector<18x1x8xf32>,
    %cst_25 = arith.constant 0.000000e+00 : f32
    %14 = vector.broadcast %cst_25 : f32 to vector<18x1x8xf32>
    %c0_26 = arith.constant 0 : index
    %c17_27 = arith.constant 17 : index
    %c0_28 = arith.constant 0 : index
    %15 = vector.load %arg8[%c0_26, %c17_27, %c0_28] : memref<18x18x8xf32, #tpu.memory_space<vmem>>, vector<18x1x8xf32>
    tpu.vector_store %arg8[%c0_26, %c17_27, %c0_28], %14 {strides = array<i32>} : memref<18x18x8xf32, #tpu.memory_space<vmem>>, vector<18x1x8xf32>,
    %c0_29 = arith.constant 0 : index
    %c0_30 = arith.constant 0 : index
    %c0_31 = arith.constant 0 : index
    %c0_32 = arith.constant 0 : index
    %16 = vector.load %arg1[%c0_29, %c0_30, %c0_31, %c0_32] : memref<1x16x16x4xf32, #tpu.memory_space<vmem>>, vector<1x16x16x4xf32>
    %17 = vector.shape_cast %16 : vector<1x16x16x4xf32> to vector<16x16x4xf32>
    %c1 = arith.constant 1 : index
    %c1_33 = arith.constant 1 : index
    %c0_34 = arith.constant 0 : index
    %18 = vector.load %arg7[%c1, %c1_33, %c0_34] : memref<18x18x4xf32, #tpu.memory_space<vmem>>, vector<16x16x4xf32>
    tpu.vector_store %arg7[%c1, %c1_33, %c0_34], %17 {strides = array<i32>} : memref<18x18x4xf32, #tpu.memory_space<vmem>>, vector<16x16x4xf32>,
    %c0_35 = arith.constant 0 : index
    %c0_36 = arith.constant 0 : index
    %c0_37 = arith.constant 0 : index
    %19 = vector.load %arg7[%c0_35, %c0_36, %c0_37] : memref<18x18x4xf32, #tpu.memory_space<vmem>>, vector<16x16x4xf32>
    %20 = vector.shape_cast %19 : vector<16x16x4xf32> to vector<256x4xf32>
    %c0_38 = arith.constant 0 : index
    %c0_39 = arith.constant 0 : index
    %21 = vector.load %arg9[%c0_38, %c0_39] : memref<256x36xf32, #tpu.memory_space<vmem>>, vector<256x4xf32>
    tpu.vector_store %arg9[%c0_38, %c0_39], %20 {strides = array<i32>} : memref<256x36xf32, #tpu.memory_space<vmem>>, vector<256x4xf32>,
    %c0_40 = arith.constant 0 : index
    %c1_41 = arith.constant 1 : index
    %c0_42 = arith.constant 0 : index
    %22 = vector.load %arg7[%c0_40, %c1_41, %c0_42] : memref<18x18x4xf32, #tpu.memory_space<vmem>>, vector<16x16x4xf32>
    %23 = vector.shape_cast %22 : vector<16x16x4xf32> to vector<256x4xf32>
    %c0_43 = arith.constant 0 : index
    %c4 = arith.constant 4 : index
    %24 = vector.load %arg9[%c0_43, %c4] : memref<256x36xf32, #tpu.memory_space<vmem>>, vector<256x4xf32>
    tpu.vector_store %arg9[%c0_43, %c4], %23 {strides = array<i32>} : memref<256x36xf32, #tpu.memory_space<vmem>>, vector<256x4xf32>,
    %c0_44 = arith.constant 0 : index
    %c2 = arith.constant 2 : index
    %c0_45 = arith.constant 0 : index
    %25 = vector.load %arg7[%c0_44, %c2, %c0_45] : memref<18x18x4xf32, #tpu.memory_space<vmem>>, vector<16x16x4xf32>
    %26 = vector.shape_cast %25 : vector<16x16x4xf32> to vector<256x4xf32>
    %c0_46 = arith.constant 0 : index
    %c8 = arith.constant 8 : index
    %27 = vector.load %arg9[%c0_46, %c8] : memref<256x36xf32, #tpu.memory_space<vmem>>, vector<256x4xf32>
    tpu.vector_store %arg9[%c0_46, %c8], %26 {strides = array<i32>} : memref<256x36xf32, #tpu.memory_space<vmem>>, vector<256x4xf32>,
    %c1_47 = arith.constant 1 : index
    %c0_48 = arith.constant 0 : index
    %c0_49 = arith.constant 0 : index
    %28 = vector.load %arg7[%c1_47, %c0_48, %c0_49] : memref<18x18x4xf32, #tpu.memory_space<vmem>>, vector<16x16x4xf32>
    %29 = vector.shape_cast %28 : vector<16x16x4xf32> to vector<256x4xf32>
    %c0_50 = arith.constant 0 : index
    %c12 = arith.constant 12 : index
    %30 = vector.load %arg9[%c0_50, %c12] : memref<256x36xf32, #tpu.memory_space<vmem>>, vector<256x4xf32>
    tpu.vector_store %arg9[%c0_50, %c12], %29 {strides = array<i32>} : memref<256x36xf32, #tpu.memory_space<vmem>>, vector<256x4xf32>,
    %c1_51 = arith.constant 1 : index
    %c1_52 = arith.constant 1 : index
    %c0_53 = arith.constant 0 : index
    %31 = vector.load %arg7[%c1_51, %c1_52, %c0_53] : memref<18x18x4xf32, #tpu.memory_space<vmem>>, vector<16x16x4xf32>
    %32 = vector.shape_cast %31 : vector<16x16x4xf32> to vector<256x4xf32>
    %c0_54 = arith.constant 0 : index
    %c16 = arith.constant 16 : index
    %33 = vector.load %arg9[%c0_54, %c16] : memref<256x36xf32, #tpu.memory_space<vmem>>, vector<256x4xf32>
    tpu.vector_store %arg9[%c0_54, %c16], %32 {strides = array<i32>} : memref<256x36xf32, #tpu.memory_space<vmem>>, vector<256x4xf32>,
    %c1_55 = arith.constant 1 : index
    %c2_56 = arith.constant 2 : index
    %c0_57 = arith.constant 0 : index
    %34 = vector.load %arg7[%c1_55, %c2_56, %c0_57] : memref<18x18x4xf32, #tpu.memory_space<vmem>>, vector<16x16x4xf32>
    %35 = vector.shape_cast %34 : vector<16x16x4xf32> to vector<256x4xf32>
    %c0_58 = arith.constant 0 : index
    %c20 = arith.constant 20 : index
    %36 = vector.load %arg9[%c0_58, %c20] : memref<256x36xf32, #tpu.memory_space<vmem>>, vector<256x4xf32>
    tpu.vector_store %arg9[%c0_58, %c20], %35 {strides = array<i32>} : memref<256x36xf32, #tpu.memory_space<vmem>>, vector<256x4xf32>,
    %c2_59 = arith.constant 2 : index
    %c0_60 = arith.constant 0 : index
    %c0_61 = arith.constant 0 : index
    %37 = vector.load %arg7[%c2_59, %c0_60, %c0_61] : memref<18x18x4xf32, #tpu.memory_space<vmem>>, vector<16x16x4xf32>
    %38 = vector.shape_cast %37 : vector<16x16x4xf32> to vector<256x4xf32>
    %c0_62 = arith.constant 0 : index
    %c24 = arith.constant 24 : index
    %39 = vector.load %arg9[%c0_62, %c24] : memref<256x36xf32, #tpu.memory_space<vmem>>, vector<256x4xf32>
    tpu.vector_store %arg9[%c0_62, %c24], %38 {strides = array<i32>} : memref<256x36xf32, #tpu.memory_space<vmem>>, vector<256x4xf32>,
    %c2_63 = arith.constant 2 : index
    %c1_64 = arith.constant 1 : index
    %c0_65 = arith.constant 0 : index
    %40 = vector.load %arg7[%c2_63, %c1_64, %c0_65] : memref<18x18x4xf32, #tpu.memory_space<vmem>>, vector<16x16x4xf32>
    %41 = vector.shape_cast %40 : vector<16x16x4xf32> to vector<256x4xf32>
    %c0_66 = arith.constant 0 : index
    %c28 = arith.constant 28 : index
    %42 = vector.load %arg9[%c0_66, %c28] : memref<256x36xf32, #tpu.memory_space<vmem>>, vector<256x4xf32>
    tpu.vector_store %arg9[%c0_66, %c28], %41 {strides = array<i32>} : memref<256x36xf32, #tpu.memory_space<vmem>>, vector<256x4xf32>,
    %c2_67 = arith.constant 2 : index
    %c2_68 = arith.constant 2 : index
    %c0_69 = arith.constant 0 : index
    %43 = vector.load %arg7[%c2_67, %c2_68, %c0_69] : memref<18x18x4xf32, #tpu.memory_space<vmem>>, vector<16x16x4xf32>
    %44 = vector.shape_cast %43 : vector<16x16x4xf32> to vector<256x4xf32>
    %c0_70 = arith.constant 0 : index
    %c32 = arith.constant 32 : index
    %45 = vector.load %arg9[%c0_70, %c32] : memref<256x36xf32, #tpu.memory_space<vmem>>, vector<256x4xf32>
    tpu.vector_store %arg9[%c0_70, %c32], %44 {strides = array<i32>} : memref<256x36xf32, #tpu.memory_space<vmem>>, vector<256x4xf32>,
    %c0_71 = arith.constant 0 : index
    %c0_72 = arith.constant 0 : index
    %46 = vector.load %arg9[%c0_71, %c0_72] : memref<256x36xf32, #tpu.memory_space<vmem>>, vector<256x36xf32>
    %c0_73 = arith.constant 0 : index
    %c0_74 = arith.constant 0 : index
    %47 = vector.load %arg2[%c0_73, %c0_74] : memref<36x8xf32, #tpu.memory_space<vmem>>, vector<36x8xf32>
    %cst_75 = arith.constant dense<0.000000e+00> : vector<256x8xf32>
    %48 = tpu.matmul %46, %47, %cst_75 {dimension_numbers = #tpu.dot_dimension_numbers<[1], [0], [0], [1], [0, 0, 1, 1], [], []>} : vector<256x36xf32>, vector<36x8xf32>, vector<256x8xf32> -> vector<256x8xf32>
    %c0_76 = arith.constant 0 : index
    %c0_77 = arith.constant 0 : index
    %49 = vector.load %arg3[%c0_76, %c0_77] : memref<1x8xf32, #tpu.memory_space<vmem>>, vector<1x8xf32>
    %50 = vector.shape_cast %49 : vector<1x8xf32> to vector<8xf32>
    %51 = vector.shape_cast %50 : vector<8xf32> to vector<1x8xf32>
    %52 = vector.broadcast %51 : vector<1x8xf32> to vector<256x8xf32>
    %53 = arith.addf %48, %52 : vector<256x8xf32>
    %cst_78 = arith.constant 0.000000e+00 : f32
    %54 = vector.broadcast %cst_78 : f32 to vector<256x8xf32>
    %55 = arith.maximumf %53, %54 : vector<256x8xf32>
    %56 = vector.shape_cast %55 : vector<256x8xf32> to vector<16x16x8xf32>
    %c1_79 = arith.constant 1 : index
    %c1_80 = arith.constant 1 : index
    %c0_81 = arith.constant 0 : index
    %57 = vector.load %arg8[%c1_79, %c1_80, %c0_81] : memref<18x18x8xf32, #tpu.memory_space<vmem>>, vector<16x16x8xf32>
    tpu.vector_store %arg8[%c1_79, %c1_80, %c0_81], %56 {strides = array<i32>} : memref<18x18x8xf32, #tpu.memory_space<vmem>>, vector<16x16x8xf32>,
    %c0_82 = arith.constant 0 : index
    %c0_83 = arith.constant 0 : index
    %c0_84 = arith.constant 0 : index
    %58 = vector.load %arg8[%c0_82, %c0_83, %c0_84] : memref<18x18x8xf32, #tpu.memory_space<vmem>>, vector<16x16x8xf32>
    %59 = vector.shape_cast %58 : vector<16x16x8xf32> to vector<256x8xf32>
    %c0_85 = arith.constant 0 : index
    %c0_86 = arith.constant 0 : index
    %60 = vector.load %arg10[%c0_85, %c0_86] : memref<256x76xf32, #tpu.memory_space<vmem>>, vector<256x8xf32>
    tpu.vector_store %arg10[%c0_85, %c0_86], %59 {strides = array<i32>} : memref<256x76xf32, #tpu.memory_space<vmem>>, vector<256x8xf32>,
    %c0_87 = arith.constant 0 : index
    %c1_88 = arith.constant 1 : index
    %c0_89 = arith.constant 0 : index
    %61 = vector.load %arg8[%c0_87, %c1_88, %c0_89] : memref<18x18x8xf32, #tpu.memory_space<vmem>>, vector<16x16x8xf32>
    %62 = vector.shape_cast %61 : vector<16x16x8xf32> to vector<256x8xf32>
    %c0_90 = arith.constant 0 : index
    %c8_91 = arith.constant 8 : index
    %63 = vector.load %arg10[%c0_90, %c8_91] : memref<256x76xf32, #tpu.memory_space<vmem>>, vector<256x8xf32>
    tpu.vector_store %arg10[%c0_90, %c8_91], %62 {strides = array<i32>} : memref<256x76xf32, #tpu.memory_space<vmem>>, vector<256x8xf32>,
    %c0_92 = arith.constant 0 : index
    %c2_93 = arith.constant 2 : index
    %c0_94 = arith.constant 0 : index
    %64 = vector.load %arg8[%c0_92, %c2_93, %c0_94] : memref<18x18x8xf32, #tpu.memory_space<vmem>>, vector<16x16x8xf32>
    %65 = vector.shape_cast %64 : vector<16x16x8xf32> to vector<256x8xf32>
    %c0_95 = arith.constant 0 : index
    %c16_96 = arith.constant 16 : index
    %66 = vector.load %arg10[%c0_95, %c16_96] : memref<256x76xf32, #tpu.memory_space<vmem>>, vector<256x8xf32>
    tpu.vector_store %arg10[%c0_95, %c16_96], %65 {strides = array<i32>} : memref<256x76xf32, #tpu.memory_space<vmem>>, vector<256x8xf32>,
    %c1_97 = arith.constant 1 : index
    %c0_98 = arith.constant 0 : index
    %c0_99 = arith.constant 0 : index
    %67 = vector.load %arg8[%c1_97, %c0_98, %c0_99] : memref<18x18x8xf32, #tpu.memory_space<vmem>>, vector<16x16x8xf32>
    %68 = vector.shape_cast %67 : vector<16x16x8xf32> to vector<256x8xf32>
    %c0_100 = arith.constant 0 : index
    %c24_101 = arith.constant 24 : index
    %69 = vector.load %arg10[%c0_100, %c24_101] : memref<256x76xf32, #tpu.memory_space<vmem>>, vector<256x8xf32>
    tpu.vector_store %arg10[%c0_100, %c24_101], %68 {strides = array<i32>} : memref<256x76xf32, #tpu.memory_space<vmem>>, vector<256x8xf32>,
    %c1_102 = arith.constant 1 : index
    %c1_103 = arith.constant 1 : index
    %c0_104 = arith.constant 0 : index
    %70 = vector.load %arg8[%c1_102, %c1_103, %c0_104] : memref<18x18x8xf32, #tpu.memory_space<vmem>>, vector<16x16x8xf32>
    %71 = vector.shape_cast %70 : vector<16x16x8xf32> to vector<256x8xf32>
    %c0_105 = arith.constant 0 : index
    %c32_106 = arith.constant 32 : index
    %72 = vector.load %arg10[%c0_105, %c32_106] : memref<256x76xf32, #tpu.memory_space<vmem>>, vector<256x8xf32>
    tpu.vector_store %arg10[%c0_105, %c32_106], %71 {strides = array<i32>} : memref<256x76xf32, #tpu.memory_space<vmem>>, vector<256x8xf32>,
    %c1_107 = arith.constant 1 : index
    %c2_108 = arith.constant 2 : index
    %c0_109 = arith.constant 0 : index
    %73 = vector.load %arg8[%c1_107, %c2_108, %c0_109] : memref<18x18x8xf32, #tpu.memory_space<vmem>>, vector<16x16x8xf32>
    %74 = vector.shape_cast %73 : vector<16x16x8xf32> to vector<256x8xf32>
    %c0_110 = arith.constant 0 : index
    %c40 = arith.constant 40 : index
    %75 = vector.load %arg10[%c0_110, %c40] : memref<256x76xf32, #tpu.memory_space<vmem>>, vector<256x8xf32>
    tpu.vector_store %arg10[%c0_110, %c40], %74 {strides = array<i32>} : memref<256x76xf32, #tpu.memory_space<vmem>>, vector<256x8xf32>,
    %c2_111 = arith.constant 2 : index
    %c0_112 = arith.constant 0 : index
    %c0_113 = arith.constant 0 : index
    %76 = vector.load %arg8[%c2_111, %c0_112, %c0_113] : memref<18x18x8xf32, #tpu.memory_space<vmem>>, vector<16x16x8xf32>
    %77 = vector.shape_cast %76 : vector<16x16x8xf32> to vector<256x8xf32>
    %c0_114 = arith.constant 0 : index
    %c48 = arith.constant 48 : index
    %78 = vector.load %arg10[%c0_114, %c48] : memref<256x76xf32, #tpu.memory_space<vmem>>, vector<256x8xf32>
    tpu.vector_store %arg10[%c0_114, %c48], %77 {strides = array<i32>} : memref<256x76xf32, #tpu.memory_space<vmem>>, vector<256x8xf32>,
    %c2_115 = arith.constant 2 : index
    %c1_116 = arith.constant 1 : index
    %c0_117 = arith.constant 0 : index
    %79 = vector.load %arg8[%c2_115, %c1_116, %c0_117] : memref<18x18x8xf32, #tpu.memory_space<vmem>>, vector<16x16x8xf32>
    %80 = vector.shape_cast %79 : vector<16x16x8xf32> to vector<256x8xf32>
    %c0_118 = arith.constant 0 : index
    %c56 = arith.constant 56 : index
    %81 = vector.load %arg10[%c0_118, %c56] : memref<256x76xf32, #tpu.memory_space<vmem>>, vector<256x8xf32>
    tpu.vector_store %arg10[%c0_118, %c56], %80 {strides = array<i32>} : memref<256x76xf32, #tpu.memory_space<vmem>>, vector<256x8xf32>,
    %c2_119 = arith.constant 2 : index
    %c2_120 = arith.constant 2 : index
    %c0_121 = arith.constant 0 : index
    %82 = vector.load %arg8[%c2_119, %c2_120, %c0_121] : memref<18x18x8xf32, #tpu.memory_space<vmem>>, vector<16x16x8xf32>
    %83 = vector.shape_cast %82 : vector<16x16x8xf32> to vector<256x8xf32>
    %c0_122 = arith.constant 0 : index
    %c64 = arith.constant 64 : index
    %84 = vector.load %arg10[%c0_122, %c64] : memref<256x76xf32, #tpu.memory_space<vmem>>, vector<256x8xf32>
    tpu.vector_store %arg10[%c0_122, %c64], %83 {strides = array<i32>} : memref<256x76xf32, #tpu.memory_space<vmem>>, vector<256x8xf32>,
    %c1_123 = arith.constant 1 : index
    %c1_124 = arith.constant 1 : index
    %c0_125 = arith.constant 0 : index
    %85 = vector.load %arg7[%c1_123, %c1_124, %c0_125] : memref<18x18x4xf32, #tpu.memory_space<vmem>>, vector<16x16x4xf32>
    %86 = vector.shape_cast %85 : vector<16x16x4xf32> to vector<256x4xf32>
    %c0_126 = arith.constant 0 : index
    %c72 = arith.constant 72 : index
    %87 = vector.load %arg10[%c0_126, %c72] : memref<256x76xf32, #tpu.memory_space<vmem>>, vector<256x4xf32>
    tpu.vector_store %arg10[%c0_126, %c72], %86 {strides = array<i32>} : memref<256x76xf32, #tpu.memory_space<vmem>>, vector<256x4xf32>,
    %c0_127 = arith.constant 0 : index
    %c0_128 = arith.constant 0 : index
    %88 = vector.load %arg10[%c0_127, %c0_128] : memref<256x76xf32, #tpu.memory_space<vmem>>, vector<256x76xf32>
    %c0_129 = arith.constant 0 : index
    %c0_130 = arith.constant 0 : index
    %89 = vector.load %arg4[%c0_129, %c0_130] : memref<76x8xf32, #tpu.memory_space<vmem>>, vector<76x8xf32>
    %cst_131 = arith.constant dense<0.000000e+00> : vector<256x8xf32>
    %90 = tpu.matmul %88, %89, %cst_131 {dimension_numbers = #tpu.dot_dimension_numbers<[1], [0], [0], [1], [0, 0, 1, 1], [], []>} : vector<256x76xf32>, vector<76x8xf32>, vector<256x8xf32> -> vector<256x8xf32>
    %c0_132 = arith.constant 0 : index
    %c0_133 = arith.constant 0 : index
    %91 = vector.load %arg5[%c0_132, %c0_133] : memref<1x8xf32, #tpu.memory_space<vmem>>, vector<1x8xf32>
    %92 = vector.shape_cast %91 : vector<1x8xf32> to vector<8xf32>
    %93 = vector.shape_cast %92 : vector<8xf32> to vector<1x8xf32>
    %94 = vector.broadcast %93 : vector<1x8xf32> to vector<256x8xf32>
    %95 = arith.addf %90, %94 : vector<256x8xf32>
    %cst_134 = arith.constant 0.000000e+00 : f32
    %96 = vector.broadcast %cst_134 : f32 to vector<256x8xf32>
    %97 = arith.maximumf %95, %96 : vector<256x8xf32>
    %98 = vector.shape_cast %97 : vector<256x8xf32> to vector<16x16x8xf32>
    %99 = vector.shape_cast %98 : vector<16x16x8xf32> to vector<8x2x16x8xf32>
    %cst_135 = arith.constant dense<0xFF800000> : vector<8x16x8xf32>
    %100 = vector.multi_reduction <maximumf>, %99, %cst_135 [1] : vector<8x2x16x8xf32> to vector<8x16x8xf32>
    %101 = vector.shape_cast %100 : vector<8x16x8xf32> to vector<8x8x2x8xf32>
    %cst_136 = arith.constant dense<0xFF800000> : vector<8x8x8xf32>
    %102 = vector.multi_reduction <maximumf>, %101, %cst_136 [2] : vector<8x8x2x8xf32> to vector<8x8x8xf32>
    %c0_137 = arith.constant 0 : index
    %c0_138 = arith.constant 0 : index
    %c0_139 = arith.constant 0 : index
    %c0_140 = arith.constant 0 : index
    %103 = vector.load %arg6[%c0_137, %c0_138, %c0_139, %c0_140] : memref<1x8x8x8xf32, #tpu.memory_space<vmem>>, vector<1x8x8x8xf32>
    %104 = vector.shape_cast %103 : vector<1x8x8x8xf32> to vector<8x8x8xf32>
    %105 = vector.shape_cast %102 : vector<8x8x8xf32> to vector<1x8x8x8xf32>
    tpu.vector_store %arg6[%c0_137, %c0_138, %c0_139, %c0_140], %105 {strides = array<i32>} : memref<1x8x8x8xf32, #tpu.memory_space<vmem>>, vector<1x8x8x8xf32>,
    return
  }
  func.func @transform_0(%arg0: i32) -> (i32, i32, i32, i32) {
    %c0_i32 = arith.constant 0 : i32
    %c0_i32_0 = arith.constant 0 : i32
    %c0_i32_1 = arith.constant 0 : i32
    %c0_i32_2 = arith.constant 0 : i32
    return %arg0, %c0_i32, %c0_i32_0, %c0_i32_1 : i32, i32, i32, i32
  }
  func.func @transform_1(%arg0: i32) -> (i32, i32) {
    %c0_i32 = arith.constant 0 : i32
    %c0_i32_0 = arith.constant 0 : i32
    %c0_i32_1 = arith.constant 0 : i32
    return %c0_i32, %c0_i32_0 : i32, i32
  }
  func.func @transform_2(%arg0: i32) -> (i32, i32) {
    %c0_i32 = arith.constant 0 : i32
    %c0_i32_0 = arith.constant 0 : i32
    %c0_i32_1 = arith.constant 0 : i32
    return %c0_i32, %c0_i32_0 : i32, i32
  }
  func.func @transform_3(%arg0: i32) -> (i32, i32) {
    %c0_i32 = arith.constant 0 : i32
    %c0_i32_0 = arith.constant 0 : i32
    %c0_i32_1 = arith.constant 0 : i32
    return %c0_i32, %c0_i32_0 : i32, i32
  }
  func.func @transform_4(%arg0: i32) -> (i32, i32) {
    %c0_i32 = arith.constant 0 : i32
    %c0_i32_0 = arith.constant 0 : i32
    %c0_i32_1 = arith.constant 0 : i32
    return %c0_i32, %c0_i32_0 : i32, i32
  }
  func.func @transform_5(%arg0: i32) -> (i32, i32, i32, i32) {
    %c0_i32 = arith.constant 0 : i32
    %c0_i32_0 = arith.constant 0 : i32
    %c0_i32_1 = arith.constant 0 : i32
    %c0_i32_2 = arith.constant 0 : i32
    return %arg0, %c0_i32, %c0_i32_0, %c0_i32_1 : i32, i32, i32, i32
  }
}

</mosaic_0001>

<llo_original>
// kernel: features_downsample.1
$region0: #{features_downsample.1}
  #allocation0 [shape = 'u32[]', space=smem, size = 0x4, offset = 0x4, fixed_abs, tag = 'smem constant byte address 0x4 - core index']
  #allocation1 [shape = 'u32[144,128]{1,0:T(1,128)}', space=vmem, size = 0x12000, scoped, tag = 'internal scratch']
  #allocation2 [shape = 'f32[18,18,4]{2,1,0:T(8,128)}', space=vmem, size = 0x36000, scoped, tag = 'scratch operand']
  #allocation3 [shape = 'f32[18,18,8]{2,1,0:T(8,128)}', space=vmem, size = 0x36000, scoped, tag = 'scratch operand']
  #allocation4 [shape = 'f32[256,36]{1,0:T(8,128)}', space=vmem, size = 0x20000, scoped, tag = 'scratch operand']
  #allocation5 [shape = 'f32[256,76]{1,0:T(8,128)}', space=vmem, size = 0x20000, scoped, tag = 'scratch operand']
  %s0 = inlined_call_operand.vmem [shape: f32[2,16,16,4], index: 0, kind: input, shape index: {}]
  %s1 = inlined_call_operand.vmem [shape: f32[36,8], index: 1, kind: input, shape index: {}]
  %s2 = inlined_call_operand.vmem [shape: f32[1,8], index: 2, kind: input, shape index: {}]
  %s3 = inlined_call_operand.vmem [shape: f32[76,8], index: 3, kind: input, shape index: {}]
  %s4 = inlined_call_operand.vmem [shape: f32[1,8], index: 4, kind: input, shape index: {}]
  %s5 = inlined_call_operand.vmem [shape: f32[2,8,8,8], index: 5, kind: output, shape index: {}]
  %s6 = sld [smem:[#allocation0]]
  $region53: #{features_downsample.1} parent=0
    _
  %s8 = ssub.s32 1, %s6
  %s9 = scalar_select 0, %s8, %s6
  loop: start=0, step=1, limit=4
  $region2: #{features_downsample.1} parent=0 // loop_pre_header
    _
  $region3: #{features_downsample.1} parent=0 // loop_header
    %s11 = sphi 0, %s15
    %p12 = scmp.ge.s32.totalorder %s11, 4
    %s21 = sphi 0, %s23
    %s24 = sphi 0, %s21
    %s25 = sphi 0, %s24
    %s41 = sphi 0, %s25
    %s45 = sphi 0, %s45
    %s47 = sphi 0, %s45
    %s48 = sphi 0, %s47
    %s62 = sphi 0, %s48
    %s66 = sphi 0, %s66
    %s68 = sphi 0, %s66
    %s69 = sphi 0, %s68
    %s83 = sphi 0, %s69
    %s87 = sphi 0, %s87
    %s89 = sphi 0, %s87
    %s90 = sphi 0, %s89
    %s104 = sphi 0, %s90
    %s108 = sphi 0, %s108
    %s110 = sphi 0, %s108
    %s111 = sphi 0, %s110
    %s125 = sphi 0, %s111
    %s131 = sphi 0, %s133
    %s134 = sphi 0, %s131
    %s135 = sphi 0, %s134
    %s151 = sphi 0, %s135
  $region4: #{features_downsample.1} parent=0 // loop_header_branch
    %14 = sbr.rel (%p12) target = $region8
  $region5: #{features_downsample.1} parent=0 // loop_body
    %s16 = ssub.s32 %s11, 1
    %s17 = ssub.s32 %s11, 2
    %s18 = sadd.s32 %s11, 1
    %s19 = ssub.s32 %s11, %s18
    %p20 = scmp.eq.s32.totalorder %s19, 0
    %s22 = sadd.s32 %s21, 1
    %s23 = scalar_select %p20, %s21, %s22
    %p26 = pneg %p20
    %p27 = scmp.eq.s32.totalorder %s11, 1
    %p28 = por %p26, %p27
    %p29 = scmp.ne.s32.totalorder %s21, %s24
    %p30 = scmp.eq.s32.totalorder %s11, 0
    %p31 = por %p29, %p30
    %p32 = scmp.ne.s32.totalorder %s21, %s24
    %p33 = scmp.eq.s32.totalorder %s16, 1
    %p34 = por %p32, %p33
    %p35 = scmp.ne.s32.totalorder %s24, %s25
    %p36 = scmp.eq.s32.totalorder %s16, 0
    %p37 = por %p35, %p36
    %p38 = scmp.ne.s32.totalorder %s24, %s25
    %p39 = scmp.eq.s32.totalorder %s17, 1
    %p40 = por %p38, %p39
    %p42 = scmp.ne.s32.totalorder %s25, %s41
    %p43 = scmp.eq.s32.totalorder %s17, 0
    %p44 = por %p42, %p43
    %s46 = sadd.s32 %s45, 1
    %p49 = scmp.eq.s32.totalorder %s11, 1
    %p50 = scmp.ne.s32.totalorder %s45, %s47
    %p51 = scmp.eq.s32.totalorder %s11, 0
    %p52 = por %p50, %p51
    %p53 = scmp.ne.s32.totalorder %s45, %s47
    %p54 = scmp.eq.s32.totalorder %s16, 1
    %p55 = por %p53, %p54
    %p56 = scmp.ne.s32.totalorder %s47, %s48
    %p57 = scmp.eq.s32.totalorder %s16, 0
    %p58 = por %p56, %p57
    %p59 = scmp.ne.s32.totalorder %s47, %s48
    %p60 = scmp.eq.s32.totalorder %s17, 1
    %p61 = por %p59, %p60
    %p63 = scmp.ne.s32.totalorder %s48, %s62
    %p64 = scmp.eq.s32.totalorder %s17, 0
    %p65 = por %p63, %p64
    %s67 = sadd.s32 %s66, 1
    %p70 = scmp.eq.s32.totalorder %s11, 1
    %p71 = scmp.ne.s32.totalorder %s66, %s68
    %p72 = scmp.eq.s32.totalorder %s11, 0
    %p73 = por %p71, %p72
    %p74 = scmp.ne.s32.totalorder %s66, %s68
    %p75 = scmp.eq.s32.totalorder %s16, 1
    %p76 = por %p74, %p75
    %p77 = scmp.ne.s32.totalorder %s68, %s69
    %p78 = scmp.eq.s32.totalorder %s16, 0
    %p79 = por %p77, %p78
    %p80 = scmp.ne.s32.totalorder %s68, %s69
    %p81 = scmp.eq.s32.totalorder %s17, 1
    %p82 = por %p80, %p81
    %p84 = scmp.ne.s32.totalorder %s69, %s83
    %p85 = scmp.eq.s32.totalorder %s17, 0
    %p86 = por %p84, %p85
    %s88 = sadd.s32 %s87, 1
    %p91 = scmp.eq.s32.totalorder %s11, 1
    %p92 = scmp.ne.s32.totalorder %s87, %s89
    %p93 = scmp.eq.s32.totalorder %s11, 0
    %p94 = por %p92, %p93
    %p95 = scmp.ne.s32.totalorder %s87, %s89
    %p96 = scmp.eq.s32.totalorder %s16, 1
    %p97 = por %p95, %p96
    %p98 = scmp.ne.s32.totalorder %s89, %s90
    %p99 = scmp.eq.s32.totalorder %s16, 0
    %p100 = por %p98, %p99
    %p101 = scmp.ne.s32.totalorder %s89, %s90
    %p102 = scmp.eq.s32.totalorder %s17, 1
    %p103 = por %p101, %p102
    %p105 = scmp.ne.s32.totalorder %s90, %s104
    %p106 = scmp.eq.s32.totalorder %s17, 0
    %p107 = por %p105, %p106
    %s109 = sadd.s32 %s108, 1
    %p112 = scmp.eq.s32.totalorder %s11, 1
    %p113 = scmp.ne.s32.totalorder %s108, %s110
    %p114 = scmp.eq.s32.totalorder %s11, 0
    %p115 = por %p113, %p114
    %p116 = scmp.ne.s32.totalorder %s108, %s110
    %p117 = scmp.eq.s32.totalorder %s16, 1
    %p118 = por %p116, %p117
    %p119 = scmp.ne.s32.totalorder %s110, %s111
    %p120 = scmp.eq.s32.totalorder %s16, 0
    %p121 = por %p119, %p120
    %p122 = scmp.ne.s32.totalorder %s110, %s111
    %p123 = scmp.eq.s32.totalorder %s17, 1
    %p124 = por %p122, %p123
    %p126 = scmp.ne.s32.totalorder %s111, %s125
    %p127 = scmp.eq.s32.totalorder %s17, 0
    %p128 = por %p126, %p127
    %s129 = ssub.s32 %s11, %s18
    %p130 = scmp.eq.s32.totalorder %s129, 0
    %s132 = sadd.s32 %s131, 1
    %s133 = scalar_select %p130, %s131, %s132
    %p136 = pneg %p130
    %p137 = scmp.eq.s32.totalorder %s11, 1
    %p138 = por %p136, %p137
    %p139 = scmp.ne.s32.totalorder %s131, %s134
    %p140 = scmp.eq.s32.totalorder %s11, 0
    %p141 = por %p139, %p140
    %p142 = scmp.ne.s32.totalorder %s131, %s134
    %p143 = scmp.eq.s32.totalorder %s16, 1
    %p144 = por %p142, %p143
    %p145 = scmp.ne.s32.totalorder %s134, %s135
    %p146 = scmp.eq.s32.totalorder %s16, 0
    %p147 = por %p145, %p146
    %p148 = scmp.ne.s32.totalorder %s134, %s135
    %p149 = scmp.eq.s32.totalorder %s17, 1
    %p150 = por %p148, %p149
    %p152 = scmp.ne.s32.totalorder %s135, %s151
    %p153 = scmp.eq.s32.totalorder %s17, 0
    %p154 = por %p152, %p153
    %p155 = scmp.le.s32.totalorder 1, %s11
    %p156 = scmp.lt.s32.totalorder %s11, 3
    %p157 = pnand %p155, %p156
    %p158 = pneg %p157
    // Predicated region
    $region9: #{features_downsample.1} parent=5 // pred_check
      _
    $region10: #{features_downsample.1} parent=5 // pred_check_branch
      %160 = sbr.rel (%p157) target = $region12
    $region11: #{features_downsample.1} parent=5 // pred_region
      %s161 = ssub.s32 %s11, 1
      // Predicated region
      $region13: #{features_downsample.1} parent=11 // pred_check
        %p162 = pneg %p58
      $region14: #{features_downsample.1} parent=11 // pred_check_branch
        %164 = sbr.rel (%p162) target = $region16
      $region15: #{features_downsample.1} parent=11 // pred_region
        _
      $region16: #{features_downsample.1} parent=11 // pred_fallthru
        _
      // Predicated region
      $region17: #{features_downsample.1} parent=11 // pred_check
        %p165 = pneg %p79
      $region18: #{features_downsample.1} parent=11 // pred_check_branch
        %167 = sbr.rel (%p165) target = $region20
      $region19: #{features_downsample.1} parent=11 // pred_region
        _
      $region20: #{features_downsample.1} parent=11 // pred_fallthru
        _
      // Predicated region
      $region21: #{features_downsample.1} parent=11 // pred_check
        %p168 = pneg %p100
      $region22: #{features_downsample.1} parent=11 // pred_check_branch
        %170 = sbr.rel (%p168) target = $region24
      $region23: #{features_downsample.1} parent=11 // pred_region
        _
      $region24: #{features_downsample.1} parent=11 // pred_fallthru
        _
      // Predicated region
      $region25: #{features_downsample.1} parent=11 // pred_check
        %p171 = pneg %p121
      $region26: #{features_downsample.1} parent=11 // pred_check_branch
        %173 = sbr.rel (%p171) target = $region28
      $region27: #{features_downsample.1} parent=11 // pred_region
        _
      $region28: #{features_downsample.1} parent=11 // pred_fallthru
        _
    $region12: #{features_downsample.1} parent=5 // pred_fallthru
      _
    %p174 = scmp.lt.s32.totalorder %s11, 2
    // Predicated region
    $region29: #{features_downsample.1} parent=5 // pred_check
      %p175 = pneg %p174
    $region30: #{features_downsample.1} parent=5 // pred_check_branch
      %177 = sbr.rel (%p175) target = $region32
    $region31: #{features_downsample.1} parent=5 // pred_region
      // Predicated region
      $region33: #{features_downsample.1} parent=31 // pred_check
        %p178 = pneg %p31
      $region34: #{features_downsample.1} parent=31 // pred_check_branch
        %180 = sbr.rel (%p178) target = $region36
      $region35: #{features_downsample.1} parent=31 // pred_region
        %p181 = scmp.lt.s32.totalorder %s11, 1
        %s182 = scalar_select %p181, %s11, 1
        %s183 = smul.addr %s182, 32
        %s184 = smul.addr %s183, 8
        %s185 = scalar_lea.vmem %s0, %s184
      $region36: #{features_downsample.1} parent=31 // pred_fallthru
        _
    $region32: #{features_downsample.1} parent=5 // pred_fallthru
      _
    %p186 = scmp.le.s32.totalorder 1, %s11
    %p187 = scmp.lt.s32.totalorder %s11, 3
    %p188 = pnand %p186, %p187
    %p189 = pneg %p188
    // Predicated region
    $region37: #{features_downsample.1} parent=5 // pred_check
      _
    $region38: #{features_downsample.1} parent=5 // pred_check_branch
      %191 = sbr.rel (%p188) target = $region40
    $region39: #{features_downsample.1} parent=5 // pred_region
      %s192 = ssub.s32 %s11, 1
      %p193 = scmp.lt.s32.totalorder %s16, 1
      %s194 = scalar_select %p193, %s16, 1
      %s195 = smul.addr %s194, 32
      %s196 = smul.addr %s195, 8
      %s197 = scalar_lea.vmem %s0, %s196
      %p198 = pneg %p37
      %p199 = pneg %p34
      %p200 = pneg %p58
      %p201 = pneg %p55
      %p202 = pneg %p79
      %p203 = pneg %p76
      %p204 = pneg %p100
      %p205 = pneg %p97
      %p206 = pneg %p121
      %p207 = pneg %p118
      %p208 = pneg %p147
      %p209 = pneg %p144
      %p210 = scmp.lt.s32.totalorder %s16, 1
      %s211 = scalar_select %p210, %s16, 1
      %s212 = smul.addr %s211, 8
      %s213 = smul.addr %s212, 8
      %s214 = scalar_lea.vmem %s5, %s213
      %p215 = scmp.lt.s32.totalorder %s16, 1
      %s216 = scalar_select %p215, %s16, 1
      %s217 = smul.addr %s216, 32
      %s218 = smul.addr %s217, 8
      %s219 = scalar_lea.vmem %s0, %s218
      %p220 = scmp.lt.s32.totalorder %s16, 1
      %s221 = scalar_select %p220, %s16, 1
      %s222 = smul.addr %s221, 8
      %s223 = smul.addr %s222, 8
      %s224 = scalar_lea.vmem %s5, %s223
      %vm225 = vcmask 31744
      %226 = vst.msk [vmem:[#allocation2] sm:$0xff] %vm225, 0.0
      %227 = vst.msk [vmem:[#allocation2 + $0x8] sm:$0xff] %vm225, 0.0
      %vm228 = vcmask 25600
      %229 = vst.msk [vmem:[#allocation2 + $0x10] sm:$0x3] %vm228, 0.0
      %s230 = scalar_lea.vmem [#allocation2], 408
      %231 = vst.msk [vmem:[%s230] sm:$0xff] %vm225, 0.0
      %232 = vst.msk [vmem:[%s230 + $0x8] sm:$0xff] %vm225, 0.0
      %233 = vst.msk [vmem:[%s230 + $0x10] sm:$0x3] %vm228, 0.0
      %vm234 = vcmask 24576
      %235 = vst.msk [vmem:[#allocation2] sm:$0x1] %vm234, 0.0
      %236 = vst.msk [vmem:[#allocation2 + $0x18] sm:$0x1] %vm234, 0.0
      %237 = vst.msk [vmem:[#allocation2 + $0x30] sm:$0x1] %vm234, 0.0
      %238 = vst.msk [vmem:[#allocation2 + $0x48] sm:$0x1] %vm234, 0.0
      %239 = vst.msk [vmem:[#allocation2 + $0x60] sm:$0x1] %vm234, 0.0
      %240 = vst.msk [vmem:[#allocation2 + $0x78] sm:$0x1] %vm234, 0.0
      %241 = vst.msk [vmem:[#allocation2 + $0x90] sm:$0x1] %vm234, 0.0
      %242 = vst.msk [vmem:[#allocation2 + $0xa8] sm:$0x1] %vm234, 0.0
      %243 = vst.msk [vmem:[#allocation2 + $0xc0] sm:$0x1] %vm234, 0.0
      %244 = vst.msk [vmem:[#allocation2 + $0xd8] sm:$0x1] %vm234, 0.0
      %245 = vst.msk [vmem:[#allocation2 + $0xf0] sm:$0x1] %vm234, 0.0
      %246 = vst.msk [vmem:[#allocation2 + $0x108] sm:$0x1] %vm234, 0.0
      %247 = vst.msk [vmem:[#allocation2 + $0x120] sm:$0x1] %vm234, 0.0
      %248 = vst.msk [vmem:[#allocation2 + $0x138] sm:$0x1] %vm234, 0.0
      %249 = vst.msk [vmem:[#allocation2 + $0x150] sm:$0x1] %vm234, 0.0
      %250 = vst.msk [vmem:[#allocation2 + $0x168] sm:$0x1] %vm234, 0.0
      %251 = vst.msk [vmem:[#allocation2 + $0x180] sm:$0x1] %vm234, 0.0
      %252 = vst.msk [vmem:[#allocation2 + $0x198] sm:$0x1] %vm234, 0.0
      %253 = vst.msk [vmem:[#allocation2 + $0x11] sm:$0x1] %vm234, 0.0
      %254 = vst.msk [vmem:[#allocation2 + $0x29] sm:$0x1] %vm234, 0.0
      %255 = vst.msk [vmem:[#allocation2 + $0x41] sm:$0x1] %vm234, 0.0
      %256 = vst.msk [vmem:[#allocation2 + $0x59] sm:$0x1] %vm234, 0.0
      %257 = vst.msk [vmem:[#allocation2 + $0x71] sm:$0x1] %vm234, 0.0
      %258 = vst.msk [vmem:[#allocation2 + $0x89] sm:$0x1] %vm234, 0.0
      %259 = vst.msk [vmem:[#allocation2 + $0xa1] sm:$0x1] %vm234, 0.0
      %260 = vst.msk [vmem:[#allocation2 + $0xb9] sm:$0x1] %vm234, 0.0
      %261 = vst.msk [vmem:[#allocation2 + $0xd1] sm:$0x1] %vm234, 0.0
      %262 = vst.msk [vmem:[#allocation2 + $0xe9] sm:$0x1] %vm234, 0.0
      %263 = vst.msk [vmem:[#allocation2 + $0x101] sm:$0x1] %vm234, 0.0
      %264 = vst.msk [vmem:[#allocation2 + $0x119] sm:$0x1] %vm234, 0.0
      %265 = vst.msk [vmem:[#allocation2 + $0x131] sm:$0x1] %vm234, 0.0
      %266 = vst.msk [vmem:[#allocation2 + $0x149] sm:$0x1] %vm234, 0.0
      %267 = vst.msk [vmem:[#allocation2 + $0x161] sm:$0x1] %vm234, 0.0
      %268 = vst.msk [vmem:[#allocation2 + $0x179] sm:$0x1] %vm234, 0.0
      %269 = vst.msk [vmem:[#allocation2 + $0x191] sm:$0x1] %vm234, 0.0
      %270 = vst.msk [vmem:[#allocation2 + $0x1a9] sm:$0x1] %vm234, 0.0
      %vm271 = vcmask 64512
      %272 = vst.msk [vmem:[#allocation3] sm:$0xff] %vm271, 0.0
      %273 = vst.msk [vmem:[#allocation3 + $0x8] sm:$0xff] %vm271, 0.0
      %vm274 = vcmask 58368
      %275 = vst.msk [vmem:[#allocation3 + $0x10] sm:$0x3] %vm274, 0.0
      %s276 = scalar_lea.vmem [#allocation3], 408
      %277 = vst.msk [vmem:[%s276] sm:$0xff] %vm271, 0.0
      %278 = vst.msk [vmem:[%s276 + $0x8] sm:$0xff] %vm271, 0.0
      %279 = vst.msk [vmem:[%s276 + $0x10] sm:$0x3] %vm274, 0.0
      %vm280 = vcmask 57344
      %281 = vst.msk [vmem:[#allocation3] sm:$0x1] %vm280, 0.0
      %282 = vst.msk [vmem:[#allocation3 + $0x18] sm:$0x1] %vm280, 0.0
      %283 = vst.msk [vmem:[#allocation3 + $0x30] sm:$0x1] %vm280, 0.0
      %284 = vst.msk [vmem:[#allocation3 + $0x48] sm:$0x1] %vm280, 0.0
      %285 = vst.msk [vmem:[#allocation3 + $0x60] sm:$0x1] %vm280, 0.0
      %286 = vst.msk [vmem:[#allocation3 + $0x78] sm:$0x1] %vm280, 0.0
      %287 = vst.msk [vmem:[#allocation3 + $0x90] sm:$0x1] %vm280, 0.0
      %288 = vst.msk [vmem:[#allocation3 + $0xa8] sm:$0x1] %vm280, 0.0
      %289 = vst.msk [vmem:[#allocation3 + $0xc0] sm:$0x1] %vm280, 0.0
      %290 = vst.msk [vmem:[#allocation3 + $0xd8] sm:$0x1] %vm280, 0.0
      %291 = vst.msk [vmem:[#allocation3 + $0xf0] sm:$0x1] %vm280, 0.0
      %292 = vst.msk [vmem:[#allocation3 + $0x108] sm:$0x1] %vm280, 0.0
      %293 = vst.msk [vmem:[#allocation3 + $0x120] sm:$0x1] %vm280, 0.0
      %294 = vst.msk [vmem:[#allocation3 + $0x138] sm:$0x1] %vm280, 0.0
      %295 = vst.msk [vmem:[#allocation3 + $0x150] sm:$0x1] %vm280, 0.0
      %296 = vst.msk [vmem:[#allocation3 + $0x168] sm:$0x1] %vm280, 0.0
      %297 = vst.msk [vmem:[#allocation3 + $0x180] sm:$0x1] %vm280, 0.0
      %298 = vst.msk [vmem:[#allocation3 + $0x198] sm:$0x1] %vm280, 0.0
      %299 = vst.msk [vmem:[#allocation3 + $0x11] sm:$0x1] %vm280, 0.0
      %300 = vst.msk [vmem:[#allocation3 + $0x29] sm:$0x1] %vm280, 0.0
      %301 = vst.msk [vmem:[#allocation3 + $0x41] sm:$0x1] %vm280, 0.0
      %302 = vst.msk [vmem:[#allocation3 + $0x59] sm:$0x1] %vm280, 0.0
      %303 = vst.msk [vmem:[#allocation3 + $0x71] sm:$0x1] %vm280, 0.0
      %304 = vst.msk [vmem:[#allocation3 + $0x89] sm:$0x1] %vm280, 0.0
      %305 = vst.msk [vmem:[#allocation3 + $0xa1] sm:$0x1] %vm280, 0.0
      %306 = vst.msk [vmem:[#allocation3 + $0xb9] sm:$0x1] %vm280, 0.0
      %307 = vst.msk [vmem:[#allocation3 + $0xd1] sm:$0x1] %vm280, 0.0
      %308 = vst.msk [vmem:[#allocation3 + $0xe9] sm:$0x1] %vm280, 0.0
      %309 = vst.msk [vmem:[#allocation3 + $0x101] sm:$0x1] %vm280, 0.0
      %310 = vst.msk [vmem:[#allocation3 + $0x119] sm:$0x1] %vm280, 0.0
      %311 = vst.msk [vmem:[#allocation3 + $0x131] sm:$0x1] %vm280, 0.0
      %312 = vst.msk [vmem:[#allocation3 + $0x149] sm:$0x1] %vm280, 0.0
      %313 = vst.msk [vmem:[#allocation3 + $0x161] sm:$0x1] %vm280, 0.0
      %314 = vst.msk [vmem:[#allocation3 + $0x179] sm:$0x1] %vm280, 0.0
      %315 = vst.msk [vmem:[#allocation3 + $0x191] sm:$0x1] %vm280, 0.0
      %316 = vst.msk [vmem:[#allocation3 + $0x1a9] sm:$0x1] %vm280, 0.0
      %v317 = vld [vmem:[%s219] sm:$0xff]
      %v318 = vld [vmem:[%s219 + $0x8] sm:$0xff]
      %v319 = vld [vmem:[%s219 + $0x10] sm:$0xff]
      %v320 = vld [vmem:[%s219 + $0x18] sm:$0xff]
      %v321 = vld [vmem:[%s219 + $0x20] sm:$0xff]
      %v322 = vld [vmem:[%s219 + $0x28] sm:$0xff]
      %v323 = vld [vmem:[%s219 + $0x30] sm:$0xff]
      %v324 = vld [vmem:[%s219 + $0x38] sm:$0xff]
      %v325 = vld [vmem:[%s219 + $0x40] sm:$0xff]
      %v326 = vld [vmem:[%s219 + $0x48] sm:$0xff]
      %v327 = vld [vmem:[%s219 + $0x50] sm:$0xff]
      %v328 = vld [vmem:[%s219 + $0x58] sm:$0xff]
      %v329 = vld [vmem:[%s219 + $0x60] sm:$0xff]
      %v330 = vld [vmem:[%s219 + $0x68] sm:$0xff]
      %v331 = vld [vmem:[%s219 + $0x70] sm:$0xff]
      %v332 = vld [vmem:[%s219 + $0x78] sm:$0xff]
      %v333 = vld [vmem:[%s219 + $0x80] sm:$0xff]
      %v334 = vld [vmem:[%s219 + $0x88] sm:$0xff]
      %v335 = vld [vmem:[%s219 + $0x90] sm:$0xff]
      %v336 = vld [vmem:[%s219 + $0x98] sm:$0xff]
      %v337 = vld [vmem:[%s219 + $0xa0] sm:$0xff]
      %v338 = vld [vmem:[%s219 + $0xa8] sm:$0xff]
      %v339 = vld [vmem:[%s219 + $0xb0] sm:$0xff]
      %v340 = vld [vmem:[%s219 + $0xb8] sm:$0xff]
      %v341 = vld [vmem:[%s219 + $0xc0] sm:$0xff]
      %v342 = vld [vmem:[%s219 + $0xc8] sm:$0xff]
      %v343 = vld [vmem:[%s219 + $0xd0] sm:$0xff]
      %v344 = vld [vmem:[%s219 + $0xd8] sm:$0xff]
      %v345 = vld [vmem:[%s219 + $0xe0] sm:$0xff]
      %v346 = vld [vmem:[%s219 + $0xe8] sm:$0xff]
      %v347 = vld [vmem:[%s219 + $0xf0] sm:$0xff]
      %v348 = vld [vmem:[%s219 + $0xf8] sm:$0xff]
      %s349 = scalar_lea.vmem [#allocation2], 24
      %350 = vst.msk [vmem:[%s349 + $0x1] sm:$0xff] %vm225, %v317
      %351 = vst.msk [vmem:[%s349 + $0x9] sm:$0xff] %vm225, %v318
      %352 = vst.msk [vmem:[%s349 + $0x19] sm:$0xff] %vm225, %v319
      %353 = vst.msk [vmem:[%s349 + $0x21] sm:$0xff] %vm225, %v320
      %354 = vst.msk [vmem:[%s349 + $0x31] sm:$0xff] %vm225, %v321
      %355 = vst.msk [vmem:[%s349 + $0x39] sm:$0xff] %vm225, %v322
      %356 = vst.msk [vmem:[%s349 + $0x49] sm:$0xff] %vm225, %v323
      %357 = vst.msk [vmem:[%s349 + $0x51] sm:$0xff] %vm225, %v324
      %358 = vst.msk [vmem:[%s349 + $0x61] sm:$0xff] %vm225, %v325
      %359 = vst.msk [vmem:[%s349 + $0x69] sm:$0xff] %vm225, %v326
      %360 = vst.msk [vmem:[%s349 + $0x79] sm:$0xff] %vm225, %v327
      %361 = vst.msk [vmem:[%s349 + $0x81] sm:$0xff] %vm225, %v328
      %362 = vst.msk [vmem:[%s349 + $0x91] sm:$0xff] %vm225, %v329
      %363 = vst.msk [vmem:[%s349 + $0x99] sm:$0xff] %vm225, %v330
      %364 = vst.msk [vmem:[%s349 + $0xa9] sm:$0xff] %vm225, %v331
      %365 = vst.msk [vmem:[%s349 + $0xb1] sm:$0xff] %vm225, %v332
      %366 = vst.msk [vmem:[%s349 + $0xc1] sm:$0xff] %vm225, %v333
      %367 = vst.msk [vmem:[%s349 + $0xc9] sm:$0xff] %vm225, %v334
      %368 = vst.msk [vmem:[%s349 + $0xd9] sm:$0xff] %vm225, %v335
      %369 = vst.msk [vmem:[%s349 + $0xe1] sm:$0xff] %vm225, %v336
      %370 = vst.msk [vmem:[%s349 + $0xf1] sm:$0xff] %vm225, %v337
      %371 = vst.msk [vmem:[%s349 + $0xf9] sm:$0xff] %vm225, %v338
      %372 = vst.msk [vmem:[%s349 + $0x109] sm:$0xff] %vm225, %v339
      %373 = vst.msk [vmem:[%s349 + $0x111] sm:$0xff] %vm225, %v340
      %374 = vst.msk [vmem:[%s349 + $0x121] sm:$0xff] %vm225, %v341
      %375 = vst.msk [vmem:[%s349 + $0x129] sm:$0xff] %vm225, %v342
      %376 = vst.msk [vmem:[%s349 + $0x139] sm:$0xff] %vm225, %v343
      %377 = vst.msk [vmem:[%s349 + $0x141] sm:$0xff] %vm225, %v344
      %378 = vst.msk [vmem:[%s349 + $0x151] sm:$0xff] %vm225, %v345
      %379 = vst.msk [vmem:[%s349 + $0x159] sm:$0xff] %vm225, %v346
      %380 = vst.msk [vmem:[%s349 + $0x169] sm:$0xff] %vm225, %v347
      %381 = vst.msk [vmem:[%s349 + $0x171] sm:$0xff] %vm225, %v348
      %v382 = vld [vmem:[#allocation2] sm:$0xff]
      %v383 = vld [vmem:[#allocation2 + $0x8] sm:$0xff]
      %v384 = vld [vmem:[#allocation2 + $0x18] sm:$0xff]
      %v385 = vld [vmem:[#allocation2 + $0x20] sm:$0xff]
      %v386 = vld [vmem:[#allocation2 + $0x30] sm:$0xff]
      %v387 = vld [vmem:[#allocation2 + $0x38] sm:$0xff]
      %v388 = vld [vmem:[#allocation2 + $0x48] sm:$0xff]
      %v389 = vld [vmem:[#allocation2 + $0x50] sm:$0xff]
      %v390 = vld [vmem:[#allocation2 + $0x60] sm:$0xff]
      %v391 = vld [vmem:[#allocation2 + $0x68] sm:$0xff]
      %v392 = vld [vmem:[#allocation2 + $0x78] sm:$0xff]
      %v393 = vld [vmem:[#allocation2 + $0x80] sm:$0xff]
      %v394 = vld [vmem:[#allocation2 + $0x90] sm:$0xff]
      %v395 = vld [vmem:[#allocation2 + $0x98] sm:$0xff]
      %v396 = vld [vmem:[#allocation2 + $0xa8] sm:$0xff]
      %v397 = vld [vmem:[#allocation2 + $0xb0] sm:$0xff]
      %v398 = vld [vmem:[#allocation2 + $0xc0] sm:$0xff]
      %v399 = vld [vmem:[#allocation2 + $0xc8] sm:$0xff]
      %v400 = vld [vmem:[#allocation2 + $0xd8] sm:$0xff]
      %v401 = vld [vmem:[#allocation2 + $0xe0] sm:$0xff]
      %v402 = vld [vmem:[#allocation2 + $0xf0] sm:$0xff]
      %v403 = vld [vmem:[#allocation2 + $0xf8] sm:$0xff]
      %v404 = vld [vmem:[#allocation2 + $0x108] sm:$0xff]
      %v405 = vld [vmem:[#allocation2 + $0x110] sm:$0xff]
      %v406 = vld [vmem:[#allocation2 + $0x120] sm:$0xff]
      %v407 = vld [vmem:[#allocation2 + $0x128] sm:$0xff]
      %v408 = vld [vmem:[#allocation2 + $0x138] sm:$0xff]
      %v409 = vld [vmem:[#allocation2 + $0x140] sm:$0xff]
      %v410 = vld [vmem:[#allocation2 + $0x150] sm:$0xff]
      %v411 = vld [vmem:[#allocation2 + $0x158] sm:$0xff]
      %v412 = vld [vmem:[#allocation2 + $0x168] sm:$0xff]
      %v413 = vld [vmem:[#allocation2 + $0x170] sm:$0xff]
      %414 = vst.msk [vmem:[#allocation4] sm:$0xff] %vm225, %v382
      %415 = vst.msk [vmem:[#allocation4 + $0x8] sm:$0xff] %vm225, %v383
      %416 = vst.msk [vmem:[#allocation4 + $0x10] sm:$0xff] %vm225, %v384
      %417 = vst.msk [vmem:[#allocation4 + $0x18] sm:$0xff] %vm225, %v385
      %418 = vst.msk [vmem:[#allocation4 + $0x20] sm:$0xff] %vm225, %v386
      %419 = vst.msk [vmem:[#allocation4 + $0x28] sm:$0xff] %vm225, %v387
      %420 = vst.msk [vmem:[#allocation4 + $0x30] sm:$0xff] %vm225, %v388
      %421 = vst.msk [vmem:[#allocation4 + $0x38] sm:$0xff] %vm225, %v389
      %422 = vst.msk [vmem:[#allocation4 + $0x40] sm:$0xff] %vm225, %v390
      %423 = vst.msk [vmem:[#allocation4 + $0x48] sm:$0xff] %vm225, %v391
      %424 = vst.msk [vmem:[#allocation4 + $0x50] sm:$0xff] %vm225, %v392
      %425 = vst.msk [vmem:[#allocation4 + $0x58] sm:$0xff] %vm225, %v393
      %426 = vst.msk [vmem:[#allocation4 + $0x60] sm:$0xff] %vm225, %v394
      %427 = vst.msk [vmem:[#allocation4 + $0x68] sm:$0xff] %vm225, %v395
      %428 = vst.msk [vmem:[#allocation4 + $0x70] sm:$0xff] %vm225, %v396
      %429 = vst.msk [vmem:[#allocation4 + $0x78] sm:$0xff] %vm225, %v397
      %430 = vst.msk [vmem:[#allocation4 + $0x80] sm:$0xff] %vm225, %v398
      %431 = vst.msk [vmem:[#allocation4 + $0x88] sm:$0xff] %vm225, %v399
      %432 = vst.msk [vmem:[#allocation4 + $0x90] sm:$0xff] %vm225, %v400
      %433 = vst.msk [vmem:[#allocation4 + $0x98] sm:$0xff] %vm225, %v401
      %434 = vst.msk [vmem:[#allocation4 + $0xa0] sm:$0xff] %vm225, %v402
      %435 = vst.msk [vmem:[#allocation4 + $0xa8] sm:$0xff] %vm225, %v403
      %436 = vst.msk [vmem:[#allocation4 + $0xb0] sm:$0xff] %vm225, %v404
      %437 = vst.msk [vmem:[#allocation4 + $0xb8] sm:$0xff] %vm225, %v405
      %438 = vst.msk [vmem:[#allocation4 + $0xc0] sm:$0xff] %vm225, %v406
      %439 = vst.msk [vmem:[#allocation4 + $0xc8] sm:$0xff] %vm225, %v407
      %440 = vst.msk [vmem:[#allocation4 + $0xd0] sm:$0xff] %vm225, %v408
      %441 = vst.msk [vmem:[#allocation4 + $0xd8] sm:$0xff] %vm225, %v409
      %442 = vst.msk [vmem:[#allocation4 + $0xe0] sm:$0xff] %vm225, %v410
      %443 = vst.msk [vmem:[#allocation4 + $0xe8] sm:$0xff] %vm225, %v411
      %444 = vst.msk [vmem:[#allocation4 + $0xf0] sm:$0xff] %vm225, %v412
      %445 = vst.msk [vmem:[#allocation4 + $0xf8] sm:$0xff] %vm225, %v413
      %v446 = vld [vmem:[#allocation2 + $0x1] sm:$0xff]
      %v447 = vld [vmem:[#allocation2 + $0x9] sm:$0xff]
      %v448 = vld [vmem:[#allocation2 + $0x19] sm:$0xff]
      %v449 = vld [vmem:[#allocation2 + $0x21] sm:$0xff]
      %v450 = vld [vmem:[#allocation2 + $0x31] sm:$0xff]
      %v451 = vld [vmem:[#allocation2 + $0x39] sm:$0xff]
      %v452 = vld [vmem:[#allocation2 + $0x49] sm:$0xff]
      %v453 = vld [vmem:[#allocation2 + $0x51] sm:$0xff]
      %v454 = vld [vmem:[#allocation2 + $0x61] sm:$0xff]
      %v455 = vld [vmem:[#allocation2 + $0x69] sm:$0xff]
      %v456 = vld [vmem:[#allocation2 + $0x79] sm:$0xff]
      %v457 = vld [vmem:[#allocation2 + $0x81] sm:$0xff]
      %v458 = vld [vmem:[#allocation2 + $0x91] sm:$0xff]
      %v459 = vld [vmem:[#allocation2 + $0x99] sm:$0xff]
      %v460 = vld [vmem:[#allocation2 + $0xa9] sm:$0xff]
      %v461 = vld [vmem:[#allocation2 + $0xb1] sm:$0xff]
      %v462 = vld [vmem:[#allocation2 + $0xc1] sm:$0xff]
      %v463 = vld [vmem:[#allocation2 + $0xc9] sm:$0xff]
      %v464 = vld [vmem:[#allocation2 + $0xd9] sm:$0xff]
      %v465 = vld [vmem:[#allocation2 + $0xe1] sm:$0xff]
      %v466 = vld [vmem:[#allocation2 + $0xf1] sm:$0xff]
      %v467 = vld [vmem:[#allocation2 + $0xf9] sm:$0xff]
      %v468 = vld [vmem:[#allocation2 + $0x109] sm:$0xff]
      %v469 = vld [vmem:[#allocation2 + $0x111] sm:$0xff]
      %v470 = vld [vmem:[#allocation2 + $0x121] sm:$0xff]
      %v471 = vld [vmem:[#allocation2 + $0x129] sm:$0xff]
      %v472 = vld [vmem:[#allocation2 + $0x139] sm:$0xff]
      %v473 = vld [vmem:[#allocation2 + $0x141] sm:$0xff]
      %v474 = vld [vmem:[#allocation2 + $0x151] sm:$0xff]
      %v475 = vld [vmem:[#allocation2 + $0x159] sm:$0xff]
      %v476 = vld [vmem:[#allocation2 + $0x169] sm:$0xff]
      %v477 = vld [vmem:[#allocation2 + $0x171] sm:$0xff]
      %510 = vrot.lane.b32.xlu0 %v446, 4
      %v511 = vpop.permute.xlu0 %510
      %512 = vrot.lane.b32.xlu0 %v447, 4
      %v513 = vpop.permute.xlu0 %512
      %514 = vrot.lane.b32.xlu0 %v448, 4
      %v515 = vpop.permute.xlu0 %514
      %516 = vrot.lane.b32.xlu0 %v449, 4
      %v517 = vpop.permute.xlu0 %516
      %518 = vrot.lane.b32.xlu0 %v450, 4
      %v519 = vpop.permute.xlu0 %518
      %520 = vrot.lane.b32.xlu0 %v451, 4
      %v521 = vpop.permute.xlu0 %520
      %522 = vrot.lane.b32.xlu0 %v452, 4
      %v523 = vpop.permute.xlu0 %522
      %524 = vrot.lane.b32.xlu0 %v453, 4
      %v525 = vpop.permute.xlu0 %524
      %526 = vrot.lane.b32.xlu0 %v454, 4
      %v527 = vpop.permute.xlu0 %526
      %528 = vrot.lane.b32.xlu0 %v455, 4
      %v529 = vpop.permute.xlu0 %528
      %530 = vrot.lane.b32.xlu0 %v456, 4
      %v531 = vpop.permute.xlu0 %530
      %532 = vrot.lane.b32.xlu0 %v457, 4
      %v533 = vpop.permute.xlu0 %532
      %534 = vrot.lane.b32.xlu0 %v458, 4
      %v535 = vpop.permute.xlu0 %534
      %536 = vrot.lane.b32.xlu0 %v459, 4
      %v537 = vpop.permute.xlu0 %536
      %538 = vrot.lane.b32.xlu0 %v460, 4
      %v539 = vpop.permute.xlu0 %538
      %540 = vrot.lane.b32.xlu0 %v461, 4
      %v541 = vpop.permute.xlu0 %540
      %542 = vrot.lane.b32.xlu0 %v462, 4
      %v543 = vpop.permute.xlu0 %542
      %544 = vrot.lane.b32.xlu0 %v463, 4
      %v545 = vpop.permute.xlu0 %544
      %546 = vrot.lane.b32.xlu0 %v464, 4
      %v547 = vpop.permute.xlu0 %546
      %548 = vrot.lane.b32.xlu0 %v465, 4
      %v549 = vpop.permute.xlu0 %548
      %550 = vrot.lane.b32.xlu0 %v466, 4
      %v551 = vpop.permute.xlu0 %550
      %552 = vrot.lane.b32.xlu0 %v467, 4
      %v553 = vpop.permute.xlu0 %552
      %554 = vrot.lane.b32.xlu0 %v468, 4
      %v555 = vpop.permute.xlu0 %554
      %556 = vrot.lane.b32.xlu0 %v469, 4
      %v557 = vpop.permute.xlu0 %556
      %558 = vrot.lane.b32.xlu0 %v470, 4
      %v559 = vpop.permute.xlu0 %558
      %560 = vrot.lane.b32.xlu0 %v471, 4
      %v561 = vpop.permute.xlu0 %560
      %562 = vrot.lane.b32.xlu0 %v472, 4
      %v563 = vpop.permute.xlu0 %562
      %564 = vrot.lane.b32.xlu0 %v473, 4
      %v565 = vpop.permute.xlu0 %564
      %566 = vrot.lane.b32.xlu0 %v474, 4
      %v567 = vpop.permute.xlu0 %566
      %568 = vrot.lane.b32.xlu0 %v475, 4
      %v569 = vpop.permute.xlu0 %568
      %570 = vrot.lane.b32.xlu0 %v476, 4
      %v571 = vpop.permute.xlu0 %570
      %572 = vrot.lane.b32.xlu0 %v477, 4
      %v573 = vpop.permute.xlu0 %572
      %vm606 = vcmask 64544
      %607 = vst.msk [vmem:[#allocation4] sm:$0xff] %vm606, %v511
      %608 = vst.msk [vmem:[#allocation4 + $0x8] sm:$0xff] %vm606, %v513
      %609 = vst.msk [vmem:[#allocation4 + $0x10] sm:$0xff] %vm606, %v515
      %610 = vst.msk [vmem:[#allocation4 + $0x18] sm:$0xff] %vm606, %v517
      %611 = vst.msk [vmem:[#allocation4 + $0x20] sm:$0xff] %vm606, %v519
      %612 = vst.msk [vmem:[#allocation4 + $0x28] sm:$0xff] %vm606, %v521
      %613 = vst.msk [vmem:[#allocation4 + $0x30] sm:$0xff] %vm606, %v523
      %614 = vst.msk [vmem:[#allocation4 + $0x38] sm:$0xff] %vm606, %v525
      %615 = vst.msk [vmem:[#allocation4 + $0x40] sm:$0xff] %vm606, %v527
      %616 = vst.msk [vmem:[#allocation4 + $0x48] sm:$0xff] %vm606, %v529
      %617 = vst.msk [vmem:[#allocation4 + $0x50] sm:$0xff] %vm606, %v531
      %618 = vst.msk [vmem:[#allocation4 + $0x58] sm:$0xff] %vm606, %v533
      %619 = vst.msk [vmem:[#allocation4 + $0x60] sm:$0xff] %vm606, %v535
      %620 = vst.msk [vmem:[#allocation4 + $0x68] sm:$0xff] %vm606, %v537
      %621 = vst.msk [vmem:[#allocation4 + $0x70] sm:$0xff] %vm606, %v539
      %622 = vst.msk [vmem:[#allocation4 + $0x78] sm:$0xff] %vm606, %v541
      %623 = vst.msk [vmem:[#allocation4 + $0x80] sm:$0xff] %vm606, %v543
      %624 = vst.msk [vmem:[#allocation4 + $0x88] sm:$0xff] %vm606, %v545
      %625 = vst.msk [vmem:[#allocation4 + $0x90] sm:$0xff] %vm606, %v547
      %626 = vst.msk [vmem:[#allocation4 + $0x98] sm:$0xff] %vm606, %v549
      %627 = vst.msk [vmem:[#allocation4 + $0xa0] sm:$0xff] %vm606, %v551
      %628 = vst.msk [vmem:[#allocation4 + $0xa8] sm:$0xff] %vm606, %v553
      %629 = vst.msk [vmem:[#allocation4 + $0xb0] sm:$0xff] %vm606, %v555
      %630 = vst.msk [vmem:[#allocation4 + $0xb8] sm:$0xff] %vm606, %v557
      %631 = vst.msk [vmem:[#allocation4 + $0xc0] sm:$0xff] %vm606, %v559
      %632 = vst.msk [vmem:[#allocation4 + $0xc8] sm:$0xff] %vm606, %v561
      %633 = vst.msk [vmem:[#allocation4 + $0xd0] sm:$0xff] %vm606, %v563
      %634 = vst.msk [vmem:[#allocation4 + $0xd8] sm:$0xff] %vm606, %v565
      %635 = vst.msk [vmem:[#allocation4 + $0xe0] sm:$0xff] %vm606, %v567
      %636 = vst.msk [vmem:[#allocation4 + $0xe8] sm:$0xff] %vm606, %v569
      %637 = vst.msk [vmem:[#allocation4 + $0xf0] sm:$0xff] %vm606, %v571
      %638 = vst.msk [vmem:[#allocation4 + $0xf8] sm:$0xff] %vm606, %v573
      %v639 = vld [vmem:[#allocation2 + $0x2] sm:$0xff]
      %v640 = vld [vmem:[#allocation2 + $0xa] sm:$0xff]
      %v641 = vld [vmem:[#allocation2 + $0x1a] sm:$0xff]
      %v642 = vld [vmem:[#allocation2 + $0x22] sm:$0xff]
      %v643 = vld [vmem:[#allocation2 + $0x32] sm:$0xff]
      %v644 = vld [vmem:[#allocation2 + $0x3a] sm:$0xff]
      %v645 = vld [vmem:[#allocation2 + $0x4a] sm:$0xff]
      %v646 = vld [vmem:[#allocation2 + $0x52] sm:$0xff]
      %v647 = vld [vmem:[#allocation2 + $0x62] sm:$0xff]
      %v648 = vld [vmem:[#allocation2 + $0x6a] sm:$0xff]
      %v649 = vld [vmem:[#allocation2 + $0x7a] sm:$0xff]
      %v650 = vld [vmem:[#allocation2 + $0x82] sm:$0xff]
      %v651 = vld [vmem:[#allocation2 + $0x92] sm:$0xff]
      %v652 = vld [vmem:[#allocation2 + $0x9a] sm:$0xff]
      %v653 = vld [vmem:[#allocation2 + $0xaa] sm:$0xff]
      %v654 = vld [vmem:[#allocation2 + $0xb2] sm:$0xff]
      %v655 = vld [vmem:[#allocation2 + $0xc2] sm:$0xff]
      %v656 = vld [vmem:[#allocation2 + $0xca] sm:$0xff]
      %v657 = vld [vmem:[#allocation2 + $0xda] sm:$0xff]
      %v658 = vld [vmem:[#allocation2 + $0xe2] sm:$0xff]
      %v659 = vld [vmem:[#allocation2 + $0xf2] sm:$0xff]
      %v660 = vld [vmem:[#allocation2 + $0xfa] sm:$0xff]
      %v661 = vld [vmem:[#allocation2 + $0x10a] sm:$0xff]
      %v662 = vld [vmem:[#allocation2 + $0x112] sm:$0xff]
      %v663 = vld [vmem:[#allocation2 + $0x122] sm:$0xff]
      %v664 = vld [vmem:[#allocation2 + $0x12a] sm:$0xff]
      %v665 = vld [vmem:[#allocation2 + $0x13a] sm:$0xff]
      %v666 = vld [vmem:[#allocation2 + $0x142] sm:$0xff]
      %v667 = vld [vmem:[#allocation2 + $0x152] sm:$0xff]
      %v668 = vld [vmem:[#allocation2 + $0x15a] sm:$0xff]
      %v669 = vld [vmem:[#allocation2 + $0x16a] sm:$0xff]
      %v670 = vld [vmem:[#allocation2 + $0x172] sm:$0xff]
      %703 = vrot.lane.b32.xlu0 %v639, 8
      %v704 = vpop.permute.xlu0 %703
      %705 = vrot.lane.b32.xlu0 %v640, 8
      %v706 = vpop.permute.xlu0 %705
      %707 = vrot.lane.b32.xlu0 %v641, 8
      %v708 = vpop.permute.xlu0 %707
      %709 = vrot.lane.b32.xlu0 %v642, 8
      %v710 = vpop.permute.xlu0 %709
      %711 = vrot.lane.b32.xlu0 %v643, 8
      %v712 = vpop.permute.xlu0 %711
      %713 = vrot.lane.b32.xlu0 %v644, 8
      %v714 = vpop.permute.xlu0 %713
      %715 = vrot.lane.b32.xlu0 %v645, 8
      %v716 = vpop.permute.xlu0 %715
      %717 = vrot.lane.b32.xlu0 %v646, 8
      %v718 = vpop.permute.xlu0 %717
      %719 = vrot.lane.b32.xlu0 %v647, 8
      %v720 = vpop.permute.xlu0 %719
      %721 = vrot.lane.b32.xlu0 %v648, 8
      %v722 = vpop.permute.xlu0 %721
      %723 = vrot.lane.b32.xlu0 %v649, 8
      %v724 = vpop.permute.xlu0 %723
      %725 = vrot.lane.b32.xlu0 %v650, 8
      %v726 = vpop.permute.xlu0 %725
      %727 = vrot.lane.b32.xlu0 %v651, 8
      %v728 = vpop.permute.xlu0 %727
      %729 = vrot.lane.b32.xlu0 %v652, 8
      %v730 = vpop.permute.xlu0 %729
      %731 = vrot.lane.b32.xlu0 %v653, 8
      %v732 = vpop.permute.xlu0 %731
      %733 = vrot.lane.b32.xlu0 %v654, 8
      %v734 = vpop.permute.xlu0 %733
      %735 = vrot.lane.b32.xlu0 %v655, 8
      %v736 = vpop.permute.xlu0 %735
      %737 = vrot.lane.b32.xlu0 %v656, 8
      %v738 = vpop.permute.xlu0 %737
      %739 = vrot.lane.b32.xlu0 %v657, 8
      %v740 = vpop.permute.xlu0 %739
      %741 = vrot.lane.b32.xlu0 %v658, 8
      %v742 = vpop.permute.xlu0 %741
      %743 = vrot.lane.b32.xlu0 %v659, 8
      %v744 = vpop.permute.xlu0 %743
      %745 = vrot.lane.b32.xlu0 %v660, 8
      %v746 = vpop.permute.xlu0 %745
      %747 = vrot.lane.b32.xlu0 %v661, 8
      %v748 = vpop.permute.xlu0 %747
      %749 = vrot.lane.b32.xlu0 %v662, 8
      %v750 = vpop.permute.xlu0 %749
      %751 = vrot.lane.b32.xlu0 %v663, 8
      %v752 = vpop.permute.xlu0 %751
      %753 = vrot.lane.b32.xlu0 %v664, 8
      %v754 = vpop.permute.xlu0 %753
      %755 = vrot.lane.b32.xlu0 %v665, 8
      %v756 = vpop.permute.xlu0 %755
      %757 = vrot.lane.b32.xlu0 %v666, 8
      %v758 = vpop.permute.xlu0 %757
      %759 = vrot.lane.b32.xlu0 %v667, 8
      %v760 = vpop.permute.xlu0 %759
      %761 = vrot.lane.b32.xlu0 %v668, 8
      %v762 = vpop.permute.xlu0 %761
      %763 = vrot.lane.b32.xlu0 %v669, 8
      %v764 = vpop.permute.xlu0 %763
      %765 = vrot.lane.b32.xlu0 %v670, 8
      %v766 = vpop.permute.xlu0 %765
      %vm799 = vcmask 97344
      %800 = vst.msk [vmem:[#allocation4] sm:$0xff] %vm799, %v704
      %801 = vst.msk [vmem:[#allocation4 + $0x8] sm:$0xff] %vm799, %v706
      %802 = vst.msk [vmem:[#allocation4 + $0x10] sm:$0xff] %vm799, %v708
      %803 = vst.msk [vmem:[#allocation4 + $0x18] sm:$0xff] %vm799, %v710
      %804 = vst.msk [vmem:[#allocation4 + $0x20] sm:$0xff] %vm799, %v712
      %805 = vst.msk [vmem:[#allocation4 + $0x28] sm:$0xff] %vm799, %v714
      %806 = vst.msk [vmem:[#allocation4 + $0x30] sm:$0xff] %vm799, %v716
      %807 = vst.msk [vmem:[#allocation4 + $0x38] sm:$0xff] %vm799, %v718
      %808 = vst.msk [vmem:[#allocation4 + $0x40] sm:$0xff] %vm799, %v720
      %809 = vst.msk [vmem:[#allocation4 + $0x48] sm:$0xff] %vm799, %v722
      %810 = vst.msk [vmem:[#allocation4 + $0x50] sm:$0xff] %vm799, %v724
      %811 = vst.msk [vmem:[#allocation4 + $0x58] sm:$0xff] %vm799, %v726
      %812 = vst.msk [vmem:[#allocation4 + $0x60] sm:$0xff] %vm799, %v728
      %813 = vst.msk [vmem:[#allocation4 + $0x68] sm:$0xff] %vm799, %v730
      %814 = vst.msk [vmem:[#allocation4 + $0x70] sm:$0xff] %vm799, %v732
      %815 = vst.msk [vmem:[#allocation4 + $0x78] sm:$0xff] %vm799, %v734
      %816 = vst.msk [vmem:[#allocation4 + $0x80] sm:$0xff] %vm799, %v736
      %817 = vst.msk [vmem:[#allocation4 + $0x88] sm:$0xff] %vm799, %v738
      %818 = vst.msk [vmem:[#allocation4 + $0x90] sm:$0xff] %vm799, %v740
      %819 = vst.msk [vmem:[#allocation4 + $0x98] sm:$0xff] %vm799, %v742
      %820 = vst.msk [vmem:[#allocation4 + $0xa0] sm:$0xff] %vm799, %v744
      %821 = vst.msk [vmem:[#allocation4 + $0xa8] sm:$0xff] %vm799, %v746
      %822 = vst.msk [vmem:[#allocation4 + $0xb0] sm:$0xff] %vm799, %v748
      %823 = vst.msk [vmem:[#allocation4 + $0xb8] sm:$0xff] %vm799, %v750
      %824 = vst.msk [vmem:[#allocation4 + $0xc0] sm:$0xff] %vm799, %v752
      %825 = vst.msk [vmem:[#allocation4 + $0xc8] sm:$0xff] %vm799, %v754
      %826 = vst.msk [vmem:[#allocation4 + $0xd0] sm:$0xff] %vm799, %v756
      %827 = vst.msk [vmem:[#allocation4 + $0xd8] sm:$0xff] %vm799, %v758
      %828 = vst.msk [vmem:[#allocation4 + $0xe0] sm:$0xff] %vm799, %v760
      %829 = vst.msk [vmem:[#allocation4 + $0xe8] sm:$0xff] %vm799, %v762
      %830 = vst.msk [vmem:[#allocation4 + $0xf0] sm:$0xff] %vm799, %v764
      %831 = vst.msk [vmem:[#allocation4 + $0xf8] sm:$0xff] %vm799, %v766
      %v832 = vld [vmem:[%s349] sm:$0xff]
      %v833 = vld [vmem:[%s349 + $0x8] sm:$0xff]
      %v834 = vld [vmem:[%s349 + $0x18] sm:$0xff]
      %v835 = vld [vmem:[%s349 + $0x20] sm:$0xff]
      %v836 = vld [vmem:[%s349 + $0x30] sm:$0xff]
      %v837 = vld [vmem:[%s349 + $0x38] sm:$0xff]
      %v838 = vld [vmem:[%s349 + $0x48] sm:$0xff]
      %v839 = vld [vmem:[%s349 + $0x50] sm:$0xff]
      %v840 = vld [vmem:[%s349 + $0x60] sm:$0xff]
      %v841 = vld [vmem:[%s349 + $0x68] sm:$0xff]
      %v842 = vld [vmem:[%s349 + $0x78] sm:$0xff]
      %v843 = vld [vmem:[%s349 + $0x80] sm:$0xff]
      %v844 = vld [vmem:[%s349 + $0x90] sm:$0xff]
      %v845 = vld [vmem:[%s349 + $0x98] sm:$0xff]
      %v846 = vld [vmem:[%s349 + $0xa8] sm:$0xff]
      %v847 = vld [vmem:[%s349 + $0xb0] sm:$0xff]
      %v848 = vld [vmem:[%s349 + $0xc0] sm:$0xff]
      %v849 = vld [vmem:[%s349 + $0xc8] sm:$0xff]
      %v850 = vld [vmem:[%s349 + $0xd8] sm:$0xff]
      %v851 = vld [vmem:[%s349 + $0xe0] sm:$0xff]
      %v852 = vld [vmem:[%s349 + $0xf0] sm:$0xff]
      %v853 = vld [vmem:[%s349 + $0xf8] sm:$0xff]
      %v854 = vld [vmem:[%s349 + $0x108] sm:$0xff]
      %v855 = vld [vmem:[%s349 + $0x110] sm:$0xff]
      %v856 = vld [vmem:[%s349 + $0x120] sm:$0xff]
      %v857 = vld [vmem:[%s349 + $0x128] sm:$0xff]
      %v858 = vld [vmem:[%s349 + $0x138] sm:$0xff]
      %v859 = vld [vmem:[%s349 + $0x140] sm:$0xff]
      %v860 = vld [vmem:[%s349 + $0x150] sm:$0xff]
      %v861 = vld [vmem:[%s349 + $0x158] sm:$0xff]
      %v862 = vld [vmem:[%s349 + $0x168] sm:$0xff]
      %v863 = vld [vmem:[%s349 + $0x170] sm:$0xff]
      %896 = vrot.lane.b32.xlu0 %v832, 12
      %v897 = vpop.permute.xlu0 %896
      %898 = vrot.lane.b32.xlu0 %v833, 12
      %v899 = vpop.permute.xlu0 %898
      %900 = vrot.lane.b32.xlu0 %v834, 12
      %v901 = vpop.permute.xlu0 %900
      %902 = vrot.lane.b32.xlu0 %v835, 12
      %v903 = vpop.permute.xlu0 %902
      %904 = vrot.lane.b32.xlu0 %v836, 12
      %v905 = vpop.permute.xlu0 %904
      %906 = vrot.lane.b32.xlu0 %v837, 12
      %v907 = vpop.permute.xlu0 %906
      %908 = vrot.lane.b32.xlu0 %v838, 12
      %v909 = vpop.permute.xlu0 %908
      %910 = vrot.lane.b32.xlu0 %v839, 12
      %v911 = vpop.permute.xlu0 %910
      %912 = vrot.lane.b32.xlu0 %v840, 12
      %v913 = vpop.permute.xlu0 %912
      %914 = vrot.lane.b32.xlu0 %v841, 12
      %v915 = vpop.permute.xlu0 %914
      %916 = vrot.lane.b32.xlu0 %v842, 12
      %v917 = vpop.permute.xlu0 %916
      %918 = vrot.lane.b32.xlu0 %v843, 12
      %v919 = vpop.permute.xlu0 %918
      %920 = vrot.lane.b32.xlu0 %v844, 12
      %v921 = vpop.permute.xlu0 %920
      %922 = vrot.lane.b32.xlu0 %v845, 12
      %v923 = vpop.permute.xlu0 %922
      %924 = vrot.lane.b32.xlu0 %v846, 12
      %v925 = vpop.permute.xlu0 %924
      %926 = vrot.lane.b32.xlu0 %v847, 12
      %v927 = vpop.permute.xlu0 %926
      %928 = vrot.lane.b32.xlu0 %v848, 12
      %v929 = vpop.permute.xlu0 %928
      %930 = vrot.lane.b32.xlu0 %v849, 12
      %v931 = vpop.permute.xlu0 %930
      %932 = vrot.lane.b32.xlu0 %v850, 12
      %v933 = vpop.permute.xlu0 %932
      %934 = vrot.lane.b32.xlu0 %v851, 12
      %v935 = vpop.permute.xlu0 %934
      %936 = vrot.lane.b32.xlu0 %v852, 12
      %v937 = vpop.permute.xlu0 %936
      %938 = vrot.lane.b32.xlu0 %v853, 12
      %v939 = vpop.permute.xlu0 %938
      %940 = vrot.lane.b32.xlu0 %v854, 12
      %v941 = vpop.permute.xlu0 %940
      %942 = vrot.lane.b32.xlu0 %v855, 12
      %v943 = vpop.permute.xlu0 %942
      %944 = vrot.lane.b32.xlu0 %v856, 12
      %v945 = vpop.permute.xlu0 %944
      %946 = vrot.lane.b32.xlu0 %v857, 12
      %v947 = vpop.permute.xlu0 %946
      %948 = vrot.lane.b32.xlu0 %v858, 12
      %v949 = vpop.permute.xlu0 %948
      %950 = vrot.lane.b32.xlu0 %v859, 12
      %v951 = vpop.permute.xlu0 %950
      %952 = vrot.lane.b32.xlu0 %v860, 12
      %v953 = vpop.permute.xlu0 %952
      %954 = vrot.lane.b32.xlu0 %v861, 12
      %v955 = vpop.permute.xlu0 %954
      %956 = vrot.lane.b32.xlu0 %v862, 12
      %v957 = vpop.permute.xlu0 %956
      %958 = vrot.lane.b32.xlu0 %v863, 12
      %v959 = vpop.permute.xlu0 %958
      %vm992 = vcmask 130144
      %993 = vst.msk [vmem:[#allocation4] sm:$0xff] %vm992, %v897
      %994 = vst.msk [vmem:[#allocation4 + $0x8] sm:$0xff] %vm992, %v899
      %995 = vst.msk [vmem:[#allocation4 + $0x10] sm:$0xff] %vm992, %v901
      %996 = vst.msk [vmem:[#allocation4 + $0x18] sm:$0xff] %vm992, %v903
      %997 = vst.msk [vmem:[#allocation4 + $0x20] sm:$0xff] %vm992, %v905
      %998 = vst.msk [vmem:[#allocation4 + $0x28] sm:$0xff] %vm992, %v907
      %999 = vst.msk [vmem:[#allocation4 + $0x30] sm:$0xff] %vm992, %v909
      %1000 = vst.msk [vmem:[#allocation4 + $0x38] sm:$0xff] %vm992, %v911
      %1001 = vst.msk [vmem:[#allocation4 + $0x40] sm:$0xff] %vm992, %v913
      %1002 = vst.msk [vmem:[#allocation4 + $0x48] sm:$0xff] %vm992, %v915
      %1003 = vst.msk [vmem:[#allocation4 + $0x50] sm:$0xff] %vm992, %v917
      %1004 = vst.msk [vmem:[#allocation4 + $0x58] sm:$0xff] %vm992, %v919
      %1005 = vst.msk [vmem:[#allocation4 + $0x60] sm:$0xff] %vm992, %v921
      %1006 = vst.msk [vmem:[#allocation4 + $0x68] sm:$0xff] %vm992, %v923
      %1007 = vst.msk [vmem:[#allocation4 + $0x70] sm:$0xff] %vm992, %v925
      %1008 = vst.msk [vmem:[#allocation4 + $0x78] sm:$0xff] %vm992, %v927
      %1009 = vst.msk [vmem:[#allocation4 + $0x80] sm:$0xff] %vm992, %v929
      %1010 = vst.msk [vmem:[#allocation4 + $0x88] sm:$0xff] %vm992, %v931
      %1011 = vst.msk [vmem:[#allocation4 + $0x90] sm:$0xff] %vm992, %v933
      %1012 = vst.msk [vmem:[#allocation4 + $0x98] sm:$0xff] %vm992, %v935
      %1013 = vst.msk [vmem:[#allocation4 + $0xa0] sm:$0xff] %vm992, %v937
      %1014 = vst.msk [vmem:[#allocation4 + $0xa8] sm:$0xff] %vm992, %v939
      %1015 = vst.msk [vmem:[#allocation4 + $0xb0] sm:$0xff] %vm992, %v941
      %1016 = vst.msk [vmem:[#allocation4 + $0xb8] sm:$0xff] %vm992, %v943
      %1017 = vst.msk [vmem:[#allocation4 + $0xc0] sm:$0xff] %vm992, %v945
      %1018 = vst.msk [vmem:[#allocation4 + $0xc8] sm:$0xff] %vm992, %v947
      %1019 = vst.msk [vmem:[#allocation4 + $0xd0] sm:$0xff] %vm992, %v949
      %1020 = vst.msk [vmem:[#allocation4 + $0xd8] sm:$0xff] %vm992, %v951
      %1021 = vst.msk [vmem:[#allocation4 + $0xe0] sm:$0xff] %vm992, %v953
      %1022 = vst.msk [vmem:[#allocation4 + $0xe8] sm:$0xff] %vm992, %v955
      %1023 = vst.msk [vmem:[#allocation4 + $0xf0] sm:$0xff] %vm992, %v957
      %1024 = vst.msk [vmem:[#allocation4 + $0xf8] sm:$0xff] %vm992, %v959
      %v1025 = vld [vmem:[%s349 + $0x1] sm:$0xff]
      %v1026 = vld [vmem:[%s349 + $0x9] sm:$0xff]
      %v1027 = vld [vmem:[%s349 + $0x19] sm:$0xff]
      %v1028 = vld [vmem:[%s349 + $0x21] sm:$0xff]
      %v1029 = vld [vmem:[%s349 + $0x31] sm:$0xff]
      %v1030 = vld [vmem:[%s349 + $0x39] sm:$0xff]
      %v1031 = vld [vmem:[%s349 + $0x49] sm:$0xff]
      %v1032 = vld [vmem:[%s349 + $0x51] sm:$0xff]
      %v1033 = vld [vmem:[%s349 + $0x61] sm:$0xff]
      %v1034 = vld [vmem:[%s349 + $0x69] sm:$0xff]
      %v1035 = vld [vmem:[%s349 + $0x79] sm:$0xff]
      %v1036 = vld [vmem:[%s349 + $0x81] sm:$0xff]
      %v1037 = vld [vmem:[%s349 + $0x91] sm:$0xff]
      %v1038 = vld [vmem:[%s349 + $0x99] sm:$0xff]
      %v1039 = vld [vmem:[%s349 + $0xa9] sm:$0xff]
      %v1040 = vld [vmem:[%s349 + $0xb1] sm:$0xff]
      %v1041 = vld [vmem:[%s349 + $0xc1] sm:$0xff]
      %v1042 = vld [vmem:[%s349 + $0xc9] sm:$0xff]
      %v1043 = vld [vmem:[%s349 + $0xd9] sm:$0xff]
      %v1044 = vld [vmem:[%s349 + $0xe1] sm:$0xff]
      %v1045 = vld [vmem:[%s349 + $0xf1] sm:$0xff]
      %v1046 = vld [vmem:[%s349 + $0xf9] sm:$0xff]
      %v1047 = vld [vmem:[%s349 + $0x109] sm:$0xff]
      %v1048 = vld [vmem:[%s349 + $0x111] sm:$0xff]
      %v1049 = vld [vmem:[%s349 + $0x121] sm:$0xff]
      %v1050 = vld [vmem:[%s349 + $0x129] sm:$0xff]
      %v1051 = vld [vmem:[%s349 + $0x139] sm:$0xff]
      %v1052 = vld [vmem:[%s349 + $0x141] sm:$0xff]
      %v1053 = vld [vmem:[%s349 + $0x151] sm:$0xff]
      %v1054 = vld [vmem:[%s349 + $0x159] sm:$0xff]
      %v1055 = vld [vmem:[%s349 + $0x169] sm:$0xff]
      %v1056 = vld [vmem:[%s349 + $0x171] sm:$0xff]
      %1089 = vrot.lane.b32.xlu0 %v1025, 16
      %v1090 = vpop.permute.xlu0 %1089
      %1091 = vrot.lane.b32.xlu0 %v1026, 16
      %v1092 = vpop.permute.xlu0 %1091
      %1093 = vrot.lane.b32.xlu0 %v1027, 16
      %v1094 = vpop.permute.xlu0 %1093
      %1095 = vrot.lane.b32.xlu0 %v1028, 16
      %v1096 = vpop.permute.xlu0 %1095
      %1097 = vrot.lane.b32.xlu0 %v1029, 16
      %v1098 = vpop.permute.xlu0 %1097
      %1099 = vrot.lane.b32.xlu0 %v1030, 16
      %v1100 = vpop.permute.xlu0 %1099
      %1101 = vrot.lane.b32.xlu0 %v1031, 16
      %v1102 = vpop.permute.xlu0 %1101
      %1103 = vrot.lane.b32.xlu0 %v1032, 16
      %v1104 = vpop.permute.xlu0 %1103
      %1105 = vrot.lane.b32.xlu0 %v1033, 16
      %v1106 = vpop.permute.xlu0 %1105
      %1107 = vrot.lane.b32.xlu0 %v1034, 16
      %v1108 = vpop.permute.xlu0 %1107
      %1109 = vrot.lane.b32.xlu0 %v1035, 16
      %v1110 = vpop.permute.xlu0 %1109
      %1111 = vrot.lane.b32.xlu0 %v1036, 16
      %v1112 = vpop.permute.xlu0 %1111
      %1113 = vrot.lane.b32.xlu0 %v1037, 16
      %v1114 = vpop.permute.xlu0 %1113
      %1115 = vrot.lane.b32.xlu0 %v1038, 16
      %v1116 = vpop.permute.xlu0 %1115
      %1117 = vrot.lane.b32.xlu0 %v1039, 16
      %v1118 = vpop.permute.xlu0 %1117
      %1119 = vrot.lane.b32.xlu0 %v1040, 16
      %v1120 = vpop.permute.xlu0 %1119
      %1121 = vrot.lane.b32.xlu0 %v1041, 16
      %v1122 = vpop.permute.xlu0 %1121
      %1123 = vrot.lane.b32.xlu0 %v1042, 16
      %v1124 = vpop.permute.xlu0 %1123
      %1125 = vrot.lane.b32.xlu0 %v1043, 16
      %v1126 = vpop.permute.xlu0 %1125
      %1127 = vrot.lane.b32.xlu0 %v1044, 16
      %v1128 = vpop.permute.xlu0 %1127
      %1129 = vrot.lane.b32.xlu0 %v1045, 16
      %v1130 = vpop.permute.xlu0 %1129
      %1131 = vrot.lane.b32.xlu0 %v1046, 16
      %v1132 = vpop.permute.xlu0 %1131
      %1133 = vrot.lane.b32.xlu0 %v1047, 16
      %v1134 = vpop.permute.xlu0 %1133
      %1135 = vrot.lane.b32.xlu0 %v1048, 16
      %v1136 = vpop.permute.xlu0 %1135
      %1137 = vrot.lane.b32.xlu0 %v1049, 16
      %v1138 = vpop.permute.xlu0 %1137
      %1139 = vrot.lane.b32.xlu0 %v1050, 16
      %v1140 = vpop.permute.xlu0 %1139
      %1141 = vrot.lane.b32.xlu0 %v1051, 16
      %v1142 = vpop.permute.xlu0 %1141
      %1143 = vrot.lane.b32.xlu0 %v1052, 16
      %v1144 = vpop.permute.xlu0 %1143
      %1145 = vrot.lane.b32.xlu0 %v1053, 16
      %v1146 = vpop.permute.xlu0 %1145
      %1147 = vrot.lane.b32.xlu0 %v1054, 16
      %v1148 = vpop.permute.xlu0 %1147
      %1149 = vrot.lane.b32.xlu0 %v1055, 16
      %v1150 = vpop.permute.xlu0 %1149
      %1151 = vrot.lane.b32.xlu0 %v1056, 16
      %v1152 = vpop.permute.xlu0 %1151
      %vm1185 = vcmask 162944
      %1186 = vst.msk [vmem:[#allocation4] sm:$0xff] %vm1185, %v1090
      %1187 = vst.msk [vmem:[#allocation4 + $0x8] sm:$0xff] %vm1185, %v1092
      %1188 = vst.msk [vmem:[#allocation4 + $0x10] sm:$0xff] %vm1185, %v1094
      %1189 = vst.msk [vmem:[#allocation4 + $0x18] sm:$0xff] %vm1185, %v1096
      %1190 = vst.msk [vmem:[#allocation4 + $0x20] sm:$0xff] %vm1185, %v1098
      %1191 = vst.msk [vmem:[#allocation4 + $0x28] sm:$0xff] %vm1185, %v1100
      %1192 = vst.msk [vmem:[#allocation4 + $0x30] sm:$0xff] %vm1185, %v1102
      %1193 = vst.msk [vmem:[#allocation4 + $0x38] sm:$0xff] %vm1185, %v1104
      %1194 = vst.msk [vmem:[#allocation4 + $0x40] sm:$0xff] %vm1185, %v1106
      %1195 = vst.msk [vmem:[#allocation4 + $0x48] sm:$0xff] %vm1185, %v1108
      %1196 = vst.msk [vmem:[#allocation4 + $0x50] sm:$0xff] %vm1185, %v1110
      %1197 = vst.msk [vmem:[#allocation4 + $0x58] sm:$0xff] %vm1185, %v1112
      %1198 = vst.msk [vmem:[#allocation4 + $0x60] sm:$0xff] %vm1185, %v1114
      %1199 = vst.msk [vmem:[#allocation4 + $0x68] sm:$0xff] %vm1185, %v1116
      %1200 = vst.msk [vmem:[#allocation4 + $0x70] sm:$0xff] %vm1185, %v1118
      %1201 = vst.msk [vmem:[#allocation4 + $0x78] sm:$0xff] %vm1185, %v1120
      %1202 = vst.msk [vmem:[#allocation4 + $0x80] sm:$0xff] %vm1185, %v1122
      %1203 = vst.msk [vmem:[#allocation4 + $0x88] sm:$0xff] %vm1185, %v1124
      %1204 = vst.msk [vmem:[#allocation4 + $0x90] sm:$0xff] %vm1185, %v1126
      %1205 = vst.msk [vmem:[#allocation4 + $0x98] sm:$0xff] %vm1185, %v1128
      %1206 = vst.msk [vmem:[#allocation4 + $0xa0] sm:$0xff] %vm1185, %v1130
      %1207 = vst.msk [vmem:[#allocation4 + $0xa8] sm:$0xff] %vm1185, %v1132
      %1208 = vst.msk [vmem:[#allocation4 + $0xb0] sm:$0xff] %vm1185, %v1134
      %1209 = vst.msk [vmem:[#allocation4 + $0xb8] sm:$0xff] %vm1185, %v1136
      %1210 = vst.msk [vmem:[#allocation4 + $0xc0] sm:$0xff] %vm1185, %v1138
      %1211 = vst.msk [vmem:[#allocation4 + $0xc8] sm:$0xff] %vm1185, %v1140
      %1212 = vst.msk [vmem:[#allocation4 + $0xd0] sm:$0xff] %vm1185, %v1142
      %1213 = vst.msk [vmem:[#allocation4 + $0xd8] sm:$0xff] %vm1185, %v1144
      %1214 = vst.msk [vmem:[#allocation4 + $0xe0] sm:$0xff] %vm1185, %v1146
      %1215 = vst.msk [vmem:[#allocation4 + $0xe8] sm:$0xff] %vm1185, %v1148
      %1216 = vst.msk [vmem:[#allocation4 + $0xf0] sm:$0xff] %vm1185, %v1150
      %1217 = vst.msk [vmem:[#allocation4 + $0xf8] sm:$0xff] %vm1185, %v1152
      %v1218 = vld [vmem:[%s349 + $0x2] sm:$0xff]
      %v1219 = vld [vmem:[%s349 + $0xa] sm:$0xff]
      %v1220 = vld [vmem:[%s349 + $0x1a] sm:$0xff]
      %v1221 = vld [vmem:[%s349 + $0x22] sm:$0xff]
      %v1222 = vld [vmem:[%s349 + $0x32] sm:$0xff]
      %v1223 = vld [vmem:[%s349 + $0x3a] sm:$0xff]
      %v1224 = vld [vmem:[%s349 + $0x4a] sm:$0xff]
      %v1225 = vld [vmem:[%s349 + $0x52] sm:$0xff]
      %v1226 = vld [vmem:[%s349 + $0x62] sm:$0xff]
      %v1227 = vld [vmem:[%s349 + $0x6a] sm:$0xff]
      %v1228 = vld [vmem:[%s349 + $0x7a] sm:$0xff]
      %v1229 = vld [vmem:[%s349 + $0x82] sm:$0xff]
      %v1230 = vld [vmem:[%s349 + $0x92] sm:$0xff]
      %v1231 = vld [vmem:[%s349 + $0x9a] sm:$0xff]
      %v1232 = vld [vmem:[%s349 + $0xaa] sm:$0xff]
      %v1233 = vld [vmem:[%s349 + $0xb2] sm:$0xff]
      %v1234 = vld [vmem:[%s349 + $0xc2] sm:$0xff]
      %v1235 = vld [vmem:[%s349 + $0xca] sm:$0xff]
      %v1236 = vld [vmem:[%s349 + $0xda] sm:$0xff]
      %v1237 = vld [vmem:[%s349 + $0xe2] sm:$0xff]
      %v1238 = vld [vmem:[%s349 + $0xf2] sm:$0xff]
      %v1239 = vld [vmem:[%s349 + $0xfa] sm:$0xff]
      %v1240 = vld [vmem:[%s349 + $0x10a] sm:$0xff]
      %v1241 = vld [vmem:[%s349 + $0x112] sm:$0xff]
      %v1242 = vld [vmem:[%s349 + $0x122] sm:$0xff]
      %v1243 = vld [vmem:[%s349 + $0x12a] sm:$0xff]
      %v1244 = vld [vmem:[%s349 + $0x13a] sm:$0xff]
      %v1245 = vld [vmem:[%s349 + $0x142] sm:$0xff]
      %v1246 = vld [vmem:[%s349 + $0x152] sm:$0xff]
      %v1247 = vld [vmem:[%s349 + $0x15a] sm:$0xff]
      %v1248 = vld [vmem:[%s349 + $0x16a] sm:$0xff]
      %v1249 = vld [vmem:[%s349 + $0x172] sm:$0xff]
      %1282 = vrot.lane.b32.xlu0 %v1218, 20
      %v1283 = vpop.permute.xlu0 %1282
      %1284 = vrot.lane.b32.xlu0 %v1219, 20
      %v1285 = vpop.permute.xlu0 %1284
      %1286 = vrot.lane.b32.xlu0 %v1220, 20
      %v1287 = vpop.permute.xlu0 %1286
      %1288 = vrot.lane.b32.xlu0 %v1221, 20
      %v1289 = vpop.permute.xlu0 %1288
      %1290 = vrot.lane.b32.xlu0 %v1222, 20
      %v1291 = vpop.permute.xlu0 %1290
      %1292 = vrot.lane.b32.xlu0 %v1223, 20
      %v1293 = vpop.permute.xlu0 %1292
      %1294 = vrot.lane.b32.xlu0 %v1224, 20
      %v1295 = vpop.permute.xlu0 %1294
      %1296 = vrot.lane.b32.xlu0 %v1225, 20
      %v1297 = vpop.permute.xlu0 %1296
      %1298 = vrot.lane.b32.xlu0 %v1226, 20
      %v1299 = vpop.permute.xlu0 %1298
      %1300 = vrot.lane.b32.xlu0 %v1227, 20
      %v1301 = vpop.permute.xlu0 %1300
      %1302 = vrot.lane.b32.xlu0 %v1228, 20
      %v1303 = vpop.permute.xlu0 %1302
      %1304 = vrot.lane.b32.xlu0 %v1229, 20
      %v1305 = vpop.permute.xlu0 %1304
      %1306 = vrot.lane.b32.xlu0 %v1230, 20
      %v1307 = vpop.permute.xlu0 %1306
      %1308 = vrot.lane.b32.xlu0 %v1231, 20
      %v1309 = vpop.permute.xlu0 %1308
      %1310 = vrot.lane.b32.xlu0 %v1232, 20
      %v1311 = vpop.permute.xlu0 %1310
      %1312 = vrot.lane.b32.xlu0 %v1233, 20
      %v1313 = vpop.permute.xlu0 %1312
      %1314 = vrot.lane.b32.xlu0 %v1234, 20
      %v1315 = vpop.permute.xlu0 %1314
      %1316 = vrot.lane.b32.xlu0 %v1235, 20
      %v1317 = vpop.permute.xlu0 %1316
      %1318 = vrot.lane.b32.xlu0 %v1236, 20
      %v1319 = vpop.permute.xlu0 %1318
      %1320 = vrot.lane.b32.xlu0 %v1237, 20
      %v1321 = vpop.permute.xlu0 %1320
      %1322 = vrot.lane.b32.xlu0 %v1238, 20
      %v1323 = vpop.permute.xlu0 %1322
      %1324 = vrot.lane.b32.xlu0 %v1239, 20
      %v1325 = vpop.permute.xlu0 %1324
      %1326 = vrot.lane.b32.xlu0 %v1240, 20
      %v1327 = vpop.permute.xlu0 %1326
      %1328 = vrot.lane.b32.xlu0 %v1241, 20
      %v1329 = vpop.permute.xlu0 %1328
      %1330 = vrot.lane.b32.xlu0 %v1242, 20
      %v1331 = vpop.permute.xlu0 %1330
      %1332 = vrot.lane.b32.xlu0 %v1243, 20
      %v1333 = vpop.permute.xlu0 %1332
      %1334 = vrot.lane.b32.xlu0 %v1244, 20
      %v1335 = vpop.permute.xlu0 %1334
      %1336 = vrot.lane.b32.xlu0 %v1245, 20
      %v1337 = vpop.permute.xlu0 %1336
      %1338 = vrot.lane.b32.xlu0 %v1246, 20
      %v1339 = vpop.permute.xlu0 %1338
      %1340 = vrot.lane.b32.xlu0 %v1247, 20
      %v1341 = vpop.permute.xlu0 %1340
      %1342 = vrot.lane.b32.xlu0 %v1248, 20
      %v1343 = vpop.permute.xlu0 %1342
      %1344 = vrot.lane.b32.xlu0 %v1249, 20
      %v1345 = vpop.permute.xlu0 %1344
      %vm1378 = vcmask 195744
      %1379 = vst.msk [vmem:[#allocation4] sm:$0xff] %vm1378, %v1283
      %1380 = vst.msk [vmem:[#allocation4 + $0x8] sm:$0xff] %vm1378, %v1285
      %1381 = vst.msk [vmem:[#allocation4 + $0x10] sm:$0xff] %vm1378, %v1287
      %1382 = vst.msk [vmem:[#allocation4 + $0x18] sm:$0xff] %vm1378, %v1289
      %1383 = vst.msk [vmem:[#allocation4 + $0x20] sm:$0xff] %vm1378, %v1291
      %1384 = vst.msk [vmem:[#allocation4 + $0x28] sm:$0xff] %vm1378, %v1293
      %1385 = vst.msk [vmem:[#allocation4 + $0x30] sm:$0xff] %vm1378, %v1295
      %1386 = vst.msk [vmem:[#allocation4 + $0x38] sm:$0xff] %vm1378, %v1297
      %1387 = vst.msk [vmem:[#allocation4 + $0x40] sm:$0xff] %vm1378, %v1299
      %1388 = vst.msk [vmem:[#allocation4 + $0x48] sm:$0xff] %vm1378, %v1301
      %1389 = vst.msk [vmem:[#allocation4 + $0x50] sm:$0xff] %vm1378, %v1303
      %1390 = vst.msk [vmem:[#allocation4 + $0x58] sm:$0xff] %vm1378, %v1305
      %1391 = vst.msk [vmem:[#allocation4 + $0x60] sm:$0xff] %vm1378, %v1307
      %1392 = vst.msk [vmem:[#allocation4 + $0x68] sm:$0xff] %vm1378, %v1309
      %1393 = vst.msk [vmem:[#allocation4 + $0x70] sm:$0xff] %vm1378, %v1311
      %1394 = vst.msk [vmem:[#allocation4 + $0x78] sm:$0xff] %vm1378, %v1313
      %1395 = vst.msk [vmem:[#allocation4 + $0x80] sm:$0xff] %vm1378, %v1315
      %1396 = vst.msk [vmem:[#allocation4 + $0x88] sm:$0xff] %vm1378, %v1317
      %1397 = vst.msk [vmem:[#allocation4 + $0x90] sm:$0xff] %vm1378, %v1319
      %1398 = vst.msk [vmem:[#allocation4 + $0x98] sm:$0xff] %vm1378, %v1321
      %1399 = vst.msk [vmem:[#allocation4 + $0xa0] sm:$0xff] %vm1378, %v1323
      %1400 = vst.msk [vmem:[#allocation4 + $0xa8] sm:$0xff] %vm1378, %v1325
      %1401 = vst.msk [vmem:[#allocation4 + $0xb0] sm:$0xff] %vm1378, %v1327
      %1402 = vst.msk [vmem:[#allocation4 + $0xb8] sm:$0xff] %vm1378, %v1329
      %1403 = vst.msk [vmem:[#allocation4 + $0xc0] sm:$0xff] %vm1378, %v1331
      %1404 = vst.msk [vmem:[#allocation4 + $0xc8] sm:$0xff] %vm1378, %v1333
      %1405 = vst.msk [vmem:[#allocation4 + $0xd0] sm:$0xff] %vm1378, %v1335
      %1406 = vst.msk [vmem:[#allocation4 + $0xd8] sm:$0xff] %vm1378, %v1337
      %1407 = vst.msk [vmem:[#allocation4 + $0xe0] sm:$0xff] %vm1378, %v1339
      %1408 = vst.msk [vmem:[#allocation4 + $0xe8] sm:$0xff] %vm1378, %v1341
      %1409 = vst.msk [vmem:[#allocation4 + $0xf0] sm:$0xff] %vm1378, %v1343
      %1410 = vst.msk [vmem:[#allocation4 + $0xf8] sm:$0xff] %vm1378, %v1345
      %s1411 = scalar_lea.vmem [#allocation2], 48
      %v1412 = vld [vmem:[%s1411] sm:$0xff]
      %v1413 = vld [vmem:[%s1411 + $0x8] sm:$0xff]
      %v1414 = vld [vmem:[%s1411 + $0x18] sm:$0xff]
      %v1415 = vld [vmem:[%s1411 + $0x20] sm:$0xff]
      %v1416 = vld [vmem:[%s1411 + $0x30] sm:$0xff]
      %v1417 = vld [vmem:[%s1411 + $0x38] sm:$0xff]
      %v1418 = vld [vmem:[%s1411 + $0x48] sm:$0xff]
      %v1419 = vld [vmem:[%s1411 + $0x50] sm:$0xff]
      %v1420 = vld [vmem:[%s1411 + $0x60] sm:$0xff]
      %v1421 = vld [vmem:[%s1411 + $0x68] sm:$0xff]
      %v1422 = vld [vmem:[%s1411 + $0x78] sm:$0xff]
      %v1423 = vld [vmem:[%s1411 + $0x80] sm:$0xff]
      %v1424 = vld [vmem:[%s1411 + $0x90] sm:$0xff]
      %v1425 = vld [vmem:[%s1411 + $0x98] sm:$0xff]
      %v1426 = vld [vmem:[%s1411 + $0xa8] sm:$0xff]
      %v1427 = vld [vmem:[%s1411 + $0xb0] sm:$0xff]
      %v1428 = vld [vmem:[%s1411 + $0xc0] sm:$0xff]
      %v1429 = vld [vmem:[%s1411 + $0xc8] sm:$0xff]
      %v1430 = vld [vmem:[%s1411 + $0xd8] sm:$0xff]
      %v1431 = vld [vmem:[%s1411 + $0xe0] sm:$0xff]
      %v1432 = vld [vmem:[%s1411 + $0xf0] sm:$0xff]
      %v1433 = vld [vmem:[%s1411 + $0xf8] sm:$0xff]
      %v1434 = vld [vmem:[%s1411 + $0x108] sm:$0xff]
      %v1435 = vld [vmem:[%s1411 + $0x110] sm:$0xff]
      %v1436 = vld [vmem:[%s1411 + $0x120] sm:$0xff]
      %v1437 = vld [vmem:[%s1411 + $0x128] sm:$0xff]
      %v1438 = vld [vmem:[%s1411 + $0x138] sm:$0xff]
      %v1439 = vld [vmem:[%s1411 + $0x140] sm:$0xff]
      %v1440 = vld [vmem:[%s1411 + $0x150] sm:$0xff]
      %v1441 = vld [vmem:[%s1411 + $0x158] sm:$0xff]
      %v1442 = vld [vmem:[%s1411 + $0x168] sm:$0xff]
      %v1443 = vld [vmem:[%s1411 + $0x170] sm:$0xff]
      %1476 = vrot.lane.b32.xlu0 %v1412, 24
      %v1477 = vpop.permute.xlu0 %1476
      %1478 = vrot.lane.b32.xlu0 %v1413, 24
      %v1479 = vpop.permute.xlu0 %1478
      %1480 = vrot.lane.b32.xlu0 %v1414, 24
      %v1481 = vpop.permute.xlu0 %1480
      %1482 = vrot.lane.b32.xlu0 %v1415, 24
      %v1483 = vpop.permute.xlu0 %1482
      %1484 = vrot.lane.b32.xlu0 %v1416, 24
      %v1485 = vpop.permute.xlu0 %1484
      %1486 = vrot.lane.b32.xlu0 %v1417, 24
      %v1487 = vpop.permute.xlu0 %1486
      %1488 = vrot.lane.b32.xlu0 %v1418, 24
      %v1489 = vpop.permute.xlu0 %1488
      %1490 = vrot.lane.b32.xlu0 %v1419, 24
      %v1491 = vpop.permute.xlu0 %1490
      %1492 = vrot.lane.b32.xlu0 %v1420, 24
      %v1493 = vpop.permute.xlu0 %1492
      %1494 = vrot.lane.b32.xlu0 %v1421, 24
      %v1495 = vpop.permute.xlu0 %1494
      %1496 = vrot.lane.b32.xlu0 %v1422, 24
      %v1497 = vpop.permute.xlu0 %1496
      %1498 = vrot.lane.b32.xlu0 %v1423, 24
      %v1499 = vpop.permute.xlu0 %1498
      %1500 = vrot.lane.b32.xlu0 %v1424, 24
      %v1501 = vpop.permute.xlu0 %1500
      %1502 = vrot.lane.b32.xlu0 %v1425, 24
      %v1503 = vpop.permute.xlu0 %1502
      %1504 = vrot.lane.b32.xlu0 %v1426, 24
      %v1505 = vpop.permute.xlu0 %1504
      %1506 = vrot.lane.b32.xlu0 %v1427, 24
      %v1507 = vpop.permute.xlu0 %1506
      %1508 = vrot.lane.b32.xlu0 %v1428, 24
      %v1509 = vpop.permute.xlu0 %1508
      %1510 = vrot.lane.b32.xlu0 %v1429, 24
      %v1511 = vpop.permute.xlu0 %1510
      %1512 = vrot.lane.b32.xlu0 %v1430, 24
      %v1513 = vpop.permute.xlu0 %1512
      %1514 = vrot.lane.b32.xlu0 %v1431, 24
      %v1515 = vpop.permute.xlu0 %1514
      %1516 = vrot.lane.b32.xlu0 %v1432, 24
      %v1517 = vpop.permute.xlu0 %1516
      %1518 = vrot.lane.b32.xlu0 %v1433, 24
      %v1519 = vpop.permute.xlu0 %1518
      %1520 = vrot.lane.b32.xlu0 %v1434, 24
      %v1521 = vpop.permute.xlu0 %1520
      %1522 = vrot.lane.b32.xlu0 %v1435, 24
      %v1523 = vpop.permute.xlu0 %1522
      %1524 = vrot.lane.b32.xlu0 %v1436, 24
      %v1525 = vpop.permute.xlu0 %1524
      %1526 = vrot.lane.b32.xlu0 %v1437, 24
      %v1527 = vpop.permute.xlu0 %1526
      %1528 = vrot.lane.b32.xlu0 %v1438, 24
      %v1529 = vpop.permute.xlu0 %1528
      %1530 = vrot.lane.b32.xlu0 %v1439, 24
      %v1531 = vpop.permute.xlu0 %1530
      %1532 = vrot.lane.b32.xlu0 %v1440, 24
      %v1533 = vpop.permute.xlu0 %1532
      %1534 = vrot.lane.b32.xlu0 %v1441, 24
      %v1535 = vpop.permute.xlu0 %1534
      %1536 = vrot.lane.b32.xlu0 %v1442, 24
      %v1537 = vpop.permute.xlu0 %1536
      %1538 = vrot.lane.b32.xlu0 %v1443, 24
      %v1539 = vpop.permute.xlu0 %1538
      %vm1572 = vcmask 228544
      %1573 = vst.msk [vmem:[#allocation4] sm:$0xff] %vm1572, %v1477
      %1574 = vst.msk [vmem:[#allocation4 + $0x8] sm:$0xff] %vm1572, %v1479
      %1575 = vst.msk [vmem:[#allocation4 + $0x10] sm:$0xff] %vm1572, %v1481
      %1576 = vst.msk [vmem:[#allocation4 + $0x18] sm:$0xff] %vm1572, %v1483
      %1577 = vst.msk [vmem:[#allocation4 + $0x20] sm:$0xff] %vm1572, %v1485
      %1578 = vst.msk [vmem:[#allocation4 + $0x28] sm:$0xff] %vm1572, %v1487
      %1579 = vst.msk [vmem:[#allocation4 + $0x30] sm:$0xff] %vm1572, %v1489
      %1580 = vst.msk [vmem:[#allocation4 + $0x38] sm:$0xff] %vm1572, %v1491
      %1581 = vst.msk [vmem:[#allocation4 + $0x40] sm:$0xff] %vm1572, %v1493
      %1582 = vst.msk [vmem:[#allocation4 + $0x48] sm:$0xff] %vm1572, %v1495
      %1583 = vst.msk [vmem:[#allocation4 + $0x50] sm:$0xff] %vm1572, %v1497
      %1584 = vst.msk [vmem:[#allocation4 + $0x58] sm:$0xff] %vm1572, %v1499
      %1585 = vst.msk [vmem:[#allocation4 + $0x60] sm:$0xff] %vm1572, %v1501
      %1586 = vst.msk [vmem:[#allocation4 + $0x68] sm:$0xff] %vm1572, %v1503
      %1587 = vst.msk [vmem:[#allocation4 + $0x70] sm:$0xff] %vm1572, %v1505
      %1588 = vst.msk [vmem:[#allocation4 + $0x78] sm:$0xff] %vm1572, %v1507
      %1589 = vst.msk [vmem:[#allocation4 + $0x80] sm:$0xff] %vm1572, %v1509
      %1590 = vst.msk [vmem:[#allocation4 + $0x88] sm:$0xff] %vm1572, %v1511
      %1591 = vst.msk [vmem:[#allocation4 + $0x90] sm:$0xff] %vm1572, %v1513
      %1592 = vst.msk [vmem:[#allocation4 + $0x98] sm:$0xff] %vm1572, %v1515
      %1593 = vst.msk [vmem:[#allocation4 + $0xa0] sm:$0xff] %vm1572, %v1517
      %1594 = vst.msk [vmem:[#allocation4 + $0xa8] sm:$0xff] %vm1572, %v1519
      %1595 = vst.msk [vmem:[#allocation4 + $0xb0] sm:$0xff] %vm1572, %v1521
      %1596 = vst.msk [vmem:[#allocation4 + $0xb8] sm:$0xff] %vm1572, %v1523
      %1597 = vst.msk [vmem:[#allocation4 + $0xc0] sm:$0xff] %vm1572, %v1525
      %1598 = vst.msk [vmem:[#allocation4 + $0xc8] sm:$0xff] %vm1572, %v1527
      %1599 = vst.msk [vmem:[#allocation4 + $0xd0] sm:$0xff] %vm1572, %v1529
      %1600 = vst.msk [vmem:[#allocation4 + $0xd8] sm:$0xff] %vm1572, %v1531
      %1601 = vst.msk [vmem:[#allocation4 + $0xe0] sm:$0xff] %vm1572, %v1533
      %1602 = vst.msk [vmem:[#allocation4 + $0xe8] sm:$0xff] %vm1572, %v1535
      %1603 = vst.msk [vmem:[#allocation4 + $0xf0] sm:$0xff] %vm1572, %v1537
      %1604 = vst.msk [vmem:[#allocation4 + $0xf8] sm:$0xff] %vm1572, %v1539
      %v1605 = vld [vmem:[%s1411 + $0x1] sm:$0xff]
      %v1606 = vld [vmem:[%s1411 + $0x9] sm:$0xff]
      %v1607 = vld [vmem:[%s1411 + $0x19] sm:$0xff]
      %v1608 = vld [vmem:[%s1411 + $0x21] sm:$0xff]
      %v1609 = vld [vmem:[%s1411 + $0x31] sm:$0xff]
      %v1610 = vld [vmem:[%s1411 + $0x39] sm:$0xff]
      %v1611 = vld [vmem:[%s1411 + $0x49] sm:$0xff]
      %v1612 = vld [vmem:[%s1411 + $0x51] sm:$0xff]
      %v1613 = vld [vmem:[%s1411 + $0x61] sm:$0xff]
      %v1614 = vld [vmem:[%s1411 + $0x69] sm:$0xff]
      %v1615 = vld [vmem:[%s1411 + $0x79] sm:$0xff]
      %v1616 = vld [vmem:[%s1411 + $0x81] sm:$0xff]
      %v1617 = vld [vmem:[%s1411 + $0x91] sm:$0xff]
      %v1618 = vld [vmem:[%s1411 + $0x99] sm:$0xff]
      %v1619 = vld [vmem:[%s1411 + $0xa9] sm:$0xff]
      %v1620 = vld [vmem:[%s1411 + $0xb1] sm:$0xff]
      %v1621 = vld [vmem:[%s1411 + $0xc1] sm:$0xff]
      %v1622 = vld [vmem:[%s1411 + $0xc9] sm:$0xff]
      %v1623 = vld [vmem:[%s1411 + $0xd9] sm:$0xff]
      %v1624 = vld [vmem:[%s1411 + $0xe1] sm:$0xff]
      %v1625 = vld [vmem:[%s1411 + $0xf1] sm:$0xff]
      %v1626 = vld [vmem:[%s1411 + $0xf9] sm:$0xff]
      %v1627 = vld [vmem:[%s1411 + $0x109] sm:$0xff]
      %v1628 = vld [vmem:[%s1411 + $0x111] sm:$0xff]
      %v1629 = vld [vmem:[%s1411 + $0x121] sm:$0xff]
      %v1630 = vld [vmem:[%s1411 + $0x129] sm:$0xff]
      %v1631 = vld [vmem:[%s1411 + $0x139] sm:$0xff]
      %v1632 = vld [vmem:[%s1411 + $0x141] sm:$0xff]
      %v1633 = vld [vmem:[%s1411 + $0x151] sm:$0xff]
      %v1634 = vld [vmem:[%s1411 + $0x159] sm:$0xff]
      %v1635 = vld [vmem:[%s1411 + $0x169] sm:$0xff]
      %v1636 = vld [vmem:[%s1411 + $0x171] sm:$0xff]
      %1669 = vrot.lane.b32.xlu0 %v1605, 28
      %v1670 = vpop.permute.xlu0 %1669
      %1671 = vrot.lane.b32.xlu0 %v1606, 28
      %v1672 = vpop.permute.xlu0 %1671
      %1673 = vrot.lane.b32.xlu0 %v1607, 28
      %v1674 = vpop.permute.xlu0 %1673
      %1675 = vrot.lane.b32.xlu0 %v1608, 28
      %v1676 = vpop.permute.xlu0 %1675
      %1677 = vrot.lane.b32.xlu0 %v1609, 28
      %v1678 = vpop.permute.xlu0 %1677
      %1679 = vrot.lane.b32.xlu0 %v1610, 28
      %v1680 = vpop.permute.xlu0 %1679
      %1681 = vrot.lane.b32.xlu0 %v1611, 28
      %v1682 = vpop.permute.xlu0 %1681
      %1683 = vrot.lane.b32.xlu0 %v1612, 28
      %v1684 = vpop.permute.xlu0 %1683
      %1685 = vrot.lane.b32.xlu0 %v1613, 28
      %v1686 = vpop.permute.xlu0 %1685
      %1687 = vrot.lane.b32.xlu0 %v1614, 28
      %v1688 = vpop.permute.xlu0 %1687
      %1689 = vrot.lane.b32.xlu0 %v1615, 28
      %v1690 = vpop.permute.xlu0 %1689
      %1691 = vrot.lane.b32.xlu0 %v1616, 28
      %v1692 = vpop.permute.xlu0 %1691
      %1693 = vrot.lane.b32.xlu0 %v1617, 28
      %v1694 = vpop.permute.xlu0 %1693
      %1695 = vrot.lane.b32.xlu0 %v1618, 28
      %v1696 = vpop.permute.xlu0 %1695
      %1697 = vrot.lane.b32.xlu0 %v1619, 28
      %v1698 = vpop.permute.xlu0 %1697
      %1699 = vrot.lane.b32.xlu0 %v1620, 28
      %v1700 = vpop.permute.xlu0 %1699
      %1701 = vrot.lane.b32.xlu0 %v1621, 28
      %v1702 = vpop.permute.xlu0 %1701
      %1703 = vrot.lane.b32.xlu0 %v1622, 28
      %v1704 = vpop.permute.xlu0 %1703
      %1705 = vrot.lane.b32.xlu0 %v1623, 28
      %v1706 = vpop.permute.xlu0 %1705
      %1707 = vrot.lane.b32.xlu0 %v1624, 28
      %v1708 = vpop.permute.xlu0 %1707
      %1709 = vrot.lane.b32.xlu0 %v1625, 28
      %v1710 = vpop.permute.xlu0 %1709
      %1711 = vrot.lane.b32.xlu0 %v1626, 28
      %v1712 = vpop.permute.xlu0 %1711
      %1713 = vrot.lane.b32.xlu0 %v1627, 28
      %v1714 = vpop.permute.xlu0 %1713
      %1715 = vrot.lane.b32.xlu0 %v1628, 28
      %v1716 = vpop.permute.xlu0 %1715
      %1717 = vrot.lane.b32.xlu0 %v1629, 28
      %v1718 = vpop.permute.xlu0 %1717
      %1719 = vrot.lane.b32.xlu0 %v1630, 28
      %v1720 = vpop.permute.xlu0 %1719
      %1721 = vrot.lane.b32.xlu0 %v1631, 28
      %v1722 = vpop.permute.xlu0 %1721
      %1723 = vrot.lane.b32.xlu0 %v1632, 28
      %v1724 = vpop.permute.xlu0 %1723
      %1725 = vrot.lane.b32.xlu0 %v1633, 28
      %v1726 = vpop.permute.xlu0 %1725
      %1727 = vrot.lane.b32.xlu0 %v1634, 28
      %v1728 = vpop.permute.xlu0 %1727
      %1729 = vrot.lane.b32.xlu0 %v1635, 28
      %v1730 = vpop.permute.xlu0 %1729
      %1731 = vrot.lane.b32.xlu0 %v1636, 28
      %v1732 = vpop.permute.xlu0 %1731
      %vm1765 = vcmask 261344
      %1766 = vst.msk [vmem:[#allocation4] sm:$0xff] %vm1765, %v1670
      %1767 = vst.msk [vmem:[#allocation4 + $0x8] sm:$0xff] %vm1765, %v1672
      %1768 = vst.msk [vmem:[#allocation4 + $0x10] sm:$0xff] %vm1765, %v1674
      %1769 = vst.msk [vmem:[#allocation4 + $0x18] sm:$0xff] %vm1765, %v1676
      %1770 = vst.msk [vmem:[#allocation4 + $0x20] sm:$0xff] %vm1765, %v1678
      %1771 = vst.msk [vmem:[#allocation4 + $0x28] sm:$0xff] %vm1765, %v1680
      %1772 = vst.msk [vmem:[#allocation4 + $0x30] sm:$0xff] %vm1765, %v1682
      %1773 = vst.msk [vmem:[#allocation4 + $0x38] sm:$0xff] %vm1765, %v1684
      %1774 = vst.msk [vmem:[#allocation4 + $0x40] sm:$0xff] %vm1765, %v1686
      %1775 = vst.msk [vmem:[#allocation4 + $0x48] sm:$0xff] %vm1765, %v1688
      %1776 = vst.msk [vmem:[#allocation4 + $0x50] sm:$0xff] %vm1765, %v1690
      %1777 = vst.msk [vmem:[#allocation4 + $0x58] sm:$0xff] %vm1765, %v1692
      %1778 = vst.msk [vmem:[#allocation4 + $0x60] sm:$0xff] %vm1765, %v1694
      %1779 = vst.msk [vmem:[#allocation4 + $0x68] sm:$0xff] %vm1765, %v1696
      %1780 = vst.msk [vmem:[#allocation4 + $0x70] sm:$0xff] %vm1765, %v1698
      %1781 = vst.msk [vmem:[#allocation4 + $0x78] sm:$0xff] %vm1765, %v1700
      %1782 = vst.msk [vmem:[#allocation4 + $0x80] sm:$0xff] %vm1765, %v1702
      %1783 = vst.msk [vmem:[#allocation4 + $0x88] sm:$0xff] %vm1765, %v1704
      %1784 = vst.msk [vmem:[#allocation4 + $0x90] sm:$0xff] %vm1765, %v1706
      %1785 = vst.msk [vmem:[#allocation4 + $0x98] sm:$0xff] %vm1765, %v1708
      %1786 = vst.msk [vmem:[#allocation4 + $0xa0] sm:$0xff] %vm1765, %v1710
      %1787 = vst.msk [vmem:[#allocation4 + $0xa8] sm:$0xff] %vm1765, %v1712
      %1788 = vst.msk [vmem:[#allocation4 + $0xb0] sm:$0xff] %vm1765, %v1714
      %1789 = vst.msk [vmem:[#allocation4 + $0xb8] sm:$0xff] %vm1765, %v1716
      %1790 = vst.msk [vmem:[#allocation4 + $0xc0] sm:$0xff] %vm1765, %v1718
      %1791 = vst.msk [vmem:[#allocation4 + $0xc8] sm:$0xff] %vm1765, %v1720
      %1792 = vst.msk [vmem:[#allocation4 + $0xd0] sm:$0xff] %vm1765, %v1722
      %1793 = vst.msk [vmem:[#allocation4 + $0xd8] sm:$0xff] %vm1765, %v1724
      %1794 = vst.msk [vmem:[#allocation4 + $0xe0] sm:$0xff] %vm1765, %v1726
      %1795 = vst.msk [vmem:[#allocation4 + $0xe8] sm:$0xff] %vm1765, %v1728
      %1796 = vst.msk [vmem:[#allocation4 + $0xf0] sm:$0xff] %vm1765, %v1730
      %1797 = vst.msk [vmem:[#allocation4 + $0xf8] sm:$0xff] %vm1765, %v1732
      %v1798 = vld [vmem:[%s1411 + $0x2] sm:$0xff]
      %v1799 = vld [vmem:[%s1411 + $0xa] sm:$0xff]
      %v1800 = vld [vmem:[%s1411 + $0x1a] sm:$0xff]
      %v1801 = vld [vmem:[%s1411 + $0x22] sm:$0xff]
      %v1802 = vld [vmem:[%s1411 + $0x32] sm:$0xff]
      %v1803 = vld [vmem:[%s1411 + $0x3a] sm:$0xff]
      %v1804 = vld [vmem:[%s1411 + $0x4a] sm:$0xff]
      %v1805 = vld [vmem:[%s1411 + $0x52] sm:$0xff]
      %v1806 = vld [vmem:[%s1411 + $0x62] sm:$0xff]
      %v1807 = vld [vmem:[%s1411 + $0x6a] sm:$0xff]
      %v1808 = vld [vmem:[%s1411 + $0x7a] sm:$0xff]
      %v1809 = vld [vmem:[%s1411 + $0x82] sm:$0xff]
      %v1810 = vld [vmem:[%s1411 + $0x92] sm:$0xff]
      %v1811 = vld [vmem:[%s1411 + $0x9a] sm:$0xff]
      %v1812 = vld [vmem:[%s1411 + $0xaa] sm:$0xff]
      %v1813 = vld [vmem:[%s1411 + $0xb2] sm:$0xff]
      %v1814 = vld [vmem:[%s1411 + $0xc2] sm:$0xff]
      %v1815 = vld [vmem:[%s1411 + $0xca] sm:$0xff]
      %v1816 = vld [vmem:[%s1411 + $0xda] sm:$0xff]
      %v1817 = vld [vmem:[%s1411 + $0xe2] sm:$0xff]
      %v1818 = vld [vmem:[%s1411 + $0xf2] sm:$0xff]
      %v1819 = vld [vmem:[%s1411 + $0xfa] sm:$0xff]
      %v1820 = vld [vmem:[%s1411 + $0x10a] sm:$0xff]
      %v1821 = vld [vmem:[%s1411 + $0x112] sm:$0xff]
      %v1822 = vld [vmem:[%s1411 + $0x122] sm:$0xff]
      %v1823 = vld [vmem:[%s1411 + $0x12a] sm:$0xff]
      %v1824 = vld [vmem:[%s1411 + $0x13a] sm:$0xff]
      %v1825 = vld [vmem:[%s1411 + $0x142] sm:$0xff]
      %v1826 = vld [vmem:[%s1411 + $0x152] sm:$0xff]
      %v1827 = vld [vmem:[%s1411 + $0x15a] sm:$0xff]
      %v1828 = vld [vmem:[%s1411 + $0x16a] sm:$0xff]
      %v1829 = vld [vmem:[%s1411 + $0x172] sm:$0xff]
      %1862 = vrot.lane.b32.xlu0 %v1798, 32
      %v1863 = vpop.permute.xlu0 %1862
      %1864 = vrot.lane.b32.xlu0 %v1799, 32
      %v1865 = vpop.permute.xlu0 %1864
      %1866 = vrot.lane.b32.xlu0 %v1800, 32
      %v1867 = vpop.permute.xlu0 %1866
      %1868 = vrot.lane.b32.xlu0 %v1801, 32
      %v1869 = vpop.permute.xlu0 %1868
      %1870 = vrot.lane.b32.xlu0 %v1802, 32
      %v1871 = vpop.permute.xlu0 %1870
      %1872 = vrot.lane.b32.xlu0 %v1803, 32
      %v1873 = vpop.permute.xlu0 %1872
      %1874 = vrot.lane.b32.xlu0 %v1804, 32
      %v1875 = vpop.permute.xlu0 %1874
      %1876 = vrot.lane.b32.xlu0 %v1805, 32
      %v1877 = vpop.permute.xlu0 %1876
      %1878 = vrot.lane.b32.xlu0 %v1806, 32
      %v1879 = vpop.permute.xlu0 %1878
      %1880 = vrot.lane.b32.xlu0 %v1807, 32
      %v1881 = vpop.permute.xlu0 %1880
      %1882 = vrot.lane.b32.xlu0 %v1808, 32
      %v1883 = vpop.permute.xlu0 %1882
      %1884 = vrot.lane.b32.xlu0 %v1809, 32
      %v1885 = vpop.permute.xlu0 %1884
      %1886 = vrot.lane.b32.xlu0 %v1810, 32
      %v1887 = vpop.permute.xlu0 %1886
      %1888 = vrot.lane.b32.xlu0 %v1811, 32
      %v1889 = vpop.permute.xlu0 %1888
      %1890 = vrot.lane.b32.xlu0 %v1812, 32
      %v1891 = vpop.permute.xlu0 %1890
      %1892 = vrot.lane.b32.xlu0 %v1813, 32
      %v1893 = vpop.permute.xlu0 %1892
      %1894 = vrot.lane.b32.xlu0 %v1814, 32
      %v1895 = vpop.permute.xlu0 %1894
      %1896 = vrot.lane.b32.xlu0 %v1815, 32
      %v1897 = vpop.permute.xlu0 %1896
      %1898 = vrot.lane.b32.xlu0 %v1816, 32
      %v1899 = vpop.permute.xlu0 %1898
      %1900 = vrot.lane.b32.xlu0 %v1817, 32
      %v1901 = vpop.permute.xlu0 %1900
      %1902 = vrot.lane.b32.xlu0 %v1818, 32
      %v1903 = vpop.permute.xlu0 %1902
      %1904 = vrot.lane.b32.xlu0 %v1819, 32
      %v1905 = vpop.permute.xlu0 %1904
      %1906 = vrot.lane.b32.xlu0 %v1820, 32
      %v1907 = vpop.permute.xlu0 %1906
      %1908 = vrot.lane.b32.xlu0 %v1821, 32
      %v1909 = vpop.permute.xlu0 %1908
      %1910 = vrot.lane.b32.xlu0 %v1822, 32
      %v1911 = vpop.permute.xlu0 %1910
      %1912 = vrot.lane.b32.xlu0 %v1823, 32
      %v1913 = vpop.permute.xlu0 %1912
      %1914 = vrot.lane.b32.xlu0 %v1824, 32
      %v1915 = vpop.permute.xlu0 %1914
      %1916 = vrot.lane.b32.xlu0 %v1825, 32
      %v1917 = vpop.permute.xlu0 %1916
      %1918 = vrot.lane.b32.xlu0 %v1826, 32
      %v1919 = vpop.permute.xlu0 %1918
      %1920 = vrot.lane.b32.xlu0 %v1827, 32
      %v1921 = vpop.permute.xlu0 %1920
      %1922 = vrot.lane.b32.xlu0 %v1828, 32
      %v1923 = vpop.permute.xlu0 %1922
      %1924 = vrot.lane.b32.xlu0 %v1829, 32
      %v1925 = vpop.permute.xlu0 %1924
      %vm1958 = vcmask 294144
      %1959 = vst.msk [vmem:[#allocation4] sm:$0xff] %vm1958, %v1863
      %1960 = vst.msk [vmem:[#allocation4 + $0x8] sm:$0xff] %vm1958, %v1865
      %1961 = vst.msk [vmem:[#allocation4 + $0x10] sm:$0xff] %vm1958, %v1867
      %1962 = vst.msk [vmem:[#allocation4 + $0x18] sm:$0xff] %vm1958, %v1869
      %1963 = vst.msk [vmem:[#allocation4 + $0x20] sm:$0xff] %vm1958, %v1871
      %1964 = vst.msk [vmem:[#allocation4 + $0x28] sm:$0xff] %vm1958, %v1873
      %1965 = vst.msk [vmem:[#allocation4 + $0x30] sm:$0xff] %vm1958, %v1875
      %1966 = vst.msk [vmem:[#allocation4 + $0x38] sm:$0xff] %vm1958, %v1877
      %1967 = vst.msk [vmem:[#allocation4 + $0x40] sm:$0xff] %vm1958, %v1879
      %1968 = vst.msk [vmem:[#allocation4 + $0x48] sm:$0xff] %vm1958, %v1881
      %1969 = vst.msk [vmem:[#allocation4 + $0x50] sm:$0xff] %vm1958, %v1883
      %1970 = vst.msk [vmem:[#allocation4 + $0x58] sm:$0xff] %vm1958, %v1885
      %1971 = vst.msk [vmem:[#allocation4 + $0x60] sm:$0xff] %vm1958, %v1887
      %1972 = vst.msk [vmem:[#allocation4 + $0x68] sm:$0xff] %vm1958, %v1889
      %1973 = vst.msk [vmem:[#allocation4 + $0x70] sm:$0xff] %vm1958, %v1891
      %1974 = vst.msk [vmem:[#allocation4 + $0x78] sm:$0xff] %vm1958, %v1893
      %1975 = vst.msk [vmem:[#allocation4 + $0x80] sm:$0xff] %vm1958, %v1895
      %1976 = vst.msk [vmem:[#allocation4 + $0x88] sm:$0xff] %vm1958, %v1897
      %1977 = vst.msk [vmem:[#allocation4 + $0x90] sm:$0xff] %vm1958, %v1899
      %1978 = vst.msk [vmem:[#allocation4 + $0x98] sm:$0xff] %vm1958, %v1901
      %1979 = vst.msk [vmem:[#allocation4 + $0xa0] sm:$0xff] %vm1958, %v1903
      %1980 = vst.msk [vmem:[#allocation4 + $0xa8] sm:$0xff] %vm1958, %v1905
      %1981 = vst.msk [vmem:[#allocation4 + $0xb0] sm:$0xff] %vm1958, %v1907
      %1982 = vst.msk [vmem:[#allocation4 + $0xb8] sm:$0xff] %vm1958, %v1909
      %1983 = vst.msk [vmem:[#allocation4 + $0xc0] sm:$0xff] %vm1958, %v1911
      %1984 = vst.msk [vmem:[#allocation4 + $0xc8] sm:$0xff] %vm1958, %v1913
      %1985 = vst.msk [vmem:[#allocation4 + $0xd0] sm:$0xff] %vm1958, %v1915
      %1986 = vst.msk [vmem:[#allocation4 + $0xd8] sm:$0xff] %vm1958, %v1917
      %1987 = vst.msk [vmem:[#allocation4 + $0xe0] sm:$0xff] %vm1958, %v1919
      %1988 = vst.msk [vmem:[#allocation4 + $0xe8] sm:$0xff] %vm1958, %v1921
      %1989 = vst.msk [vmem:[#allocation4 + $0xf0] sm:$0xff] %vm1958, %v1923
      %1990 = vst.msk [vmem:[#allocation4 + $0xf8] sm:$0xff] %vm1958, %v1925
      %v1991 = vld [vmem:[#allocation4] sm:$0xff]
      %v1992 = vld [vmem:[#allocation4 + $0x8] sm:$0xff]
      %v1993 = vld [vmem:[#allocation4 + $0x10] sm:$0xff]
      %v1994 = vld [vmem:[#allocation4 + $0x18] sm:$0xff]
      %v1995 = vld [vmem:[#allocation4 + $0x20] sm:$0xff]
      %v1996 = vld [vmem:[#allocation4 + $0x28] sm:$0xff]
      %v1997 = vld [vmem:[#allocation4 + $0x30] sm:$0xff]
      %v1998 = vld [vmem:[#allocation4 + $0x38] sm:$0xff]
      %v1999 = vld [vmem:[#allocation4 + $0x40] sm:$0xff]
      %v2000 = vld [vmem:[#allocation4 + $0x48] sm:$0xff]
      %v2001 = vld [vmem:[#allocation4 + $0x50] sm:$0xff]
      %v2002 = vld [vmem:[#allocation4 + $0x58] sm:$0xff]
      %v2003 = vld [vmem:[#allocation4 + $0x60] sm:$0xff]
      %v2004 = vld [vmem:[#allocation4 + $0x68] sm:$0xff]
      %v2005 = vld [vmem:[#allocation4 + $0x70] sm:$0xff]
      %v2006 = vld [vmem:[#allocation4 + $0x78] sm:$0xff]
      %v2007 = vld [vmem:[#allocation4 + $0x80] sm:$0xff]
      %v2008 = vld [vmem:[#allocation4 + $0x88] sm:$0xff]
      %v2009 = vld [vmem:[#allocation4 + $0x90] sm:$0xff]
      %v2010 = vld [vmem:[#allocation4 + $0x98] sm:$0xff]
      %v2011 = vld [vmem:[#allocation4 + $0xa0] sm:$0xff]
      %v2012 = vld [vmem:[#allocation4 + $0xa8] sm:$0xff]
      %v2013 = vld [vmem:[#allocation4 + $0xb0] sm:$0xff]
      %v2014 = vld [vmem:[#allocation4 + $0xb8] sm:$0xff]
      %v2015 = vld [vmem:[#allocation4 + $0xc0] sm:$0xff]
      %v2016 = vld [vmem:[#allocation4 + $0xc8] sm:$0xff]
      %v2017 = vld [vmem:[#allocation4 + $0xd0] sm:$0xff]
      %v2018 = vld [vmem:[#allocation4 + $0xd8] sm:$0xff]
      %v2019 = vld [vmem:[#allocation4 + $0xe0] sm:$0xff]
      %v2020 = vld [vmem:[#allocation4 + $0xe8] sm:$0xff]
      %v2021 = vld [vmem:[#allocation4 + $0xf0] sm:$0xff]
      %v2022 = vld [vmem:[#allocation4 + $0xf8] sm:$0xff]
      %v2023 = vld [vmem:[%s1] sm:$0xff]
      %v2024 = vld [vmem:[%s1 + $0x8] sm:$0xff]
      %v2025 = vld [vmem:[%s1 + $0x10] sm:$0xff]
      %v2026 = vld [vmem:[%s1 + $0x18] sm:$0xff]
      %v2027 = vld [vmem:[%s1 + $0x20] sm:$0xf]
      %v2028 = vld [vmem:[%s2] sm:$0x1]
      %v2030 = vlaneseq
      %v2031 = vshrl.u32 %v2030, 7
      %v2032 = vsub.s32 0, %v2031
      %v2033 = vrot.slane %v2028, %v2032
      %vm2035 = vcmask 293888
      %v2037 = vsel %vm2035, %v1991, 0
      %v2040 = vsel %vm2035, %v1992, 0
      %v2043 = vsel %vm2035, %v1993, 0
      %v2046 = vsel %vm2035, %v1994, 0
      %v2049 = vsel %vm2035, %v1995, 0
      %v2052 = vsel %vm2035, %v1996, 0
      %v2055 = vsel %vm2035, %v1997, 0
      %v2058 = vsel %vm2035, %v1998, 0
      %v2061 = vsel %vm2035, %v1999, 0
      %v2064 = vsel %vm2035, %v2000, 0
      %v2067 = vsel %vm2035, %v2001, 0
      %v2070 = vsel %vm2035, %v2002, 0
      %v2073 = vsel %vm2035, %v2003, 0
      %v2076 = vsel %vm2035, %v2004, 0
      %v2079 = vsel %vm2035, %v2005, 0
      %v2082 = vsel %vm2035, %v2006, 0
      %v2085 = vsel %vm2035, %v2007, 0
      %v2088 = vsel %vm2035, %v2008, 0
      %v2091 = vsel %vm2035, %v2009, 0
      %v2094 = vsel %vm2035, %v2010, 0
      %v2097 = vsel %vm2035, %v2011, 0
      %v2100 = vsel %vm2035, %v2012, 0
      %v2103 = vsel %vm2035, %v2013, 0
      %v2106 = vsel %vm2035, %v2014, 0
      %v2109 = vsel %vm2035, %v2015, 0
      %v2112 = vsel %vm2035, %v2016, 0
      %v2115 = vsel %vm2035, %v2017, 0
      %v2118 = vsel %vm2035, %v2018, 0
      %v2121 = vsel %vm2035, %v2019, 0
      %v2124 = vsel %vm2035, %v2020, 0
      %v2127 = vsel %vm2035, %v2021, 0
      %v2130 = vsel %vm2035, %v2022, 0
      %vm2132 = vcmask 1043456
      %v2134 = vsel %vm2132, %v2027, 0
      %2136 = vmatprep.subr.mxu0 0.0
      %2137 = vmatpush1.msra.mxu0 0.0
      %2138 = vmatprep.subr.mxu0 0.0
      %2139 = vmatpush1.msra.mxu0 0.0
      %2140 = vmatprep.subr.mxu0 0.0
      %2141 = vmatpush1.msra.mxu0 0.0
      %2142 = vmatprep.subr.mxu0 0.0
      %2143 = vmatpush1.msra.mxu0 0.0
      %2144 = vmatprep.subr.mxu0 0.0
      %2145 = vmatpush1.msra.mxu0 0.0
      %2146 = vmatprep.subr.mxu0 0.0
      %2147 = vmatpush1.msra.mxu0 0.0
      %2148 = vmatprep.subr.mxu0 0.0
      %2149 = vmatpush1.msra.mxu0 0.0
      %2150 = vmatprep.subr.mxu0 0.0
      %2151 = vmatpush1.msra.mxu0 0.0
      %2152 = vmatprep.subr.mxu0 0.0
      %2153 = vmatpush1.msra.mxu0 0.0
      %2154 = vmatprep.subr.mxu0 0.0
      %2155 = vmatpush1.msra.mxu0 0.0
      %2156 = vmatprep.subr.mxu0 0.0
      %2157 = vmatpush1.msra.mxu0 0.0
      %2158 = vmatprep.subr.mxu0 0.0
      %2159 = vmatpush1.msra.mxu0 %v2134
      %2160 = vmatprep.subr.mxu0 0.0
      %2161 = vmatpush1.msra.mxu0 %v2026
      %2162 = vmatprep.subr.mxu0 0.0
      %2163 = vmatpush1.msra.mxu0 %v2025
      %2164 = vmatprep.subr.mxu0 0.0
      %2165 = vmatpush1.msra.mxu0 %v2024
      %2166 = vmatprep.subr.mxu0 0.0
      %2167 = vmatpush1.msra.mxu0 %v2023
      %2168 = vmatprep.subr.mxu0 0.0
      %2169 = vmatpush2.msra.mxu0 0.0
      %2170 = vmatprep.subr.mxu0 0.0
      %2171 = vmatpush2.msra.mxu0 0.0
      %2172 = vmatprep.subr.mxu0 0.0
      %2173 = vmatpush2.msra.mxu0 0.0
      %2174 = vmatprep.subr.mxu0 0.0
      %2175 = vmatpush2.msra.mxu0 0.0
      %2176 = vmatprep.subr.mxu0 0.0
      %2177 = vmatpush2.msra.mxu0 0.0
      %2178 = vmatprep.subr.mxu0 0.0
      %2179 = vmatpush2.msra.mxu0 0.0
      %2180 = vmatprep.subr.mxu0 0.0
      %2181 = vmatpush2.msra.mxu0 0.0
      %2182 = vmatprep.subr.mxu0 0.0
      %2183 = vmatpush2.msra.mxu0 0.0
      %2184 = vmatprep.subr.mxu0 0.0
      %2185 = vmatpush2.msra.mxu0 0.0
      %2186 = vmatprep.subr.mxu0 0.0
      %2187 = vmatpush2.msra.mxu0 0.0
      %2188 = vmatprep.subr.mxu0 0.0
      %2189 = vmatpush2.msra.mxu0 0.0
      %2190 = vmatprep.subr.mxu0 0.0
      %2191 = vmatpush2.msra.mxu0 0.0
      %2192 = vmatprep.subr.mxu0 0.0
      %2193 = vmatpush2.msra.mxu0 0.0
      %2194 = vmatprep.subr.mxu0 0.0
      %2195 = vmatpush2.msra.mxu0 0.0
      %2196 = vmatprep.subr.mxu0 0.0
      %2197 = vmatpush2.msra.mxu0 0.0
      %2198 = vmatprep.subr.mxu0 0.0
      %2199 = vmatpush2.msra.mxu0 0.0
      %2200 = vmatprep.mubr.f32.mxu0 0.0
      %2201 = vmatmul.mubr.f32.gmra.mxu0 %v2037
      %v2202 = vpop.f32.mrf.mxu0
      %v2203 = vadd.f32 %v2033, %v2202
      %v2204 = vpop.f32.mrf.mxu0
      %2205 = vmatprep.mubr.f32.mxu0 0.0
      %2206 = vmatmul.mubr.f32.gmra.mxu0 %v2040
      %v2207 = vpop.f32.mrf.mxu0
      %v2208 = vadd.f32 %v2033, %v2207
      %v2209 = vpop.f32.mrf.mxu0
      %2210 = vmatprep.mubr.f32.mxu0 0.0
      %2211 = vmatmul.mubr.f32.gmra.mxu0 %v2043
      %v2212 = vpop.f32.mrf.mxu0
      %v2213 = vadd.f32 %v2033, %v2212
      %v2214 = vpop.f32.mrf.mxu0
      %2215 = vmatprep.mubr.f32.mxu0 0.0
      %2216 = vmatmul.mubr.f32.gmra.mxu0 %v2046
      %v2217 = vpop.f32.mrf.mxu0
      %v2218 = vadd.f32 %v2033, %v2217
      %v2219 = vpop.f32.mrf.mxu0
      %2220 = vmatprep.mubr.f32.mxu0 0.0
      %2221 = vmatmul.mubr.f32.gmra.mxu0 %v2049
      %v2222 = vpop.f32.mrf.mxu0
      %v2223 = vadd.f32 %v2033, %v2222
      %v2224 = vpop.f32.mrf.mxu0
      %2225 = vmatprep.mubr.f32.mxu0 0.0
      %2226 = vmatmul.mubr.f32.gmra.mxu0 %v2052
      %v2227 = vpop.f32.mrf.mxu0
      %v2228 = vadd.f32 %v2033, %v2227
      %v2229 = vpop.f32.mrf.mxu0
      %2230 = vmatprep.mubr.f32.mxu0 0.0
      %2231 = vmatmul.mubr.f32.gmra.mxu0 %v2055
      %v2232 = vpop.f32.mrf.mxu0
      %v2233 = vadd.f32 %v2033, %v2232
      %v2234 = vpop.f32.mrf.mxu0
      %2235 = vmatprep.mubr.f32.mxu0 0.0
      %2236 = vmatmul.mubr.f32.gmra.mxu0 %v2058
      %v2237 = vpop.f32.mrf.mxu0
      %v2238 = vadd.f32 %v2033, %v2237
      %v2239 = vpop.f32.mrf.mxu0
      %2240 = vmatprep.mubr.f32.mxu0 0.0
      %2241 = vmatmul.mubr.f32.gmra.mxu0 %v2061
      %v2242 = vpop.f32.mrf.mxu0
      %v2243 = vadd.f32 %v2033, %v2242
      %v2244 = vpop.f32.mrf.mxu0
      %2245 = vmatprep.mubr.f32.mxu0 0.0
      %2246 = vmatmul.mubr.f32.gmra.mxu0 %v2064
      %v2247 = vpop.f32.mrf.mxu0
      %v2248 = vadd.f32 %v2033, %v2247
      %v2249 = vpop.f32.mrf.mxu0
      %2250 = vmatprep.mubr.f32.mxu0 0.0
      %2251 = vmatmul.mubr.f32.gmra.mxu0 %v2067
      %v2252 = vpop.f32.mrf.mxu0
      %v2253 = vadd.f32 %v2033, %v2252
      %v2254 = vpop.f32.mrf.mxu0
      %2255 = vmatprep.mubr.f32.mxu0 0.0
      %2256 = vmatmul.mubr.f32.gmra.mxu0 %v2070
      %v2257 = vpop.f32.mrf.mxu0
      %v2258 = vadd.f32 %v2033, %v2257
      %v2259 = vpop.f32.mrf.mxu0
      %2260 = vmatprep.mubr.f32.mxu0 0.0
      %2261 = vmatmul.mubr.f32.gmra.mxu0 %v2073
      %v2262 = vpop.f32.mrf.mxu0
      %v2263 = vadd.f32 %v2033, %v2262
      %v2264 = vpop.f32.mrf.mxu0
      %2265 = vmatprep.mubr.f32.mxu0 0.0
      %2266 = vmatmul.mubr.f32.gmra.mxu0 %v2076
      %v2267 = vpop.f32.mrf.mxu0
      %v2268 = vadd.f32 %v2033, %v2267
      %v2269 = vpop.f32.mrf.mxu0
      %2270 = vmatprep.mubr.f32.mxu0 0.0
      %2271 = vmatmul.mubr.f32.gmra.mxu0 %v2079
      %v2272 = vpop.f32.mrf.mxu0
      %v2273 = vadd.f32 %v2033, %v2272
      %v2274 = vpop.f32.mrf.mxu0
      %2275 = vmatprep.mubr.f32.mxu0 0.0
      %2276 = vmatmul.mubr.f32.gmra.mxu0 %v2082
      %v2277 = vpop.f32.mrf.mxu0
      %v2278 = vadd.f32 %v2033, %v2277
      %v2279 = vpop.f32.mrf.mxu0
      %2280 = vmatprep.mubr.f32.mxu0 0.0
      %2281 = vmatmul.mubr.f32.gmra.mxu0 %v2085
      %v2282 = vpop.f32.mrf.mxu0
      %v2283 = vadd.f32 %v2033, %v2282
      %v2284 = vpop.f32.mrf.mxu0
      %2285 = vmatprep.mubr.f32.mxu0 0.0
      %2286 = vmatmul.mubr.f32.gmra.mxu0 %v2088
      %v2287 = vpop.f32.mrf.mxu0
      %v2288 = vadd.f32 %v2033, %v2287
      %v2289 = vpop.f32.mrf.mxu0
      %2290 = vmatprep.mubr.f32.mxu0 0.0
      %2291 = vmatmul.mubr.f32.gmra.mxu0 %v2091
      %v2292 = vpop.f32.mrf.mxu0
      %v2293 = vadd.f32 %v2033, %v2292
      %v2294 = vpop.f32.mrf.mxu0
      %2295 = vmatprep.mubr.f32.mxu0 0.0
      %2296 = vmatmul.mubr.f32.gmra.mxu0 %v2094
      %v2297 = vpop.f32.mrf.mxu0
      %v2298 = vadd.f32 %v2033, %v2297
      %v2299 = vpop.f32.mrf.mxu0
      %2300 = vmatprep.mubr.f32.mxu0 0.0
      %2301 = vmatmul.mubr.f32.gmra.mxu0 %v2097
      %v2302 = vpop.f32.mrf.mxu0
      %v2303 = vadd.f32 %v2033, %v2302
      %v2304 = vpop.f32.mrf.mxu0
      %2305 = vmatprep.mubr.f32.mxu0 0.0
      %2306 = vmatmul.mubr.f32.gmra.mxu0 %v2100
      %v2307 = vpop.f32.mrf.mxu0
      %v2308 = vadd.f32 %v2033, %v2307
      %v2309 = vpop.f32.mrf.mxu0
      %2310 = vmatprep.mubr.f32.mxu0 0.0
      %2311 = vmatmul.mubr.f32.gmra.mxu0 %v2103
      %v2312 = vpop.f32.mrf.mxu0
      %v2313 = vadd.f32 %v2033, %v2312
      %v2314 = vpop.f32.mrf.mxu0
      %2315 = vmatprep.mubr.f32.mxu0 0.0
      %2316 = vmatmul.mubr.f32.gmra.mxu0 %v2106
      %v2317 = vpop.f32.mrf.mxu0
      %v2318 = vadd.f32 %v2033, %v2317
      %v2319 = vpop.f32.mrf.mxu0
      %2320 = vmatprep.mubr.f32.mxu0 0.0
      %2321 = vmatmul.mubr.f32.gmra.mxu0 %v2109
      %v2322 = vpop.f32.mrf.mxu0
      %v2323 = vadd.f32 %v2033, %v2322
      %v2324 = vpop.f32.mrf.mxu0
      %2325 = vmatprep.mubr.f32.mxu0 0.0
      %2326 = vmatmul.mubr.f32.gmra.mxu0 %v2112
      %v2327 = vpop.f32.mrf.mxu0
      %v2328 = vadd.f32 %v2033, %v2327
      %v2329 = vpop.f32.mrf.mxu0
      %2330 = vmatprep.mubr.f32.mxu0 0.0
      %2331 = vmatmul.mubr.f32.gmra.mxu0 %v2115
      %v2332 = vpop.f32.mrf.mxu0
      %v2333 = vadd.f32 %v2033, %v2332
      %v2334 = vpop.f32.mrf.mxu0
      %2335 = vmatprep.mubr.f32.mxu0 0.0
      %2336 = vmatmul.mubr.f32.gmra.mxu0 %v2118
      %v2337 = vpop.f32.mrf.mxu0
      %v2338 = vadd.f32 %v2033, %v2337
      %v2339 = vpop.f32.mrf.mxu0
      %2340 = vmatprep.mubr.f32.mxu0 0.0
      %2341 = vmatmul.mubr.f32.gmra.mxu0 %v2121
      %v2342 = vpop.f32.mrf.mxu0
      %v2343 = vadd.f32 %v2033, %v2342
      %v2344 = vpop.f32.mrf.mxu0
      %2345 = vmatprep.mubr.f32.mxu0 0.0
      %2346 = vmatmul.mubr.f32.gmra.mxu0 %v2124
      %v2347 = vpop.f32.mrf.mxu0
      %v2348 = vadd.f32 %v2033, %v2347
      %v2349 = vpop.f32.mrf.mxu0
      %2350 = vmatprep.mubr.f32.mxu0 0.0
      %2351 = vmatmul.mubr.f32.gmra.mxu0 %v2127
      %v2352 = vpop.f32.mrf.mxu0
      %v2353 = vadd.f32 %v2033, %v2352
      %v2354 = vpop.f32.mrf.mxu0
      %2355 = vmatprep.mubr.f32.mxu0 0.0
      %2356 = vmatmul.mubr.f32.gmra.mxu0 %v2130
      %v2357 = vpop.f32.mrf.mxu0
      %v2358 = vadd.f32 %v2033, %v2357
      %v2359 = vpop.f32.mrf.mxu0
      %2360 = vdwg.mxu0
      %v2361 = vmax.f32 %v2203, 0.0
      %v2362 = vmax.f32 %v2208, 0.0
      %v2363 = vmax.f32 %v2213, 0.0
      %v2364 = vmax.f32 %v2218, 0.0
      %v2365 = vmax.f32 %v2223, 0.0
      %v2366 = vmax.f32 %v2228, 0.0
      %v2367 = vmax.f32 %v2233, 0.0
      %v2368 = vmax.f32 %v2238, 0.0
      %v2369 = vmax.f32 %v2243, 0.0
      %v2370 = vmax.f32 %v2248, 0.0
      %v2371 = vmax.f32 %v2253, 0.0
      %v2372 = vmax.f32 %v2258, 0.0
      %v2373 = vmax.f32 %v2263, 0.0
      %v2374 = vmax.f32 %v2268, 0.0
      %v2375 = vmax.f32 %v2273, 0.0
      %v2376 = vmax.f32 %v2278, 0.0
      %v2377 = vmax.f32 %v2283, 0.0
      %v2378 = vmax.f32 %v2288, 0.0
      %v2379 = vmax.f32 %v2293, 0.0
      %v2380 = vmax.f32 %v2298, 0.0
      %v2381 = vmax.f32 %v2303, 0.0
      %v2382 = vmax.f32 %v2308, 0.0
      %v2383 = vmax.f32 %v2313, 0.0
      %v2384 = vmax.f32 %v2318, 0.0
      %v2385 = vmax.f32 %v2323, 0.0
      %v2386 = vmax.f32 %v2328, 0.0
      %v2387 = vmax.f32 %v2333, 0.0
      %v2388 = vmax.f32 %v2338, 0.0
      %v2389 = vmax.f32 %v2343, 0.0
      %v2390 = vmax.f32 %v2348, 0.0
      %v2391 = vmax.f32 %v2353, 0.0
      %v2392 = vmax.f32 %v2358, 0.0
      %s2393 = scalar_lea.vmem [#allocation3], 24
      %2394 = vst.msk [vmem:[%s2393 + $0x1] sm:$0xff] %vm271, %v2361
      %2395 = vst.msk [vmem:[%s2393 + $0x9] sm:$0xff] %vm271, %v2362
      %2396 = vst.msk [vmem:[%s2393 + $0x19] sm:$0xff] %vm271, %v2363
      %2397 = vst.msk [vmem:[%s2393 + $0x21] sm:$0xff] %vm271, %v2364
      %2398 = vst.msk [vmem:[%s2393 + $0x31] sm:$0xff] %vm271, %v2365
      %2399 = vst.msk [vmem:[%s2393 + $0x39] sm:$0xff] %vm271, %v2366
      %2400 = vst.msk [vmem:[%s2393 + $0x49] sm:$0xff] %vm271, %v2367
      %2401 = vst.msk [vmem:[%s2393 + $0x51] sm:$0xff] %vm271, %v2368
      %2402 = vst.msk [vmem:[%s2393 + $0x61] sm:$0xff] %vm271, %v2369
      %2403 = vst.msk [vmem:[%s2393 + $0x69] sm:$0xff] %vm271, %v2370
      %2404 = vst.msk [vmem:[%s2393 + $0x79] sm:$0xff] %vm271, %v2371
      %2405 = vst.msk [vmem:[%s2393 + $0x81] sm:$0xff] %vm271, %v2372
      %2406 = vst.msk [vmem:[%s2393 + $0x91] sm:$0xff] %vm271, %v2373
      %2407 = vst.msk [vmem:[%s2393 + $0x99] sm:$0xff] %vm271, %v2374
      %2408 = vst.msk [vmem:[%s2393 + $0xa9] sm:$0xff] %vm271, %v2375
      %2409 = vst.msk [vmem:[%s2393 + $0xb1] sm:$0xff] %vm271, %v2376
      %2410 = vst.msk [vmem:[%s2393 + $0xc1] sm:$0xff] %vm271, %v2377
      %2411 = vst.msk [vmem:[%s2393 + $0xc9] sm:$0xff] %vm271, %v2378
      %2412 = vst.msk [vmem:[%s2393 + $0xd9] sm:$0xff] %vm271, %v2379
      %2413 = vst.msk [vmem:[%s2393 + $0xe1] sm:$0xff] %vm271, %v2380
      %2414 = vst.msk [vmem:[%s2393 + $0xf1] sm:$0xff] %vm271, %v2381
      %2415 = vst.msk [vmem:[%s2393 + $0xf9] sm:$0xff] %vm271, %v2382
      %2416 = vst.msk [vmem:[%s2393 + $0x109] sm:$0xff] %vm271, %v2383
      %2417 = vst.msk [vmem:[%s2393 + $0x111] sm:$0xff] %vm271, %v2384
      %2418 = vst.msk [vmem:[%s2393 + $0x121] sm:$0xff] %vm271, %v2385
      %2419 = vst.msk [vmem:[%s2393 + $0x129] sm:$0xff] %vm271, %v2386
      %2420 = vst.msk [vmem:[%s2393 + $0x139] sm:$0xff] %vm271, %v2387
      %2421 = vst.msk [vmem:[%s2393 + $0x141] sm:$0xff] %vm271, %v2388
      %2422 = vst.msk [vmem:[%s2393 + $0x151] sm:$0xff] %vm271, %v2389
      %2423 = vst.msk [vmem:[%s2393 + $0x159] sm:$0xff] %vm271, %v2390
      %2424 = vst.msk [vmem:[%s2393 + $0x169] sm:$0xff] %vm271, %v2391
      %2425 = vst.msk [vmem:[%s2393 + $0x171] sm:$0xff] %vm271, %v2392
      %v2426 = vld [vmem:[#allocation3] sm:$0xff]
      %v2427 = vld [vmem:[#allocation3 + $0x8] sm:$0xff]
      %v2428 = vld [vmem:[#allocation3 + $0x18] sm:$0xff]
      %v2429 = vld [vmem:[#allocation3 + $0x20] sm:$0xff]
      %v2430 = vld [vmem:[#allocation3 + $0x30] sm:$0xff]
      %v2431 = vld [vmem:[#allocation3 + $0x38] sm:$0xff]
      %v2432 = vld [vmem:[#allocation3 + $0x48] sm:$0xff]
      %v2433 = vld [vmem:[#allocation3 + $0x50] sm:$0xff]
      %v2434 = vld [vmem:[#allocation3 + $0x60] sm:$0xff]
      %v2435 = vld [vmem:[#allocation3 + $0x68] sm:$0xff]
      %v2436 = vld [vmem:[#allocation3 + $0x78] sm:$0xff]
      %v2437 = vld [vmem:[#allocation3 + $0x80] sm:$0xff]
      %v2438 = vld [vmem:[#allocation3 + $0x90] sm:$0xff]
      %v2439 = vld [vmem:[#allocation3 + $0x98] sm:$0xff]
      %v2440 = vld [vmem:[#allocation3 + $0xa8] sm:$0xff]
      %v2441 = vld [vmem:[#allocation3 + $0xb0] sm:$0xff]
      %v2442 = vld [vmem:[#allocation3 + $0xc0] sm:$0xff]
      %v2443 = vld [vmem:[#allocation3 + $0xc8] sm:$0xff]
      %v2444 = vld [vmem:[#allocation3 + $0xd8] sm:$0xff]
      %v2445 = vld [vmem:[#allocation3 + $0xe0] sm:$0xff]
      %v2446 = vld [vmem:[#allocation3 + $0xf0] sm:$0xff]
      %v2447 = vld [vmem:[#allocation3 + $0xf8] sm:$0xff]
      %v2448 = vld [vmem:[#allocation3 + $0x108] sm:$0xff]
      %v2449 = vld [vmem:[#allocation3 + $0x110] sm:$0xff]
      %v2450 = vld [vmem:[#allocation3 + $0x120] sm:$0xff]
      %v2451 = vld [vmem:[#allocation3 + $0x128] sm:$0xff]
      %v2452 = vld [vmem:[#allocation3 + $0x138] sm:$0xff]
      %v2453 = vld [vmem:[#allocation3 + $0x140] sm:$0xff]
      %v2454 = vld [vmem:[#allocation3 + $0x150] sm:$0xff]
      %v2455 = vld [vmem:[#allocation3 + $0x158] sm:$0xff]
      %v2456 = vld [vmem:[#allocation3 + $0x168] sm:$0xff]
      %v2457 = vld [vmem:[#allocation3 + $0x170] sm:$0xff]
      %2458 = vst.msk [vmem:[#allocation5] sm:$0xff] %vm271, %v2426
      %2459 = vst.msk [vmem:[#allocation5 + $0x8] sm:$0xff] %vm271, %v2427
      %2460 = vst.msk [vmem:[#allocation5 + $0x10] sm:$0xff] %vm271, %v2428
      %2461 = vst.msk [vmem:[#allocation5 + $0x18] sm:$0xff] %vm271, %v2429
      %2462 = vst.msk [vmem:[#allocation5 + $0x20] sm:$0xff] %vm271, %v2430
      %2463 = vst.msk [vmem:[#allocation5 + $0x28] sm:$0xff] %vm271, %v2431
      %2464 = vst.msk [vmem:[#allocation5 + $0x30] sm:$0xff] %vm271, %v2432
      %2465 = vst.msk [vmem:[#allocation5 + $0x38] sm:$0xff] %vm271, %v2433
      %2466 = vst.msk [vmem:[#allocation5 + $0x40] sm:$0xff] %vm271, %v2434
      %2467 = vst.msk [vmem:[#allocation5 + $0x48] sm:$0xff] %vm271, %v2435
      %2468 = vst.msk [vmem:[#allocation5 + $0x50] sm:$0xff] %vm271, %v2436
      %2469 = vst.msk [vmem:[#allocation5 + $0x58] sm:$0xff] %vm271, %v2437
      %2470 = vst.msk [vmem:[#allocation5 + $0x60] sm:$0xff] %vm271, %v2438
      %2471 = vst.msk [vmem:[#allocation5 + $0x68] sm:$0xff] %vm271, %v2439
      %2472 = vst.msk [vmem:[#allocation5 + $0x70] sm:$0xff] %vm271, %v2440
      %2473 = vst.msk [vmem:[#allocation5 + $0x78] sm:$0xff] %vm271, %v2441
      %2474 = vst.msk [vmem:[#allocation5 + $0x80] sm:$0xff] %vm271, %v2442
      %2475 = vst.msk [vmem:[#allocation5 + $0x88] sm:$0xff] %vm271, %v2443
      %2476 = vst.msk [vmem:[#allocation5 + $0x90] sm:$0xff] %vm271, %v2444
      %2477 = vst.msk [vmem:[#allocation5 + $0x98] sm:$0xff] %vm271, %v2445
      %2478 = vst.msk [vmem:[#allocation5 + $0xa0] sm:$0xff] %vm271, %v2446
      %2479 = vst.msk [vmem:[#allocation5 + $0xa8] sm:$0xff] %vm271, %v2447
      %2480 = vst.msk [vmem:[#allocation5 + $0xb0] sm:$0xff] %vm271, %v2448
      %2481 = vst.msk [vmem:[#allocation5 + $0xb8] sm:$0xff] %vm271, %v2449
      %2482 = vst.msk [vmem:[#allocation5 + $0xc0] sm:$0xff] %vm271, %v2450
      %2483 = vst.msk [vmem:[#allocation5 + $0xc8] sm:$0xff] %vm271, %v2451
      %2484 = vst.msk [vmem:[#allocation5 + $0xd0] sm:$0xff] %vm271, %v2452
      %2485 = vst.msk [vmem:[#allocation5 + $0xd8] sm:$0xff] %vm271, %v2453
      %2486 = vst.msk [vmem:[#allocation5 + $0xe0] sm:$0xff] %vm271, %v2454
      %2487 = vst.msk [vmem:[#allocation5 + $0xe8] sm:$0xff] %vm271, %v2455
      %2488 = vst.msk [vmem:[#allocation5 + $0xf0] sm:$0xff] %vm271, %v2456
      %2489 = vst.msk [vmem:[#allocation5 + $0xf8] sm:$0xff] %vm271, %v2457
      %v2490 = vld [vmem:[#allocation3 + $0x1] sm:$0xff]
      %v2491 = vld [vmem:[#allocation3 + $0x9] sm:$0xff]
      %v2492 = vld [vmem:[#allocation3 + $0x19] sm:$0xff]
      %v2493 = vld [vmem:[#allocation3 + $0x21] sm:$0xff]
      %v2494 = vld [vmem:[#allocation3 + $0x31] sm:$0xff]
      %v2495 = vld [vmem:[#allocation3 + $0x39] sm:$0xff]
      %v2496 = vld [vmem:[#allocation3 + $0x49] sm:$0xff]
      %v2497 = vld [vmem:[#allocation3 + $0x51] sm:$0xff]
      %v2498 = vld [vmem:[#allocation3 + $0x61] sm:$0xff]
      %v2499 = vld [vmem:[#allocation3 + $0x69] sm:$0xff]
      %v2500 = vld [vmem:[#allocation3 + $0x79] sm:$0xff]
      %v2501 = vld [vmem:[#allocation3 + $0x81] sm:$0xff]
      %v2502 = vld [vmem:[#allocation3 + $0x91] sm:$0xff]
      %v2503 = vld [vmem:[#allocation3 + $0x99] sm:$0xff]
      %v2504 = vld [vmem:[#allocation3 + $0xa9] sm:$0xff]
      %v2505 = vld [vmem:[#allocation3 + $0xb1] sm:$0xff]
      %v2506 = vld [vmem:[#allocation3 + $0xc1] sm:$0xff]
      %v2507 = vld [vmem:[#allocation3 + $0xc9] sm:$0xff]
      %v2508 = vld [vmem:[#allocation3 + $0xd9] sm:$0xff]
      %v2509 = vld [vmem:[#allocation3 + $0xe1] sm:$0xff]
      %v2510 = vld [vmem:[#allocation3 + $0xf1] sm:$0xff]
      %v2511 = vld [vmem:[#allocation3 + $0xf9] sm:$0xff]
      %v2512 = vld [vmem:[#allocation3 + $0x109] sm:$0xff]
      %v2513 = vld [vmem:[#allocation3 + $0x111] sm:$0xff]
      %v2514 = vld [vmem:[#allocation3 + $0x121] sm:$0xff]
      %v2515 = vld [vmem:[#allocation3 + $0x129] sm:$0xff]
      %v2516 = vld [vmem:[#allocation3 + $0x139] sm:$0xff]
      %v2517 = vld [vmem:[#allocation3 + $0x141] sm:$0xff]
      %v2518 = vld [vmem:[#allocation3 + $0x151] sm:$0xff]
      %v2519 = vld [vmem:[#allocation3 + $0x159] sm:$0xff]
      %v2520 = vld [vmem:[#allocation3 + $0x169] sm:$0xff]
      %v2521 = vld [vmem:[#allocation3 + $0x171] sm:$0xff]
      %2554 = vrot.lane.b32.xlu0 %v2490, 8
      %v2555 = vpop.permute.xlu0 %2554
      %2556 = vrot.lane.b32.xlu0 %v2491, 8
      %v2557 = vpop.permute.xlu0 %2556
      %2558 = vrot.lane.b32.xlu0 %v2492, 8
      %v2559 = vpop.permute.xlu0 %2558
      %2560 = vrot.lane.b32.xlu0 %v2493, 8
      %v2561 = vpop.permute.xlu0 %2560
      %2562 = vrot.lane.b32.xlu0 %v2494, 8
      %v2563 = vpop.permute.xlu0 %2562
      %2564 = vrot.lane.b32.xlu0 %v2495, 8
      %v2565 = vpop.permute.xlu0 %2564
      %2566 = vrot.lane.b32.xlu0 %v2496, 8
      %v2567 = vpop.permute.xlu0 %2566
      %2568 = vrot.lane.b32.xlu0 %v2497, 8
      %v2569 = vpop.permute.xlu0 %2568
      %2570 = vrot.lane.b32.xlu0 %v2498, 8
      %v2571 = vpop.permute.xlu0 %2570
      %2572 = vrot.lane.b32.xlu0 %v2499, 8
      %v2573 = vpop.permute.xlu0 %2572
      %2574 = vrot.lane.b32.xlu0 %v2500, 8
      %v2575 = vpop.permute.xlu0 %2574
      %2576 = vrot.lane.b32.xlu0 %v2501, 8
      %v2577 = vpop.permute.xlu0 %2576
      %2578 = vrot.lane.b32.xlu0 %v2502, 8
      %v2579 = vpop.permute.xlu0 %2578
      %2580 = vrot.lane.b32.xlu0 %v2503, 8
      %v2581 = vpop.permute.xlu0 %2580
      %2582 = vrot.lane.b32.xlu0 %v2504, 8
      %v2583 = vpop.permute.xlu0 %2582
      %2584 = vrot.lane.b32.xlu0 %v2505, 8
      %v2585 = vpop.permute.xlu0 %2584
      %2586 = vrot.lane.b32.xlu0 %v2506, 8
      %v2587 = vpop.permute.xlu0 %2586
      %2588 = vrot.lane.b32.xlu0 %v2507, 8
      %v2589 = vpop.permute.xlu0 %2588
      %2590 = vrot.lane.b32.xlu0 %v2508, 8
      %v2591 = vpop.permute.xlu0 %2590
      %2592 = vrot.lane.b32.xlu0 %v2509, 8
      %v2593 = vpop.permute.xlu0 %2592
      %2594 = vrot.lane.b32.xlu0 %v2510, 8
      %v2595 = vpop.permute.xlu0 %2594
      %2596 = vrot.lane.b32.xlu0 %v2511, 8
      %v2597 = vpop.permute.xlu0 %2596
      %2598 = vrot.lane.b32.xlu0 %v2512, 8
      %v2599 = vpop.permute.xlu0 %2598
      %2600 = vrot.lane.b32.xlu0 %v2513, 8
      %v2601 = vpop.permute.xlu0 %2600
      %2602 = vrot.lane.b32.xlu0 %v2514, 8
      %v2603 = vpop.permute.xlu0 %2602
      %2604 = vrot.lane.b32.xlu0 %v2515, 8
      %v2605 = vpop.permute.xlu0 %2604
      %2606 = vrot.lane.b32.xlu0 %v2516, 8
      %v2607 = vpop.permute.xlu0 %2606
      %2608 = vrot.lane.b32.xlu0 %v2517, 8
      %v2609 = vpop.permute.xlu0 %2608
      %2610 = vrot.lane.b32.xlu0 %v2518, 8
      %v2611 = vpop.permute.xlu0 %2610
      %2612 = vrot.lane.b32.xlu0 %v2519, 8
      %v2613 = vpop.permute.xlu0 %2612
      %2614 = vrot.lane.b32.xlu0 %v2520, 8
      %v2615 = vpop.permute.xlu0 %2614
      %2616 = vrot.lane.b32.xlu0 %v2521, 8
      %v2617 = vpop.permute.xlu0 %2616
      %vm2650 = vcmask 130112
      %2651 = vst.msk [vmem:[#allocation5] sm:$0xff] %vm2650, %v2555
      %2652 = vst.msk [vmem:[#allocation5 + $0x8] sm:$0xff] %vm2650, %v2557
      %2653 = vst.msk [vmem:[#allocation5 + $0x10] sm:$0xff] %vm2650, %v2559
      %2654 = vst.msk [vmem:[#allocation5 + $0x18] sm:$0xff] %vm2650, %v2561
      %2655 = vst.msk [vmem:[#allocation5 + $0x20] sm:$0xff] %vm2650, %v2563
      %2656 = vst.msk [vmem:[#allocation5 + $0x28] sm:$0xff] %vm2650, %v2565
      %2657 = vst.msk [vmem:[#allocation5 + $0x30] sm:$0xff] %vm2650, %v2567
      %2658 = vst.msk [vmem:[#allocation5 + $0x38] sm:$0xff] %vm2650, %v2569
      %2659 = vst.msk [vmem:[#allocation5 + $0x40] sm:$0xff] %vm2650, %v2571
      %2660 = vst.msk [vmem:[#allocation5 + $0x48] sm:$0xff] %vm2650, %v2573
      %2661 = vst.msk [vmem:[#allocation5 + $0x50] sm:$0xff] %vm2650, %v2575
      %2662 = vst.msk [vmem:[#allocation5 + $0x58] sm:$0xff] %vm2650, %v2577
      %2663 = vst.msk [vmem:[#allocation5 + $0x60] sm:$0xff] %vm2650, %v2579
      %2664 = vst.msk [vmem:[#allocation5 + $0x68] sm:$0xff] %vm2650, %v2581
      %2665 = vst.msk [vmem:[#allocation5 + $0x70] sm:$0xff] %vm2650, %v2583
      %2666 = vst.msk [vmem:[#allocation5 + $0x78] sm:$0xff] %vm2650, %v2585
      %2667 = vst.msk [vmem:[#allocation5 + $0x80] sm:$0xff] %vm2650, %v2587
      %2668 = vst.msk [vmem:[#allocation5 + $0x88] sm:$0xff] %vm2650, %v2589
      %2669 = vst.msk [vmem:[#allocation5 + $0x90] sm:$0xff] %vm2650, %v2591
      %2670 = vst.msk [vmem:[#allocation5 + $0x98] sm:$0xff] %vm2650, %v2593
      %2671 = vst.msk [vmem:[#allocation5 + $0xa0] sm:$0xff] %vm2650, %v2595
      %2672 = vst.msk [vmem:[#allocation5 + $0xa8] sm:$0xff] %vm2650, %v2597
      %2673 = vst.msk [vmem:[#allocation5 + $0xb0] sm:$0xff] %vm2650, %v2599
      %2674 = vst.msk [vmem:[#allocation5 + $0xb8] sm:$0xff] %vm2650, %v2601
      %2675 = vst.msk [vmem:[#allocation5 + $0xc0] sm:$0xff] %vm2650, %v2603
      %2676 = vst.msk [vmem:[#allocation5 + $0xc8] sm:$0xff] %vm2650, %v2605
      %2677 = vst.msk [vmem:[#allocation5 + $0xd0] sm:$0xff] %vm2650, %v2607
      %2678 = vst.msk [vmem:[#allocation5 + $0xd8] sm:$0xff] %vm2650, %v2609
      %2679 = vst.msk [vmem:[#allocation5 + $0xe0] sm:$0xff] %vm2650, %v2611
      %2680 = vst.msk [vmem:[#allocation5 + $0xe8] sm:$0xff] %vm2650, %v2613
      %2681 = vst.msk [vmem:[#allocation5 + $0xf0] sm:$0xff] %vm2650, %v2615
      %2682 = vst.msk [vmem:[#allocation5 + $0xf8] sm:$0xff] %vm2650, %v2617
      %v2683 = vld [vmem:[#allocation3 + $0x2] sm:$0xff]
      %v2684 = vld [vmem:[#allocation3 + $0xa] sm:$0xff]
      %v2685 = vld [vmem:[#allocation3 + $0x1a] sm:$0xff]
      %v2686 = vld [vmem:[#allocation3 + $0x22] sm:$0xff]
      %v2687 = vld [vmem:[#allocation3 + $0x32] sm:$0xff]
      %v2688 = vld [vmem:[#allocation3 + $0x3a] sm:$0xff]
      %v2689 = vld [vmem:[#allocation3 + $0x4a] sm:$0xff]
      %v2690 = vld [vmem:[#allocation3 + $0x52] sm:$0xff]
      %v2691 = vld [vmem:[#allocation3 + $0x62] sm:$0xff]
      %v2692 = vld [vmem:[#allocation3 + $0x6a] sm:$0xff]
      %v2693 = vld [vmem:[#allocation3 + $0x7a] sm:$0xff]
      %v2694 = vld [vmem:[#allocation3 + $0x82] sm:$0xff]
      %v2695 = vld [vmem:[#allocation3 + $0x92] sm:$0xff]
      %v2696 = vld [vmem:[#allocation3 + $0x9a] sm:$0xff]
      %v2697 = vld [vmem:[#allocation3 + $0xaa] sm:$0xff]
      %v2698 = vld [vmem:[#allocation3 + $0xb2] sm:$0xff]
      %v2699 = vld [vmem:[#allocation3 + $0xc2] sm:$0xff]
      %v2700 = vld [vmem:[#allocation3 + $0xca] sm:$0xff]
      %v2701 = vld [vmem:[#allocation3 + $0xda] sm:$0xff]
      %v2702 = vld [vmem:[#allocation3 + $0xe2] sm:$0xff]
      %v2703 = vld [vmem:[#allocation3 + $0xf2] sm:$0xff]
      %v2704 = vld [vmem:[#allocation3 + $0xfa] sm:$0xff]
      %v2705 = vld [vmem:[#allocation3 + $0x10a] sm:$0xff]
      %v2706 = vld [vmem:[#allocation3 + $0x112] sm:$0xff]
      %v2707 = vld [vmem:[#allocation3 + $0x122] sm:$0xff]
      %v2708 = vld [vmem:[#allocation3 + $0x12a] sm:$0xff]
      %v2709 = vld [vmem:[#allocation3 + $0x13a] sm:$0xff]
      %v2710 = vld [vmem:[#allocation3 + $0x142] sm:$0xff]
      %v2711 = vld [vmem:[#allocation3 + $0x152] sm:$0xff]
      %v2712 = vld [vmem:[#allocation3 + $0x15a] sm:$0xff]
      %v2713 = vld [vmem:[#allocation3 + $0x16a] sm:$0xff]
      %v2714 = vld [vmem:[#allocation3 + $0x172] sm:$0xff]
      %2747 = vrot.lane.b32.xlu0 %v2683, 16
      %v2748 = vpop.permute.xlu0 %2747
      %2749 = vrot.lane.b32.xlu0 %v2684, 16
      %v2750 = vpop.permute.xlu0 %2749
      %2751 = vrot.lane.b32.xlu0 %v2685, 16
      %v2752 = vpop.permute.xlu0 %2751
      %2753 = vrot.lane.b32.xlu0 %v2686, 16
      %v2754 = vpop.permute.xlu0 %2753
      %2755 = vrot.lane.b32.xlu0 %v2687, 16
      %v2756 = vpop.permute.xlu0 %2755
      %2757 = vrot.lane.b32.xlu0 %v2688, 16
      %v2758 = vpop.permute.xlu0 %2757
      %2759 = vrot.lane.b32.xlu0 %v2689, 16
      %v2760 = vpop.permute.xlu0 %2759
      %2761 = vrot.lane.b32.xlu0 %v2690, 16
      %v2762 = vpop.permute.xlu0 %2761
      %2763 = vrot.lane.b32.xlu0 %v2691, 16
      %v2764 = vpop.permute.xlu0 %2763
      %2765 = vrot.lane.b32.xlu0 %v2692, 16
      %v2766 = vpop.permute.xlu0 %2765
      %2767 = vrot.lane.b32.xlu0 %v2693, 16
      %v2768 = vpop.permute.xlu0 %2767
      %2769 = vrot.lane.b32.xlu0 %v2694, 16
      %v2770 = vpop.permute.xlu0 %2769
      %2771 = vrot.lane.b32.xlu0 %v2695, 16
      %v2772 = vpop.permute.xlu0 %2771
      %2773 = vrot.lane.b32.xlu0 %v2696, 16
      %v2774 = vpop.permute.xlu0 %2773
      %2775 = vrot.lane.b32.xlu0 %v2697, 16
      %v2776 = vpop.permute.xlu0 %2775
      %2777 = vrot.lane.b32.xlu0 %v2698, 16
      %v2778 = vpop.permute.xlu0 %2777
      %2779 = vrot.lane.b32.xlu0 %v2699, 16
      %v2780 = vpop.permute.xlu0 %2779
      %2781 = vrot.lane.b32.xlu0 %v2700, 16
      %v2782 = vpop.permute.xlu0 %2781
      %2783 = vrot.lane.b32.xlu0 %v2701, 16
      %v2784 = vpop.permute.xlu0 %2783
      %2785 = vrot.lane.b32.xlu0 %v2702, 16
      %v2786 = vpop.permute.xlu0 %2785
      %2787 = vrot.lane.b32.xlu0 %v2703, 16
      %v2788 = vpop.permute.xlu0 %2787
      %2789 = vrot.lane.b32.xlu0 %v2704, 16
      %v2790 = vpop.permute.xlu0 %2789
      %2791 = vrot.lane.b32.xlu0 %v2705, 16
      %v2792 = vpop.permute.xlu0 %2791
      %2793 = vrot.lane.b32.xlu0 %v2706, 16
      %v2794 = vpop.permute.xlu0 %2793
      %2795 = vrot.lane.b32.xlu0 %v2707, 16
      %v2796 = vpop.permute.xlu0 %2795
      %2797 = vrot.lane.b32.xlu0 %v2708, 16
      %v2798 = vpop.permute.xlu0 %2797
      %2799 = vrot.lane.b32.xlu0 %v2709, 16
      %v2800 = vpop.permute.xlu0 %2799
      %2801 = vrot.lane.b32.xlu0 %v2710, 16
      %v2802 = vpop.permute.xlu0 %2801
      %2803 = vrot.lane.b32.xlu0 %v2711, 16
      %v2804 = vpop.permute.xlu0 %2803
      %2805 = vrot.lane.b32.xlu0 %v2712, 16
      %v2806 = vpop.permute.xlu0 %2805
      %2807 = vrot.lane.b32.xlu0 %v2713, 16
      %v2808 = vpop.permute.xlu0 %2807
      %2809 = vrot.lane.b32.xlu0 %v2714, 16
      %v2810 = vpop.permute.xlu0 %2809
      %vm2843 = vcmask 195712
      %2844 = vst.msk [vmem:[#allocation5] sm:$0xff] %vm2843, %v2748
      %2845 = vst.msk [vmem:[#allocation5 + $0x8] sm:$0xff] %vm2843, %v2750
      %2846 = vst.msk [vmem:[#allocation5 + $0x10] sm:$0xff] %vm2843, %v2752
      %2847 = vst.msk [vmem:[#allocation5 + $0x18] sm:$0xff] %vm2843, %v2754
      %2848 = vst.msk [vmem:[#allocation5 + $0x20] sm:$0xff] %vm2843, %v2756
      %2849 = vst.msk [vmem:[#allocation5 + $0x28] sm:$0xff] %vm2843, %v2758
      %2850 = vst.msk [vmem:[#allocation5 + $0x30] sm:$0xff] %vm2843, %v2760
      %2851 = vst.msk [vmem:[#allocation5 + $0x38] sm:$0xff] %vm2843, %v2762
      %2852 = vst.msk [vmem:[#allocation5 + $0x40] sm:$0xff] %vm2843, %v2764
      %2853 = vst.msk [vmem:[#allocation5 + $0x48] sm:$0xff] %vm2843, %v2766
      %2854 = vst.msk [vmem:[#allocation5 + $0x50] sm:$0xff] %vm2843, %v2768
      %2855 = vst.msk [vmem:[#allocation5 + $0x58] sm:$0xff] %vm2843, %v2770
      %2856 = vst.msk [vmem:[#allocation5 + $0x60] sm:$0xff] %vm2843, %v2772
      %2857 = vst.msk [vmem:[#allocation5 + $0x68] sm:$0xff] %vm2843, %v2774
      %2858 = vst.msk [vmem:[#allocation5 + $0x70] sm:$0xff] %vm2843, %v2776
      %2859 = vst.msk [vmem:[#allocation5 + $0x78] sm:$0xff] %vm2843, %v2778
      %2860 = vst.msk [vmem:[#allocation5 + $0x80] sm:$0xff] %vm2843, %v2780
      %2861 = vst.msk [vmem:[#allocation5 + $0x88] sm:$0xff] %vm2843, %v2782
      %2862 = vst.msk [vmem:[#allocation5 + $0x90] sm:$0xff] %vm2843, %v2784
      %2863 = vst.msk [vmem:[#allocation5 + $0x98] sm:$0xff] %vm2843, %v2786
      %2864 = vst.msk [vmem:[#allocation5 + $0xa0] sm:$0xff] %vm2843, %v2788
      %2865 = vst.msk [vmem:[#allocation5 + $0xa8] sm:$0xff] %vm2843, %v2790
      %2866 = vst.msk [vmem:[#allocation5 + $0xb0] sm:$0xff] %vm2843, %v2792
      %2867 = vst.msk [vmem:[#allocation5 + $0xb8] sm:$0xff] %vm2843, %v2794
      %2868 = vst.msk [vmem:[#allocation5 + $0xc0] sm:$0xff] %vm2843, %v2796
      %2869 = vst.msk [vmem:[#allocation5 + $0xc8] sm:$0xff] %vm2843, %v2798
      %2870 = vst.msk [vmem:[#allocation5 + $0xd0] sm:$0xff] %vm2843, %v2800
      %2871 = vst.msk [vmem:[#allocation5 + $0xd8] sm:$0xff] %vm2843, %v2802
      %2872 = vst.msk [vmem:[#allocation5 + $0xe0] sm:$0xff] %vm2843, %v2804
      %2873 = vst.msk [vmem:[#allocation5 + $0xe8] sm:$0xff] %vm2843, %v2806
      %2874 = vst.msk [vmem:[#allocation5 + $0xf0] sm:$0xff] %vm2843, %v2808
      %2875 = vst.msk [vmem:[#allocation5 + $0xf8] sm:$0xff] %vm2843, %v2810
      %v2876 = vld [vmem:[%s2393] sm:$0xff]
      %v2877 = vld [vmem:[%s2393 + $0x8] sm:$0xff]
      %v2878 = vld [vmem:[%s2393 + $0x18] sm:$0xff]
      %v2879 = vld [vmem:[%s2393 + $0x20] sm:$0xff]
      %v2880 = vld [vmem:[%s2393 + $0x30] sm:$0xff]
      %v2881 = vld [vmem:[%s2393 + $0x38] sm:$0xff]
      %v2882 = vld [vmem:[%s2393 + $0x48] sm:$0xff]
      %v2883 = vld [vmem:[%s2393 + $0x50] sm:$0xff]
      %v2884 = vld [vmem:[%s2393 + $0x60] sm:$0xff]
      %v2885 = vld [vmem:[%s2393 + $0x68] sm:$0xff]
      %v2886 = vld [vmem:[%s2393 + $0x78] sm:$0xff]
      %v2887 = vld [vmem:[%s2393 + $0x80] sm:$0xff]
      %v2888 = vld [vmem:[%s2393 + $0x90] sm:$0xff]
      %v2889 = vld [vmem:[%s2393 + $0x98] sm:$0xff]
      %v2890 = vld [vmem:[%s2393 + $0xa8] sm:$0xff]
      %v2891 = vld [vmem:[%s2393 + $0xb0] sm:$0xff]
      %v2892 = vld [vmem:[%s2393 + $0xc0] sm:$0xff]
      %v2893 = vld [vmem:[%s2393 + $0xc8] sm:$0xff]
      %v2894 = vld [vmem:[%s2393 + $0xd8] sm:$0xff]
      %v2895 = vld [vmem:[%s2393 + $0xe0] sm:$0xff]
      %v2896 = vld [vmem:[%s2393 + $0xf0] sm:$0xff]
      %v2897 = vld [vmem:[%s2393 + $0xf8] sm:$0xff]
      %v2898 = vld [vmem:[%s2393 + $0x108] sm:$0xff]
      %v2899 = vld [vmem:[%s2393 + $0x110] sm:$0xff]
      %v2900 = vld [vmem:[%s2393 + $0x120] sm:$0xff]
      %v2901 = vld [vmem:[%s2393 + $0x128] sm:$0xff]
      %v2902 = vld [vmem:[%s2393 + $0x138] sm:$0xff]
      %v2903 = vld [vmem:[%s2393 + $0x140] sm:$0xff]
      %v2904 = vld [vmem:[%s2393 + $0x150] sm:$0xff]
      %v2905 = vld [vmem:[%s2393 + $0x158] sm:$0xff]
      %v2906 = vld [vmem:[%s2393 + $0x168] sm:$0xff]
      %v2907 = vld [vmem:[%s2393 + $0x170] sm:$0xff]
      %2940 = vrot.lane.b32.xlu0 %v2876, 24
      %v2941 = vpop.permute.xlu0 %2940
      %2942 = vrot.lane.b32.xlu0 %v2877, 24
      %v2943 = vpop.permute.xlu0 %2942
      %2944 = vrot.lane.b32.xlu0 %v2878, 24
      %v2945 = vpop.permute.xlu0 %2944
      %2946 = vrot.lane.b32.xlu0 %v2879, 24
      %v2947 = vpop.permute.xlu0 %2946
      %2948 = vrot.lane.b32.xlu0 %v2880, 24
      %v2949 = vpop.permute.xlu0 %2948
      %2950 = vrot.lane.b32.xlu0 %v2881, 24
      %v2951 = vpop.permute.xlu0 %2950
      %2952 = vrot.lane.b32.xlu0 %v2882, 24
      %v2953 = vpop.permute.xlu0 %2952
      %2954 = vrot.lane.b32.xlu0 %v2883, 24
      %v2955 = vpop.permute.xlu0 %2954
      %2956 = vrot.lane.b32.xlu0 %v2884, 24
      %v2957 = vpop.permute.xlu0 %2956
      %2958 = vrot.lane.b32.xlu0 %v2885, 24
      %v2959 = vpop.permute.xlu0 %2958
      %2960 = vrot.lane.b32.xlu0 %v2886, 24
      %v2961 = vpop.permute.xlu0 %2960
      %2962 = vrot.lane.b32.xlu0 %v2887, 24
      %v2963 = vpop.permute.xlu0 %2962
      %2964 = vrot.lane.b32.xlu0 %v2888, 24
      %v2965 = vpop.permute.xlu0 %2964
      %2966 = vrot.lane.b32.xlu0 %v2889, 24
      %v2967 = vpop.permute.xlu0 %2966
      %2968 = vrot.lane.b32.xlu0 %v2890, 24
      %v2969 = vpop.permute.xlu0 %2968
      %2970 = vrot.lane.b32.xlu0 %v2891, 24
      %v2971 = vpop.permute.xlu0 %2970
      %2972 = vrot.lane.b32.xlu0 %v2892, 24
      %v2973 = vpop.permute.xlu0 %2972
      %2974 = vrot.lane.b32.xlu0 %v2893, 24
      %v2975 = vpop.permute.xlu0 %2974
      %2976 = vrot.lane.b32.xlu0 %v2894, 24
      %v2977 = vpop.permute.xlu0 %2976
      %2978 = vrot.lane.b32.xlu0 %v2895, 24
      %v2979 = vpop.permute.xlu0 %2978
      %2980 = vrot.lane.b32.xlu0 %v2896, 24
      %v2981 = vpop.permute.xlu0 %2980
      %2982 = vrot.lane.b32.xlu0 %v2897, 24
      %v2983 = vpop.permute.xlu0 %2982
      %2984 = vrot.lane.b32.xlu0 %v2898, 24
      %v2985 = vpop.permute.xlu0 %2984
      %2986 = vrot.lane.b32.xlu0 %v2899, 24
      %v2987 = vpop.permute.xlu0 %2986
      %2988 = vrot.lane.b32.xlu0 %v2900, 24
      %v2989 = vpop.permute.xlu0 %2988
      %2990 = vrot.lane.b32.xlu0 %v2901, 24
      %v2991 = vpop.permute.xlu0 %2990
      %2992 = vrot.lane.b32.xlu0 %v2902, 24
      %v2993 = vpop.permute.xlu0 %2992
      %2994 = vrot.lane.b32.xlu0 %v2903, 24
      %v2995 = vpop.permute.xlu0 %2994
      %2996 = vrot.lane.b32.xlu0 %v2904, 24
      %v2997 = vpop.permute.xlu0 %2996
      %2998 = vrot.lane.b32.xlu0 %v2905, 24
      %v2999 = vpop.permute.xlu0 %2998
      %3000 = vrot.lane.b32.xlu0 %v2906, 24
      %v3001 = vpop.permute.xlu0 %3000
      %3002 = vrot.lane.b32.xlu0 %v2907, 24
      %v3003 = vpop.permute.xlu0 %3002
      %vm3036 = vcmask 261312
      %3037 = vst.msk [vmem:[#allocation5] sm:$0xff] %vm3036, %v2941
      %3038 = vst.msk [vmem:[#allocation5 + $0x8] sm:$0xff] %vm3036, %v2943
      %3039 = vst.msk [vmem:[#allocation5 + $0x10] sm:$0xff] %vm3036, %v2945
      %3040 = vst.msk [vmem:[#allocation5 + $0x18] sm:$0xff] %vm3036, %v2947
      %3041 = vst.msk [vmem:[#allocation5 + $0x20] sm:$0xff] %vm3036, %v2949
      %3042 = vst.msk [vmem:[#allocation5 + $0x28] sm:$0xff] %vm3036, %v2951
      %3043 = vst.msk [vmem:[#allocation5 + $0x30] sm:$0xff] %vm3036, %v2953
      %3044 = vst.msk [vmem:[#allocation5 + $0x38] sm:$0xff] %vm3036, %v2955
      %3045 = vst.msk [vmem:[#allocation5 + $0x40] sm:$0xff] %vm3036, %v2957
      %3046 = vst.msk [vmem:[#allocation5 + $0x48] sm:$0xff] %vm3036, %v2959
      %3047 = vst.msk [vmem:[#allocation5 + $0x50] sm:$0xff] %vm3036, %v2961
      %3048 = vst.msk [vmem:[#allocation5 + $0x58] sm:$0xff] %vm3036, %v2963
      %3049 = vst.msk [vmem:[#allocation5 + $0x60] sm:$0xff] %vm3036, %v2965
      %3050 = vst.msk [vmem:[#allocation5 + $0x68] sm:$0xff] %vm3036, %v2967
      %3051 = vst.msk [vmem:[#allocation5 + $0x70] sm:$0xff] %vm3036, %v2969
      %3052 = vst.msk [vmem:[#allocation5 + $0x78] sm:$0xff] %vm3036, %v2971
      %3053 = vst.msk [vmem:[#allocation5 + $0x80] sm:$0xff] %vm3036, %v2973
      %3054 = vst.msk [vmem:[#allocation5 + $0x88] sm:$0xff] %vm3036, %v2975
      %3055 = vst.msk [vmem:[#allocation5 + $0x90] sm:$0xff] %vm3036, %v2977
      %3056 = vst.msk [vmem:[#allocation5 + $0x98] sm:$0xff] %vm3036, %v2979
      %3057 = vst.msk [vmem:[#allocation5 + $0xa0] sm:$0xff] %vm3036, %v2981
      %3058 = vst.msk [vmem:[#allocation5 + $0xa8] sm:$0xff] %vm3036, %v2983
      %3059 = vst.msk [vmem:[#allocation5 + $0xb0] sm:$0xff] %vm3036, %v2985
      %3060 = vst.msk [vmem:[#allocation5 + $0xb8] sm:$0xff] %vm3036, %v2987
      %3061 = vst.msk [vmem:[#allocation5 + $0xc0] sm:$0xff] %vm3036, %v2989
      %3062 = vst.msk [vmem:[#allocation5 + $0xc8] sm:$0xff] %vm3036, %v2991
      %3063 = vst.msk [vmem:[#allocation5 + $0xd0] sm:$0xff] %vm3036, %v2993
      %3064 = vst.msk [vmem:[#allocation5 + $0xd8] sm:$0xff] %vm3036, %v2995
      %3065 = vst.msk [vmem:[#allocation5 + $0xe0] sm:$0xff] %vm3036, %v2997
      %3066 = vst.msk [vmem:[#allocation5 + $0xe8] sm:$0xff] %vm3036, %v2999
      %3067 = vst.msk [vmem:[#allocation5 + $0xf0] sm:$0xff] %vm3036, %v3001
      %3068 = vst.msk [vmem:[#allocation5 + $0xf8] sm:$0xff] %vm3036, %v3003
      %v3069 = vld [vmem:[%s2393 + $0x1] sm:$0xff]
      %v3070 = vld [vmem:[%s2393 + $0x9] sm:$0xff]
      %v3071 = vld [vmem:[%s2393 + $0x19] sm:$0xff]
      %v3072 = vld [vmem:[%s2393 + $0x21] sm:$0xff]
      %v3073 = vld [vmem:[%s2393 + $0x31] sm:$0xff]
      %v3074 = vld [vmem:[%s2393 + $0x39] sm:$0xff]
      %v3075 = vld [vmem:[%s2393 + $0x49] sm:$0xff]
      %v3076 = vld [vmem:[%s2393 + $0x51] sm:$0xff]
      %v3077 = vld [vmem:[%s2393 + $0x61] sm:$0xff]
      %v3078 = vld [vmem:[%s2393 + $0x69] sm:$0xff]
      %v3079 = vld [vmem:[%s2393 + $0x79] sm:$0xff]
      %v3080 = vld [vmem:[%s2393 + $0x81] sm:$0xff]
      %v3081 = vld [vmem:[%s2393 + $0x91] sm:$0xff]
      %v3082 = vld [vmem:[%s2393 + $0x99] sm:$0xff]
      %v3083 = vld [vmem:[%s2393 + $0xa9] sm:$0xff]
      %v3084 = vld [vmem:[%s2393 + $0xb1] sm:$0xff]
      %v3085 = vld [vmem:[%s2393 + $0xc1] sm:$0xff]
      %v3086 = vld [vmem:[%s2393 + $0xc9] sm:$0xff]
      %v3087 = vld [vmem:[%s2393 + $0xd9] sm:$0xff]
      %v3088 = vld [vmem:[%s2393 + $0xe1] sm:$0xff]
      %v3089 = vld [vmem:[%s2393 + $0xf1] sm:$0xff]
      %v3090 = vld [vmem:[%s2393 + $0xf9] sm:$0xff]
      %v3091 = vld [vmem:[%s2393 + $0x109] sm:$0xff]
      %v3092 = vld [vmem:[%s2393 + $0x111] sm:$0xff]
      %v3093 = vld [vmem:[%s2393 + $0x121] sm:$0xff]
      %v3094 = vld [vmem:[%s2393 + $0x129] sm:$0xff]
      %v3095 = vld [vmem:[%s2393 + $0x139] sm:$0xff]
      %v3096 = vld [vmem:[%s2393 + $0x141] sm:$0xff]
      %v3097 = vld [vmem:[%s2393 + $0x151] sm:$0xff]
      %v3098 = vld [vmem:[%s2393 + $0x159] sm:$0xff]
      %v3099 = vld [vmem:[%s2393 + $0x169] sm:$0xff]
      %v3100 = vld [vmem:[%s2393 + $0x171] sm:$0xff]
      %3133 = vrot.lane.b32.xlu0 %v3069, 32
      %v3134 = vpop.permute.xlu0 %3133
      %3135 = vrot.lane.b32.xlu0 %v3070, 32
      %v3136 = vpop.permute.xlu0 %3135
      %3137 = vrot.lane.b32.xlu0 %v3071, 32
      %v3138 = vpop.permute.xlu0 %3137
      %3139 = vrot.lane.b32.xlu0 %v3072, 32
      %v3140 = vpop.permute.xlu0 %3139
      %3141 = vrot.lane.b32.xlu0 %v3073, 32
      %v3142 = vpop.permute.xlu0 %3141
      %3143 = vrot.lane.b32.xlu0 %v3074, 32
      %v3144 = vpop.permute.xlu0 %3143
      %3145 = vrot.lane.b32.xlu0 %v3075, 32
      %v3146 = vpop.permute.xlu0 %3145
      %3147 = vrot.lane.b32.xlu0 %v3076, 32
      %v3148 = vpop.permute.xlu0 %3147
      %3149 = vrot.lane.b32.xlu0 %v3077, 32
      %v3150 = vpop.permute.xlu0 %3149
      %3151 = vrot.lane.b32.xlu0 %v3078, 32
      %v3152 = vpop.permute.xlu0 %3151
      %3153 = vrot.lane.b32.xlu0 %v3079, 32
      %v3154 = vpop.permute.xlu0 %3153
      %3155 = vrot.lane.b32.xlu0 %v3080, 32
      %v3156 = vpop.permute.xlu0 %3155
      %3157 = vrot.lane.b32.xlu0 %v3081, 32
      %v3158 = vpop.permute.xlu0 %3157
      %3159 = vrot.lane.b32.xlu0 %v3082, 32
      %v3160 = vpop.permute.xlu0 %3159
      %3161 = vrot.lane.b32.xlu0 %v3083, 32
      %v3162 = vpop.permute.xlu0 %3161
      %3163 = vrot.lane.b32.xlu0 %v3084, 32
      %v3164 = vpop.permute.xlu0 %3163
      %3165 = vrot.lane.b32.xlu0 %v3085, 32
      %v3166 = vpop.permute.xlu0 %3165
      %3167 = vrot.lane.b32.xlu0 %v3086, 32
      %v3168 = vpop.permute.xlu0 %3167
      %3169 = vrot.lane.b32.xlu0 %v3087, 32
      %v3170 = vpop.permute.xlu0 %3169
      %3171 = vrot.lane.b32.xlu0 %v3088, 32
      %v3172 = vpop.permute.xlu0 %3171
      %3173 = vrot.lane.b32.xlu0 %v3089, 32
      %v3174 = vpop.permute.xlu0 %3173
      %3175 = vrot.lane.b32.xlu0 %v3090, 32
      %v3176 = vpop.permute.xlu0 %3175
      %3177 = vrot.lane.b32.xlu0 %v3091, 32
      %v3178 = vpop.permute.xlu0 %3177
      %3179 = vrot.lane.b32.xlu0 %v3092, 32
      %v3180 = vpop.permute.xlu0 %3179
      %3181 = vrot.lane.b32.xlu0 %v3093, 32
      %v3182 = vpop.permute.xlu0 %3181
      %3183 = vrot.lane.b32.xlu0 %v3094, 32
      %v3184 = vpop.permute.xlu0 %3183
      %3185 = vrot.lane.b32.xlu0 %v3095, 32
      %v3186 = vpop.permute.xlu0 %3185
      %3187 = vrot.lane.b32.xlu0 %v3096, 32
      %v3188 = vpop.permute.xlu0 %3187
      %3189 = vrot.lane.b32.xlu0 %v3097, 32
      %v3190 = vpop.permute.xlu0 %3189
      %3191 = vrot.lane.b32.xlu0 %v3098, 32
      %v3192 = vpop.permute.xlu0 %3191
      %3193 = vrot.lane.b32.xlu0 %v3099, 32
      %v3194 = vpop.permute.xlu0 %3193
      %3195 = vrot.lane.b32.xlu0 %v3100, 32
      %v3196 = vpop.permute.xlu0 %3195
      %vm3229 = vcmask 326912
      %3230 = vst.msk [vmem:[#allocation5] sm:$0xff] %vm3229, %v3134
      %3231 = vst.msk [vmem:[#allocation5 + $0x8] sm:$0xff] %vm3229, %v3136
      %3232 = vst.msk [vmem:[#allocation5 + $0x10] sm:$0xff] %vm3229, %v3138
      %3233 = vst.msk [vmem:[#allocation5 + $0x18] sm:$0xff] %vm3229, %v3140
      %3234 = vst.msk [vmem:[#allocation5 + $0x20] sm:$0xff] %vm3229, %v3142
      %3235 = vst.msk [vmem:[#allocation5 + $0x28] sm:$0xff] %vm3229, %v3144
      %3236 = vst.msk [vmem:[#allocation5 + $0x30] sm:$0xff] %vm3229, %v3146
      %3237 = vst.msk [vmem:[#allocation5 + $0x38] sm:$0xff] %vm3229, %v3148
      %3238 = vst.msk [vmem:[#allocation5 + $0x40] sm:$0xff] %vm3229, %v3150
      %3239 = vst.msk [vmem:[#allocation5 + $0x48] sm:$0xff] %vm3229, %v3152
      %3240 = vst.msk [vmem:[#allocation5 + $0x50] sm:$0xff] %vm3229, %v3154
      %3241 = vst.msk [vmem:[#allocation5 + $0x58] sm:$0xff] %vm3229, %v3156
      %3242 = vst.msk [vmem:[#allocation5 + $0x60] sm:$0xff] %vm3229, %v3158
      %3243 = vst.msk [vmem:[#allocation5 + $0x68] sm:$0xff] %vm3229, %v3160
      %3244 = vst.msk [vmem:[#allocation5 + $0x70] sm:$0xff] %vm3229, %v3162
      %3245 = vst.msk [vmem:[#allocation5 + $0x78] sm:$0xff] %vm3229, %v3164
      %3246 = vst.msk [vmem:[#allocation5 + $0x80] sm:$0xff] %vm3229, %v3166
      %3247 = vst.msk [vmem:[#allocation5 + $0x88] sm:$0xff] %vm3229, %v3168
      %3248 = vst.msk [vmem:[#allocation5 + $0x90] sm:$0xff] %vm3229, %v3170
      %3249 = vst.msk [vmem:[#allocation5 + $0x98] sm:$0xff] %vm3229, %v3172
      %3250 = vst.msk [vmem:[#allocation5 + $0xa0] sm:$0xff] %vm3229, %v3174
      %3251 = vst.msk [vmem:[#allocation5 + $0xa8] sm:$0xff] %vm3229, %v3176
      %3252 = vst.msk [vmem:[#allocation5 + $0xb0] sm:$0xff] %vm3229, %v3178
      %3253 = vst.msk [vmem:[#allocation5 + $0xb8] sm:$0xff] %vm3229, %v3180
      %3254 = vst.msk [vmem:[#allocation5 + $0xc0] sm:$0xff] %vm3229, %v3182
      %3255 = vst.msk [vmem:[#allocation5 + $0xc8] sm:$0xff] %vm3229, %v3184
      %3256 = vst.msk [vmem:[#allocation5 + $0xd0] sm:$0xff] %vm3229, %v3186
      %3257 = vst.msk [vmem:[#allocation5 + $0xd8] sm:$0xff] %vm3229, %v3188
      %3258 = vst.msk [vmem:[#allocation5 + $0xe0] sm:$0xff] %vm3229, %v3190
      %3259 = vst.msk [vmem:[#allocation5 + $0xe8] sm:$0xff] %vm3229, %v3192
      %3260 = vst.msk [vmem:[#allocation5 + $0xf0] sm:$0xff] %vm3229, %v3194
      %3261 = vst.msk [vmem:[#allocation5 + $0xf8] sm:$0xff] %vm3229, %v3196
      %v3262 = vld [vmem:[%s2393 + $0x2] sm:$0xff]
      %v3263 = vld [vmem:[%s2393 + $0xa] sm:$0xff]
      %v3264 = vld [vmem:[%s2393 + $0x1a] sm:$0xff]
      %v3265 = vld [vmem:[%s2393 + $0x22] sm:$0xff]
      %v3266 = vld [vmem:[%s2393 + $0x32] sm:$0xff]
      %v3267 = vld [vmem:[%s2393 + $0x3a] sm:$0xff]
      %v3268 = vld [vmem:[%s2393 + $0x4a] sm:$0xff]
      %v3269 = vld [vmem:[%s2393 + $0x52] sm:$0xff]
      %v3270 = vld [vmem:[%s2393 + $0x62] sm:$0xff]
      %v3271 = vld [vmem:[%s2393 + $0x6a] sm:$0xff]
      %v3272 = vld [vmem:[%s2393 + $0x7a] sm:$0xff]
      %v3273 = vld [vmem:[%s2393 + $0x82] sm:$0xff]
      %v3274 = vld [vmem:[%s2393 + $0x92] sm:$0xff]
      %v3275 = vld [vmem:[%s2393 + $0x9a] sm:$0xff]
      %v3276 = vld [vmem:[%s2393 + $0xaa] sm:$0xff]
      %v3277 = vld [vmem:[%s2393 + $0xb2] sm:$0xff]
      %v3278 = vld [vmem:[%s2393 + $0xc2] sm:$0xff]
      %v3279 = vld [vmem:[%s2393 + $0xca] sm:$0xff]
      %v3280 = vld [vmem:[%s2393 + $0xda] sm:$0xff]
      %v3281 = vld [vmem:[%s2393 + $0xe2] sm:$0xff]
      %v3282 = vld [vmem:[%s2393 + $0xf2] sm:$0xff]
      %v3283 = vld [vmem:[%s2393 + $0xfa] sm:$0xff]
      %v3284 = vld [vmem:[%s2393 + $0x10a] sm:$0xff]
      %v3285 = vld [vmem:[%s2393 + $0x112] sm:$0xff]
      %v3286 = vld [vmem:[%s2393 + $0x122] sm:$0xff]
      %v3287 = vld [vmem:[%s2393 + $0x12a] sm:$0xff]
      %v3288 = vld [vmem:[%s2393 + $0x13a] sm:$0xff]
      %v3289 = vld [vmem:[%s2393 + $0x142] sm:$0xff]
      %v3290 = vld [vmem:[%s2393 + $0x152] sm:$0xff]
      %v3291 = vld [vmem:[%s2393 + $0x15a] sm:$0xff]
      %v3292 = vld [vmem:[%s2393 + $0x16a] sm:$0xff]
      %v3293 = vld [vmem:[%s2393 + $0x172] sm:$0xff]
      %3326 = vrot.lane.b32.xlu0 %v3262, 40
      %v3327 = vpop.permute.xlu0 %3326
      %3328 = vrot.lane.b32.xlu0 %v3263, 40
      %v3329 = vpop.permute.xlu0 %3328
      %3330 = vrot.lane.b32.xlu0 %v3264, 40
      %v3331 = vpop.permute.xlu0 %3330
      %3332 = vrot.lane.b32.xlu0 %v3265, 40
      %v3333 = vpop.permute.xlu0 %3332
      %3334 = vrot.lane.b32.xlu0 %v3266, 40
      %v3335 = vpop.permute.xlu0 %3334
      %3336 = vrot.lane.b32.xlu0 %v3267, 40
      %v3337 = vpop.permute.xlu0 %3336
      %3338 = vrot.lane.b32.xlu0 %v3268, 40
      %v3339 = vpop.permute.xlu0 %3338
      %3340 = vrot.lane.b32.xlu0 %v3269, 40
      %v3341 = vpop.permute.xlu0 %3340
      %3342 = vrot.lane.b32.xlu0 %v3270, 40
      %v3343 = vpop.permute.xlu0 %3342
      %3344 = vrot.lane.b32.xlu0 %v3271, 40
      %v3345 = vpop.permute.xlu0 %3344
      %3346 = vrot.lane.b32.xlu0 %v3272, 40
      %v3347 = vpop.permute.xlu0 %3346
      %3348 = vrot.lane.b32.xlu0 %v3273, 40
      %v3349 = vpop.permute.xlu0 %3348
      %3350 = vrot.lane.b32.xlu0 %v3274, 40
      %v3351 = vpop.permute.xlu0 %3350
      %3352 = vrot.lane.b32.xlu0 %v3275, 40
      %v3353 = vpop.permute.xlu0 %3352
      %3354 = vrot.lane.b32.xlu0 %v3276, 40
      %v3355 = vpop.permute.xlu0 %3354
      %3356 = vrot.lane.b32.xlu0 %v3277, 40
      %v3357 = vpop.permute.xlu0 %3356
      %3358 = vrot.lane.b32.xlu0 %v3278, 40
      %v3359 = vpop.permute.xlu0 %3358
      %3360 = vrot.lane.b32.xlu0 %v3279, 40
      %v3361 = vpop.permute.xlu0 %3360
      %3362 = vrot.lane.b32.xlu0 %v3280, 40
      %v3363 = vpop.permute.xlu0 %3362
      %3364 = vrot.lane.b32.xlu0 %v3281, 40
      %v3365 = vpop.permute.xlu0 %3364
      %3366 = vrot.lane.b32.xlu0 %v3282, 40
      %v3367 = vpop.permute.xlu0 %3366
      %3368 = vrot.lane.b32.xlu0 %v3283, 40
      %v3369 = vpop.permute.xlu0 %3368
      %3370 = vrot.lane.b32.xlu0 %v3284, 40
      %v3371 = vpop.permute.xlu0 %3370
      %3372 = vrot.lane.b32.xlu0 %v3285, 40
      %v3373 = vpop.permute.xlu0 %3372
      %3374 = vrot.lane.b32.xlu0 %v3286, 40
      %v3375 = vpop.permute.xlu0 %3374
      %3376 = vrot.lane.b32.xlu0 %v3287, 40
      %v3377 = vpop.permute.xlu0 %3376
      %3378 = vrot.lane.b32.xlu0 %v3288, 40
      %v3379 = vpop.permute.xlu0 %3378
      %3380 = vrot.lane.b32.xlu0 %v3289, 40
      %v3381 = vpop.permute.xlu0 %3380
      %3382 = vrot.lane.b32.xlu0 %v3290, 40
      %v3383 = vpop.permute.xlu0 %3382
      %3384 = vrot.lane.b32.xlu0 %v3291, 40
      %v3385 = vpop.permute.xlu0 %3384
      %3386 = vrot.lane.b32.xlu0 %v3292, 40
      %v3387 = vpop.permute.xlu0 %3386
      %3388 = vrot.lane.b32.xlu0 %v3293, 40
      %v3389 = vpop.permute.xlu0 %3388
      %vm3422 = vcmask 392512
      %3423 = vst.msk [vmem:[#allocation5] sm:$0xff] %vm3422, %v3327
      %3424 = vst.msk [vmem:[#allocation5 + $0x8] sm:$0xff] %vm3422, %v3329
      %3425 = vst.msk [vmem:[#allocation5 + $0x10] sm:$0xff] %vm3422, %v3331
      %3426 = vst.msk [vmem:[#allocation5 + $0x18] sm:$0xff] %vm3422, %v3333
      %3427 = vst.msk [vmem:[#allocation5 + $0x20] sm:$0xff] %vm3422, %v3335
      %3428 = vst.msk [vmem:[#allocation5 + $0x28] sm:$0xff] %vm3422, %v3337
      %3429 = vst.msk [vmem:[#allocation5 + $0x30] sm:$0xff] %vm3422, %v3339
      %3430 = vst.msk [vmem:[#allocation5 + $0x38] sm:$0xff] %vm3422, %v3341
      %3431 = vst.msk [vmem:[#allocation5 + $0x40] sm:$0xff] %vm3422, %v3343
      %3432 = vst.msk [vmem:[#allocation5 + $0x48] sm:$0xff] %vm3422, %v3345
      %3433 = vst.msk [vmem:[#allocation5 + $0x50] sm:$0xff] %vm3422, %v3347
      %3434 = vst.msk [vmem:[#allocation5 + $0x58] sm:$0xff] %vm3422, %v3349
      %3435 = vst.msk [vmem:[#allocation5 + $0x60] sm:$0xff] %vm3422, %v3351
      %3436 = vst.msk [vmem:[#allocation5 + $0x68] sm:$0xff] %vm3422, %v3353
      %3437 = vst.msk [vmem:[#allocation5 + $0x70] sm:$0xff] %vm3422, %v3355
      %3438 = vst.msk [vmem:[#allocation5 + $0x78] sm:$0xff] %vm3422, %v3357
      %3439 = vst.msk [vmem:[#allocation5 + $0x80] sm:$0xff] %vm3422, %v3359
      %3440 = vst.msk [vmem:[#allocation5 + $0x88] sm:$0xff] %vm3422, %v3361
      %3441 = vst.msk [vmem:[#allocation5 + $0x90] sm:$0xff] %vm3422, %v3363
      %3442 = vst.msk [vmem:[#allocation5 + $0x98] sm:$0xff] %vm3422, %v3365
      %3443 = vst.msk [vmem:[#allocation5 + $0xa0] sm:$0xff] %vm3422, %v3367
      %3444 = vst.msk [vmem:[#allocation5 + $0xa8] sm:$0xff] %vm3422, %v3369
      %3445 = vst.msk [vmem:[#allocation5 + $0xb0] sm:$0xff] %vm3422, %v3371
      %3446 = vst.msk [vmem:[#allocation5 + $0xb8] sm:$0xff] %vm3422, %v3373
      %3447 = vst.msk [vmem:[#allocation5 + $0xc0] sm:$0xff] %vm3422, %v3375
      %3448 = vst.msk [vmem:[#allocation5 + $0xc8] sm:$0xff] %vm3422, %v3377
      %3449 = vst.msk [vmem:[#allocation5 + $0xd0] sm:$0xff] %vm3422, %v3379
      %3450 = vst.msk [vmem:[#allocation5 + $0xd8] sm:$0xff] %vm3422, %v3381
      %3451 = vst.msk [vmem:[#allocation5 + $0xe0] sm:$0xff] %vm3422, %v3383
      %3452 = vst.msk [vmem:[#allocation5 + $0xe8] sm:$0xff] %vm3422, %v3385
      %3453 = vst.msk [vmem:[#allocation5 + $0xf0] sm:$0xff] %vm3422, %v3387
      %3454 = vst.msk [vmem:[#allocation5 + $0xf8] sm:$0xff] %vm3422, %v3389
      %s3455 = scalar_lea.vmem [#allocation3], 48
      %v3456 = vld [vmem:[%s3455] sm:$0xff]
      %v3457 = vld [vmem:[%s3455 + $0x8] sm:$0xff]
      %v3458 = vld [vmem:[%s3455 + $0x18] sm:$0xff]
      %v3459 = vld [vmem:[%s3455 + $0x20] sm:$0xff]
      %v3460 = vld [vmem:[%s3455 + $0x30] sm:$0xff]
      %v3461 = vld [vmem:[%s3455 + $0x38] sm:$0xff]
      %v3462 = vld [vmem:[%s3455 + $0x48] sm:$0xff]
      %v3463 = vld [vmem:[%s3455 + $0x50] sm:$0xff]
      %v3464 = vld [vmem:[%s3455 + $0x60] sm:$0xff]
      %v3465 = vld [vmem:[%s3455 + $0x68] sm:$0xff]
      %v3466 = vld [vmem:[%s3455 + $0x78] sm:$0xff]
      %v3467 = vld [vmem:[%s3455 + $0x80] sm:$0xff]
      %v3468 = vld [vmem:[%s3455 + $0x90] sm:$0xff]
      %v3469 = vld [vmem:[%s3455 + $0x98] sm:$0xff]
      %v3470 = vld [vmem:[%s3455 + $0xa8] sm:$0xff]
      %v3471 = vld [vmem:[%s3455 + $0xb0] sm:$0xff]
      %v3472 = vld [vmem:[%s3455 + $0xc0] sm:$0xff]
      %v3473 = vld [vmem:[%s3455 + $0xc8] sm:$0xff]
      %v3474 = vld [vmem:[%s3455 + $0xd8] sm:$0xff]
      %v3475 = vld [vmem:[%s3455 + $0xe0] sm:$0xff]
      %v3476 = vld [vmem:[%s3455 + $0xf0] sm:$0xff]
      %v3477 = vld [vmem:[%s3455 + $0xf8] sm:$0xff]
      %v3478 = vld [vmem:[%s3455 + $0x108] sm:$0xff]
      %v3479 = vld [vmem:[%s3455 + $0x110] sm:$0xff]
      %v3480 = vld [vmem:[%s3455 + $0x120] sm:$0xff]
      %v3481 = vld [vmem:[%s3455 + $0x128] sm:$0xff]
      %v3482 = vld [vmem:[%s3455 + $0x138] sm:$0xff]
      %v3483 = vld [vmem:[%s3455 + $0x140] sm:$0xff]
      %v3484 = vld [vmem:[%s3455 + $0x150] sm:$0xff]
      %v3485 = vld [vmem:[%s3455 + $0x158] sm:$0xff]
      %v3486 = vld [vmem:[%s3455 + $0x168] sm:$0xff]
      %v3487 = vld [vmem:[%s3455 + $0x170] sm:$0xff]
      %3520 = vrot.lane.b32.xlu0 %v3456, 48
      %v3521 = vpop.permute.xlu0 %3520
      %3522 = vrot.lane.b32.xlu0 %v3457, 48
      %v3523 = vpop.permute.xlu0 %3522
      %3524 = vrot.lane.b32.xlu0 %v3458, 48
      %v3525 = vpop.permute.xlu0 %3524
      %3526 = vrot.lane.b32.xlu0 %v3459, 48
      %v3527 = vpop.permute.xlu0 %3526
      %3528 = vrot.lane.b32.xlu0 %v3460, 48
      %v3529 = vpop.permute.xlu0 %3528
      %3530 = vrot.lane.b32.xlu0 %v3461, 48
      %v3531 = vpop.permute.xlu0 %3530
      %3532 = vrot.lane.b32.xlu0 %v3462, 48
      %v3533 = vpop.permute.xlu0 %3532
      %3534 = vrot.lane.b32.xlu0 %v3463, 48
      %v3535 = vpop.permute.xlu0 %3534
      %3536 = vrot.lane.b32.xlu0 %v3464, 48
      %v3537 = vpop.permute.xlu0 %3536
      %3538 = vrot.lane.b32.xlu0 %v3465, 48
      %v3539 = vpop.permute.xlu0 %3538
      %3540 = vrot.lane.b32.xlu0 %v3466, 48
      %v3541 = vpop.permute.xlu0 %3540
      %3542 = vrot.lane.b32.xlu0 %v3467, 48
      %v3543 = vpop.permute.xlu0 %3542
      %3544 = vrot.lane.b32.xlu0 %v3468, 48
      %v3545 = vpop.permute.xlu0 %3544
      %3546 = vrot.lane.b32.xlu0 %v3469, 48
      %v3547 = vpop.permute.xlu0 %3546
      %3548 = vrot.lane.b32.xlu0 %v3470, 48
      %v3549 = vpop.permute.xlu0 %3548
      %3550 = vrot.lane.b32.xlu0 %v3471, 48
      %v3551 = vpop.permute.xlu0 %3550
      %3552 = vrot.lane.b32.xlu0 %v3472, 48
      %v3553 = vpop.permute.xlu0 %3552
      %3554 = vrot.lane.b32.xlu0 %v3473, 48
      %v3555 = vpop.permute.xlu0 %3554
      %3556 = vrot.lane.b32.xlu0 %v3474, 48
      %v3557 = vpop.permute.xlu0 %3556
      %3558 = vrot.lane.b32.xlu0 %v3475, 48
      %v3559 = vpop.permute.xlu0 %3558
      %3560 = vrot.lane.b32.xlu0 %v3476, 48
      %v3561 = vpop.permute.xlu0 %3560
      %3562 = vrot.lane.b32.xlu0 %v3477, 48
      %v3563 = vpop.permute.xlu0 %3562
      %3564 = vrot.lane.b32.xlu0 %v3478, 48
      %v3565 = vpop.permute.xlu0 %3564
      %3566 = vrot.lane.b32.xlu0 %v3479, 48
      %v3567 = vpop.permute.xlu0 %3566
      %3568 = vrot.lane.b32.xlu0 %v3480, 48
      %v3569 = vpop.permute.xlu0 %3568
      %3570 = vrot.lane.b32.xlu0 %v3481, 48
      %v3571 = vpop.permute.xlu0 %3570
      %3572 = vrot.lane.b32.xlu0 %v3482, 48
      %v3573 = vpop.permute.xlu0 %3572
      %3574 = vrot.lane.b32.xlu0 %v3483, 48
      %v3575 = vpop.permute.xlu0 %3574
      %3576 = vrot.lane.b32.xlu0 %v3484, 48
      %v3577 = vpop.permute.xlu0 %3576
      %3578 = vrot.lane.b32.xlu0 %v3485, 48
      %v3579 = vpop.permute.xlu0 %3578
      %3580 = vrot.lane.b32.xlu0 %v3486, 48
      %v3581 = vpop.permute.xlu0 %3580
      %3582 = vrot.lane.b32.xlu0 %v3487, 48
      %v3583 = vpop.permute.xlu0 %3582
      %vm3616 = vcmask 458112
      %3617 = vst.msk [vmem:[#allocation5] sm:$0xff] %vm3616, %v3521
      %3618 = vst.msk [vmem:[#allocation5 + $0x8] sm:$0xff] %vm3616, %v3523
      %3619 = vst.msk [vmem:[#allocation5 + $0x10] sm:$0xff] %vm3616, %v3525
      %3620 = vst.msk [vmem:[#allocation5 + $0x18] sm:$0xff] %vm3616, %v3527
      %3621 = vst.msk [vmem:[#allocation5 + $0x20] sm:$0xff] %vm3616, %v3529
      %3622 = vst.msk [vmem:[#allocation5 + $0x28] sm:$0xff] %vm3616, %v3531
      %3623 = vst.msk [vmem:[#allocation5 + $0x30] sm:$0xff] %vm3616, %v3533
      %3624 = vst.msk [vmem:[#allocation5 + $0x38] sm:$0xff] %vm3616, %v3535
      %3625 = vst.msk [vmem:[#allocation5 + $0x40] sm:$0xff] %vm3616, %v3537
      %3626 = vst.msk [vmem:[#allocation5 + $0x48] sm:$0xff] %vm3616, %v3539
      %3627 = vst.msk [vmem:[#allocation5 + $0x50] sm:$0xff] %vm3616, %v3541
      %3628 = vst.msk [vmem:[#allocation5 + $0x58] sm:$0xff] %vm3616, %v3543
      %3629 = vst.msk [vmem:[#allocation5 + $0x60] sm:$0xff] %vm3616, %v3545
      %3630 = vst.msk [vmem:[#allocation5 + $0x68] sm:$0xff] %vm3616, %v3547
      %3631 = vst.msk [vmem:[#allocation5 + $0x70] sm:$0xff] %vm3616, %v3549
      %3632 = vst.msk [vmem:[#allocation5 + $0x78] sm:$0xff] %vm3616, %v3551
      %3633 = vst.msk [vmem:[#allocation5 + $0x80] sm:$0xff] %vm3616, %v3553
      %3634 = vst.msk [vmem:[#allocation5 + $0x88] sm:$0xff] %vm3616, %v3555
      %3635 = vst.msk [vmem:[#allocation5 + $0x90] sm:$0xff] %vm3616, %v3557
      %3636 = vst.msk [vmem:[#allocation5 + $0x98] sm:$0xff] %vm3616, %v3559
      %3637 = vst.msk [vmem:[#allocation5 + $0xa0] sm:$0xff] %vm3616, %v3561
      %3638 = vst.msk [vmem:[#allocation5 + $0xa8] sm:$0xff] %vm3616, %v3563
      %3639 = vst.msk [vmem:[#allocation5 + $0xb0] sm:$0xff] %vm3616, %v3565
      %3640 = vst.msk [vmem:[#allocation5 + $0xb8] sm:$0xff] %vm3616, %v3567
      %3641 = vst.msk [vmem:[#allocation5 + $0xc0] sm:$0xff] %vm3616, %v3569
      %3642 = vst.msk [vmem:[#allocation5 + $0xc8] sm:$0xff] %vm3616, %v3571
      %3643 = vst.msk [vmem:[#allocation5 + $0xd0] sm:$0xff] %vm3616, %v3573
      %3644 = vst.msk [vmem:[#allocation5 + $0xd8] sm:$0xff] %vm3616, %v3575
      %3645 = vst.msk [vmem:[#allocation5 + $0xe0] sm:$0xff] %vm3616, %v3577
      %3646 = vst.msk [vmem:[#allocation5 + $0xe8] sm:$0xff] %vm3616, %v3579
      %3647 = vst.msk [vmem:[#allocation5 + $0xf0] sm:$0xff] %vm3616, %v3581
      %3648 = vst.msk [vmem:[#allocation5 + $0xf8] sm:$0xff] %vm3616, %v3583
      %v3649 = vld [vmem:[%s3455 + $0x1] sm:$0xff]
      %v3650 = vld [vmem:[%s3455 + $0x9] sm:$0xff]
      %v3651 = vld [vmem:[%s3455 + $0x19] sm:$0xff]
      %v3652 = vld [vmem:[%s3455 + $0x21] sm:$0xff]
      %v3653 = vld [vmem:[%s3455 + $0x31] sm:$0xff]
      %v3654 = vld [vmem:[%s3455 + $0x39] sm:$0xff]
      %v3655 = vld [vmem:[%s3455 + $0x49] sm:$0xff]
      %v3656 = vld [vmem:[%s3455 + $0x51] sm:$0xff]
      %v3657 = vld [vmem:[%s3455 + $0x61] sm:$0xff]
      %v3658 = vld [vmem:[%s3455 + $0x69] sm:$0xff]
      %v3659 = vld [vmem:[%s3455 + $0x79] sm:$0xff]
      %v3660 = vld [vmem:[%s3455 + $0x81] sm:$0xff]
      %v3661 = vld [vmem:[%s3455 + $0x91] sm:$0xff]
      %v3662 = vld [vmem:[%s3455 + $0x99] sm:$0xff]
      %v3663 = vld [vmem:[%s3455 + $0xa9] sm:$0xff]
      %v3664 = vld [vmem:[%s3455 + $0xb1] sm:$0xff]
      %v3665 = vld [vmem:[%s3455 + $0xc1] sm:$0xff]
      %v3666 = vld [vmem:[%s3455 + $0xc9] sm:$0xff]
      %v3667 = vld [vmem:[%s3455 + $0xd9] sm:$0xff]
      %v3668 = vld [vmem:[%s3455 + $0xe1] sm:$0xff]
      %v3669 = vld [vmem:[%s3455 + $0xf1] sm:$0xff]
      %v3670 = vld [vmem:[%s3455 + $0xf9] sm:$0xff]
      %v3671 = vld [vmem:[%s3455 + $0x109] sm:$0xff]
      %v3672 = vld [vmem:[%s3455 + $0x111] sm:$0xff]
      %v3673 = vld [vmem:[%s3455 + $0x121] sm:$0xff]
      %v3674 = vld [vmem:[%s3455 + $0x129] sm:$0xff]
      %v3675 = vld [vmem:[%s3455 + $0x139] sm:$0xff]
      %v3676 = vld [vmem:[%s3455 + $0x141] sm:$0xff]
      %v3677 = vld [vmem:[%s3455 + $0x151] sm:$0xff]
      %v3678 = vld [vmem:[%s3455 + $0x159] sm:$0xff]
      %v3679 = vld [vmem:[%s3455 + $0x169] sm:$0xff]
      %v3680 = vld [vmem:[%s3455 + $0x171] sm:$0xff]
      %3713 = vrot.lane.b32.xlu0 %v3649, 56
      %v3714 = vpop.permute.xlu0 %3713
      %3715 = vrot.lane.b32.xlu0 %v3650, 56
      %v3716 = vpop.permute.xlu0 %3715
      %3717 = vrot.lane.b32.xlu0 %v3651, 56
      %v3718 = vpop.permute.xlu0 %3717
      %3719 = vrot.lane.b32.xlu0 %v3652, 56
      %v3720 = vpop.permute.xlu0 %3719
      %3721 = vrot.lane.b32.xlu0 %v3653, 56
      %v3722 = vpop.permute.xlu0 %3721
      %3723 = vrot.lane.b32.xlu0 %v3654, 56
      %v3724 = vpop.permute.xlu0 %3723
      %3725 = vrot.lane.b32.xlu0 %v3655, 56
      %v3726 = vpop.permute.xlu0 %3725
      %3727 = vrot.lane.b32.xlu0 %v3656, 56
      %v3728 = vpop.permute.xlu0 %3727
      %3729 = vrot.lane.b32.xlu0 %v3657, 56
      %v3730 = vpop.permute.xlu0 %3729
      %3731 = vrot.lane.b32.xlu0 %v3658, 56
      %v3732 = vpop.permute.xlu0 %3731
      %3733 = vrot.lane.b32.xlu0 %v3659, 56
      %v3734 = vpop.permute.xlu0 %3733
      %3735 = vrot.lane.b32.xlu0 %v3660, 56
      %v3736 = vpop.permute.xlu0 %3735
      %3737 = vrot.lane.b32.xlu0 %v3661, 56
      %v3738 = vpop.permute.xlu0 %3737
      %3739 = vrot.lane.b32.xlu0 %v3662, 56
      %v3740 = vpop.permute.xlu0 %3739
      %3741 = vrot.lane.b32.xlu0 %v3663, 56
      %v3742 = vpop.permute.xlu0 %3741
      %3743 = vrot.lane.b32.xlu0 %v3664, 56
      %v3744 = vpop.permute.xlu0 %3743
      %3745 = vrot.lane.b32.xlu0 %v3665, 56
      %v3746 = vpop.permute.xlu0 %3745
      %3747 = vrot.lane.b32.xlu0 %v3666, 56
      %v3748 = vpop.permute.xlu0 %3747
      %3749 = vrot.lane.b32.xlu0 %v3667, 56
      %v3750 = vpop.permute.xlu0 %3749
      %3751 = vrot.lane.b32.xlu0 %v3668, 56
      %v3752 = vpop.permute.xlu0 %3751
      %3753 = vrot.lane.b32.xlu0 %v3669, 56
      %v3754 = vpop.permute.xlu0 %3753
      %3755 = vrot.lane.b32.xlu0 %v3670, 56
      %v3756 = vpop.permute.xlu0 %3755
      %3757 = vrot.lane.b32.xlu0 %v3671, 56
      %v3758 = vpop.permute.xlu0 %3757
      %3759 = vrot.lane.b32.xlu0 %v3672, 56
      %v3760 = vpop.permute.xlu0 %3759
      %3761 = vrot.lane.b32.xlu0 %v3673, 56
      %v3762 = vpop.permute.xlu0 %3761
      %3763 = vrot.lane.b32.xlu0 %v3674, 56
      %v3764 = vpop.permute.xlu0 %3763
      %3765 = vrot.lane.b32.xlu0 %v3675, 56
      %v3766 = vpop.permute.xlu0 %3765
      %3767 = vrot.lane.b32.xlu0 %v3676, 56
      %v3768 = vpop.permute.xlu0 %3767
      %3769 = vrot.lane.b32.xlu0 %v3677, 56
      %v3770 = vpop.permute.xlu0 %3769
      %3771 = vrot.lane.b32.xlu0 %v3678, 56
      %v3772 = vpop.permute.xlu0 %3771
      %3773 = vrot.lane.b32.xlu0 %v3679, 56
      %v3774 = vpop.permute.xlu0 %3773
      %3775 = vrot.lane.b32.xlu0 %v3680, 56
      %v3776 = vpop.permute.xlu0 %3775
      %vm3809 = vcmask 523712
      %3810 = vst.msk [vmem:[#allocation5] sm:$0xff] %vm3809, %v3714
      %3811 = vst.msk [vmem:[#allocation5 + $0x8] sm:$0xff] %vm3809, %v3716
      %3812 = vst.msk [vmem:[#allocation5 + $0x10] sm:$0xff] %vm3809, %v3718
      %3813 = vst.msk [vmem:[#allocation5 + $0x18] sm:$0xff] %vm3809, %v3720
      %3814 = vst.msk [vmem:[#allocation5 + $0x20] sm:$0xff] %vm3809, %v3722
      %3815 = vst.msk [vmem:[#allocation5 + $0x28] sm:$0xff] %vm3809, %v3724
      %3816 = vst.msk [vmem:[#allocation5 + $0x30] sm:$0xff] %vm3809, %v3726
      %3817 = vst.msk [vmem:[#allocation5 + $0x38] sm:$0xff] %vm3809, %v3728
      %3818 = vst.msk [vmem:[#allocation5 + $0x40] sm:$0xff] %vm3809, %v3730
      %3819 = vst.msk [vmem:[#allocation5 + $0x48] sm:$0xff] %vm3809, %v3732
      %3820 = vst.msk [vmem:[#allocation5 + $0x50] sm:$0xff] %vm3809, %v3734
      %3821 = vst.msk [vmem:[#allocation5 + $0x58] sm:$0xff] %vm3809, %v3736
      %3822 = vst.msk [vmem:[#allocation5 + $0x60] sm:$0xff] %vm3809, %v3738
      %3823 = vst.msk [vmem:[#allocation5 + $0x68] sm:$0xff] %vm3809, %v3740
      %3824 = vst.msk [vmem:[#allocation5 + $0x70] sm:$0xff] %vm3809, %v3742
      %3825 = vst.msk [vmem:[#allocation5 + $0x78] sm:$0xff] %vm3809, %v3744
      %3826 = vst.msk [vmem:[#allocation5 + $0x80] sm:$0xff] %vm3809, %v3746
      %3827 = vst.msk [vmem:[#allocation5 + $0x88] sm:$0xff] %vm3809, %v3748
      %3828 = vst.msk [vmem:[#allocation5 + $0x90] sm:$0xff] %vm3809, %v3750
      %3829 = vst.msk [vmem:[#allocation5 + $0x98] sm:$0xff] %vm3809, %v3752
      %3830 = vst.msk [vmem:[#allocation5 + $0xa0] sm:$0xff] %vm3809, %v3754
      %3831 = vst.msk [vmem:[#allocation5 + $0xa8] sm:$0xff] %vm3809, %v3756
      %3832 = vst.msk [vmem:[#allocation5 + $0xb0] sm:$0xff] %vm3809, %v3758
      %3833 = vst.msk [vmem:[#allocation5 + $0xb8] sm:$0xff] %vm3809, %v3760
      %3834 = vst.msk [vmem:[#allocation5 + $0xc0] sm:$0xff] %vm3809, %v3762
      %3835 = vst.msk [vmem:[#allocation5 + $0xc8] sm:$0xff] %vm3809, %v3764
      %3836 = vst.msk [vmem:[#allocation5 + $0xd0] sm:$0xff] %vm3809, %v3766
      %3837 = vst.msk [vmem:[#allocation5 + $0xd8] sm:$0xff] %vm3809, %v3768
      %3838 = vst.msk [vmem:[#allocation5 + $0xe0] sm:$0xff] %vm3809, %v3770
      %3839 = vst.msk [vmem:[#allocation5 + $0xe8] sm:$0xff] %vm3809, %v3772
      %3840 = vst.msk [vmem:[#allocation5 + $0xf0] sm:$0xff] %vm3809, %v3774
      %3841 = vst.msk [vmem:[#allocation5 + $0xf8] sm:$0xff] %vm3809, %v3776
      %v3842 = vld [vmem:[%s3455 + $0x2] sm:$0xff]
      %v3843 = vld [vmem:[%s3455 + $0xa] sm:$0xff]
      %v3844 = vld [vmem:[%s3455 + $0x1a] sm:$0xff]
      %v3845 = vld [vmem:[%s3455 + $0x22] sm:$0xff]
      %v3846 = vld [vmem:[%s3455 + $0x32] sm:$0xff]
      %v3847 = vld [vmem:[%s3455 + $0x3a] sm:$0xff]
      %v3848 = vld [vmem:[%s3455 + $0x4a] sm:$0xff]
      %v3849 = vld [vmem:[%s3455 + $0x52] sm:$0xff]
      %v3850 = vld [vmem:[%s3455 + $0x62] sm:$0xff]
      %v3851 = vld [vmem:[%s3455 + $0x6a] sm:$0xff]
      %v3852 = vld [vmem:[%s3455 + $0x7a] sm:$0xff]
      %v3853 = vld [vmem:[%s3455 + $0x82] sm:$0xff]
      %v3854 = vld [vmem:[%s3455 + $0x92] sm:$0xff]
      %v3855 = vld [vmem:[%s3455 + $0x9a] sm:$0xff]
      %v3856 = vld [vmem:[%s3455 + $0xaa] sm:$0xff]
      %v3857 = vld [vmem:[%s3455 + $0xb2] sm:$0xff]
      %v3858 = vld [vmem:[%s3455 + $0xc2] sm:$0xff]
      %v3859 = vld [vmem:[%s3455 + $0xca] sm:$0xff]
      %v3860 = vld [vmem:[%s3455 + $0xda] sm:$0xff]
      %v3861 = vld [vmem:[%s3455 + $0xe2] sm:$0xff]
      %v3862 = vld [vmem:[%s3455 + $0xf2] sm:$0xff]
      %v3863 = vld [vmem:[%s3455 + $0xfa] sm:$0xff]
      %v3864 = vld [vmem:[%s3455 + $0x10a] sm:$0xff]
      %v3865 = vld [vmem:[%s3455 + $0x112] sm:$0xff]
      %v3866 = vld [vmem:[%s3455 + $0x122] sm:$0xff]
      %v3867 = vld [vmem:[%s3455 + $0x12a] sm:$0xff]
      %v3868 = vld [vmem:[%s3455 + $0x13a] sm:$0xff]
      %v3869 = vld [vmem:[%s3455 + $0x142] sm:$0xff]
      %v3870 = vld [vmem:[%s3455 + $0x152] sm:$0xff]
      %v3871 = vld [vmem:[%s3455 + $0x15a] sm:$0xff]
      %v3872 = vld [vmem:[%s3455 + $0x16a] sm:$0xff]
      %v3873 = vld [vmem:[%s3455 + $0x172] sm:$0xff]
      %3906 = vrot.lane.b32.xlu0 %v3842, 64
      %v3907 = vpop.permute.xlu0 %3906
      %3908 = vrot.lane.b32.xlu0 %v3843, 64
      %v3909 = vpop.permute.xlu0 %3908
      %3910 = vrot.lane.b32.xlu0 %v3844, 64
      %v3911 = vpop.permute.xlu0 %3910
      %3912 = vrot.lane.b32.xlu0 %v3845, 64
      %v3913 = vpop.permute.xlu0 %3912
      %3914 = vrot.lane.b32.xlu0 %v3846, 64
      %v3915 = vpop.permute.xlu0 %3914
      %3916 = vrot.lane.b32.xlu0 %v3847, 64
      %v3917 = vpop.permute.xlu0 %3916
      %3918 = vrot.lane.b32.xlu0 %v3848, 64
      %v3919 = vpop.permute.xlu0 %3918
      %3920 = vrot.lane.b32.xlu0 %v3849, 64
      %v3921 = vpop.permute.xlu0 %3920
      %3922 = vrot.lane.b32.xlu0 %v3850, 64
      %v3923 = vpop.permute.xlu0 %3922
      %3924 = vrot.lane.b32.xlu0 %v3851, 64
      %v3925 = vpop.permute.xlu0 %3924
      %3926 = vrot.lane.b32.xlu0 %v3852, 64
      %v3927 = vpop.permute.xlu0 %3926
      %3928 = vrot.lane.b32.xlu0 %v3853, 64
      %v3929 = vpop.permute.xlu0 %3928
      %3930 = vrot.lane.b32.xlu0 %v3854, 64
      %v3931 = vpop.permute.xlu0 %3930
      %3932 = vrot.lane.b32.xlu0 %v3855, 64
      %v3933 = vpop.permute.xlu0 %3932
      %3934 = vrot.lane.b32.xlu0 %v3856, 64
      %v3935 = vpop.permute.xlu0 %3934
      %3936 = vrot.lane.b32.xlu0 %v3857, 64
      %v3937 = vpop.permute.xlu0 %3936
      %3938 = vrot.lane.b32.xlu0 %v3858, 64
      %v3939 = vpop.permute.xlu0 %3938
      %3940 = vrot.lane.b32.xlu0 %v3859, 64
      %v3941 = vpop.permute.xlu0 %3940
      %3942 = vrot.lane.b32.xlu0 %v3860, 64
      %v3943 = vpop.permute.xlu0 %3942
      %3944 = vrot.lane.b32.xlu0 %v3861, 64
      %v3945 = vpop.permute.xlu0 %3944
      %3946 = vrot.lane.b32.xlu0 %v3862, 64
      %v3947 = vpop.permute.xlu0 %3946
      %3948 = vrot.lane.b32.xlu0 %v3863, 64
      %v3949 = vpop.permute.xlu0 %3948
      %3950 = vrot.lane.b32.xlu0 %v3864, 64
      %v3951 = vpop.permute.xlu0 %3950
      %3952 = vrot.lane.b32.xlu0 %v3865, 64
      %v3953 = vpop.permute.xlu0 %3952
      %3954 = vrot.lane.b32.xlu0 %v3866, 64
      %v3955 = vpop.permute.xlu0 %3954
      %3956 = vrot.lane.b32.xlu0 %v3867, 64
      %v3957 = vpop.permute.xlu0 %3956
      %3958 = vrot.lane.b32.xlu0 %v3868, 64
      %v3959 = vpop.permute.xlu0 %3958
      %3960 = vrot.lane.b32.xlu0 %v3869, 64
      %v3961 = vpop.permute.xlu0 %3960
      %3962 = vrot.lane.b32.xlu0 %v3870, 64
      %v3963 = vpop.permute.xlu0 %3962
      %3964 = vrot.lane.b32.xlu0 %v3871, 64
      %v3965 = vpop.permute.xlu0 %3964
      %3966 = vrot.lane.b32.xlu0 %v3872, 64
      %v3967 = vpop.permute.xlu0 %3966
      %3968 = vrot.lane.b32.xlu0 %v3873, 64
      %v3969 = vpop.permute.xlu0 %3968
      %vm4002 = vcmask 589312
      %4003 = vst.msk [vmem:[#allocation5] sm:$0xff] %vm4002, %v3907
      %4004 = vst.msk [vmem:[#allocation5 + $0x8] sm:$0xff] %vm4002, %v3909
      %4005 = vst.msk [vmem:[#allocation5 + $0x10] sm:$0xff] %vm4002, %v3911
      %4006 = vst.msk [vmem:[#allocation5 + $0x18] sm:$0xff] %vm4002, %v3913
      %4007 = vst.msk [vmem:[#allocation5 + $0x20] sm:$0xff] %vm4002, %v3915
      %4008 = vst.msk [vmem:[#allocation5 + $0x28] sm:$0xff] %vm4002, %v3917
      %4009 = vst.msk [vmem:[#allocation5 + $0x30] sm:$0xff] %vm4002, %v3919
      %4010 = vst.msk [vmem:[#allocation5 + $0x38] sm:$0xff] %vm4002, %v3921
      %4011 = vst.msk [vmem:[#allocation5 + $0x40] sm:$0xff] %vm4002, %v3923
      %4012 = vst.msk [vmem:[#allocation5 + $0x48] sm:$0xff] %vm4002, %v3925
      %4013 = vst.msk [vmem:[#allocation5 + $0x50] sm:$0xff] %vm4002, %v3927
      %4014 = vst.msk [vmem:[#allocation5 + $0x58] sm:$0xff] %vm4002, %v3929
      %4015 = vst.msk [vmem:[#allocation5 + $0x60] sm:$0xff] %vm4002, %v3931
      %4016 = vst.msk [vmem:[#allocation5 + $0x68] sm:$0xff] %vm4002, %v3933
      %4017 = vst.msk [vmem:[#allocation5 + $0x70] sm:$0xff] %vm4002, %v3935
      %4018 = vst.msk [vmem:[#allocation5 + $0x78] sm:$0xff] %vm4002, %v3937
      %4019 = vst.msk [vmem:[#allocation5 + $0x80] sm:$0xff] %vm4002, %v3939
      %4020 = vst.msk [vmem:[#allocation5 + $0x88] sm:$0xff] %vm4002, %v3941
      %4021 = vst.msk [vmem:[#allocation5 + $0x90] sm:$0xff] %vm4002, %v3943
      %4022 = vst.msk [vmem:[#allocation5 + $0x98] sm:$0xff] %vm4002, %v3945
      %4023 = vst.msk [vmem:[#allocation5 + $0xa0] sm:$0xff] %vm4002, %v3947
      %4024 = vst.msk [vmem:[#allocation5 + $0xa8] sm:$0xff] %vm4002, %v3949
      %4025 = vst.msk [vmem:[#allocation5 + $0xb0] sm:$0xff] %vm4002, %v3951
      %4026 = vst.msk [vmem:[#allocation5 + $0xb8] sm:$0xff] %vm4002, %v3953
      %4027 = vst.msk [vmem:[#allocation5 + $0xc0] sm:$0xff] %vm4002, %v3955
      %4028 = vst.msk [vmem:[#allocation5 + $0xc8] sm:$0xff] %vm4002, %v3957
      %4029 = vst.msk [vmem:[#allocation5 + $0xd0] sm:$0xff] %vm4002, %v3959
      %4030 = vst.msk [vmem:[#allocation5 + $0xd8] sm:$0xff] %vm4002, %v3961
      %4031 = vst.msk [vmem:[#allocation5 + $0xe0] sm:$0xff] %vm4002, %v3963
      %4032 = vst.msk [vmem:[#allocation5 + $0xe8] sm:$0xff] %vm4002, %v3965
      %4033 = vst.msk [vmem:[#allocation5 + $0xf0] sm:$0xff] %vm4002, %v3967
      %4034 = vst.msk [vmem:[#allocation5 + $0xf8] sm:$0xff] %vm4002, %v3969
      %v4035 = vld [vmem:[%s349 + $0x1] sm:$0xff]
      %v4036 = vld [vmem:[%s349 + $0x9] sm:$0xff]
      %v4037 = vld [vmem:[%s349 + $0x19] sm:$0xff]
      %v4038 = vld [vmem:[%s349 + $0x21] sm:$0xff]
      %v4039 = vld [vmem:[%s349 + $0x31] sm:$0xff]
      %v4040 = vld [vmem:[%s349 + $0x39] sm:$0xff]
      %v4041 = vld [vmem:[%s349 + $0x49] sm:$0xff]
      %v4042 = vld [vmem:[%s349 + $0x51] sm:$0xff]
      %v4043 = vld [vmem:[%s349 + $0x61] sm:$0xff]
      %v4044 = vld [vmem:[%s349 + $0x69] sm:$0xff]
      %v4045 = vld [vmem:[%s349 + $0x79] sm:$0xff]
      %v4046 = vld [vmem:[%s349 + $0x81] sm:$0xff]
      %v4047 = vld [vmem:[%s349 + $0x91] sm:$0xff]
      %v4048 = vld [vmem:[%s349 + $0x99] sm:$0xff]
      %v4049 = vld [vmem:[%s349 + $0xa9] sm:$0xff]
      %v4050 = vld [vmem:[%s349 + $0xb1] sm:$0xff]
      %v4051 = vld [vmem:[%s349 + $0xc1] sm:$0xff]
      %v4052 = vld [vmem:[%s349 + $0xc9] sm:$0xff]
      %v4053 = vld [vmem:[%s349 + $0xd9] sm:$0xff]
      %v4054 = vld [vmem:[%s349 + $0xe1] sm:$0xff]
      %v4055 = vld [vmem:[%s349 + $0xf1] sm:$0xff]
      %v4056 = vld [vmem:[%s349 + $0xf9] sm:$0xff]
      %v4057 = vld [vmem:[%s349 + $0x109] sm:$0xff]
      %v4058 = vld [vmem:[%s349 + $0x111] sm:$0xff]
      %v4059 = vld [vmem:[%s349 + $0x121] sm:$0xff]
      %v4060 = vld [vmem:[%s349 + $0x129] sm:$0xff]
      %v4061 = vld [vmem:[%s349 + $0x139] sm:$0xff]
      %v4062 = vld [vmem:[%s349 + $0x141] sm:$0xff]
      %v4063 = vld [vmem:[%s349 + $0x151] sm:$0xff]
      %v4064 = vld [vmem:[%s349 + $0x159] sm:$0xff]
      %v4065 = vld [vmem:[%s349 + $0x169] sm:$0xff]
      %v4066 = vld [vmem:[%s349 + $0x171] sm:$0xff]
      %4099 = vrot.lane.b32.xlu0 %v4035, 72
      %v4100 = vpop.permute.xlu0 %4099
      %4101 = vrot.lane.b32.xlu0 %v4036, 72
      %v4102 = vpop.permute.xlu0 %4101
      %4103 = vrot.lane.b32.xlu0 %v4037, 72
      %v4104 = vpop.permute.xlu0 %4103
      %4105 = vrot.lane.b32.xlu0 %v4038, 72
      %v4106 = vpop.permute.xlu0 %4105
      %4107 = vrot.lane.b32.xlu0 %v4039, 72
      %v4108 = vpop.permute.xlu0 %4107
      %4109 = vrot.lane.b32.xlu0 %v4040, 72
      %v4110 = vpop.permute.xlu0 %4109
      %4111 = vrot.lane.b32.xlu0 %v4041, 72
      %v4112 = vpop.permute.xlu0 %4111
      %4113 = vrot.lane.b32.xlu0 %v4042, 72
      %v4114 = vpop.permute.xlu0 %4113
      %4115 = vrot.lane.b32.xlu0 %v4043, 72
      %v4116 = vpop.permute.xlu0 %4115
      %4117 = vrot.lane.b32.xlu0 %v4044, 72
      %v4118 = vpop.permute.xlu0 %4117
      %4119 = vrot.lane.b32.xlu0 %v4045, 72
      %v4120 = vpop.permute.xlu0 %4119
      %4121 = vrot.lane.b32.xlu0 %v4046, 72
      %v4122 = vpop.permute.xlu0 %4121
      %4123 = vrot.lane.b32.xlu0 %v4047, 72
      %v4124 = vpop.permute.xlu0 %4123
      %4125 = vrot.lane.b32.xlu0 %v4048, 72
      %v4126 = vpop.permute.xlu0 %4125
      %4127 = vrot.lane.b32.xlu0 %v4049, 72
      %v4128 = vpop.permute.xlu0 %4127
      %4129 = vrot.lane.b32.xlu0 %v4050, 72
      %v4130 = vpop.permute.xlu0 %4129
      %4131 = vrot.lane.b32.xlu0 %v4051, 72
      %v4132 = vpop.permute.xlu0 %4131
      %4133 = vrot.lane.b32.xlu0 %v4052, 72
      %v4134 = vpop.permute.xlu0 %4133
      %4135 = vrot.lane.b32.xlu0 %v4053, 72
      %v4136 = vpop.permute.xlu0 %4135
      %4137 = vrot.lane.b32.xlu0 %v4054, 72
      %v4138 = vpop.permute.xlu0 %4137
      %4139 = vrot.lane.b32.xlu0 %v4055, 72
      %v4140 = vpop.permute.xlu0 %4139
      %4141 = vrot.lane.b32.xlu0 %v4056, 72
      %v4142 = vpop.permute.xlu0 %4141
      %4143 = vrot.lane.b32.xlu0 %v4057, 72
      %v4144 = vpop.permute.xlu0 %4143
      %4145 = vrot.lane.b32.xlu0 %v4058, 72
      %v4146 = vpop.permute.xlu0 %4145
      %4147 = vrot.lane.b32.xlu0 %v4059, 72
      %v4148 = vpop.permute.xlu0 %4147
      %4149 = vrot.lane.b32.xlu0 %v4060, 72
      %v4150 = vpop.permute.xlu0 %4149
      %4151 = vrot.lane.b32.xlu0 %v4061, 72
      %v4152 = vpop.permute.xlu0 %4151
      %4153 = vrot.lane.b32.xlu0 %v4062, 72
      %v4154 = vpop.permute.xlu0 %4153
      %4155 = vrot.lane.b32.xlu0 %v4063, 72
      %v4156 = vpop.permute.xlu0 %4155
      %4157 = vrot.lane.b32.xlu0 %v4064, 72
      %v4158 = vpop.permute.xlu0 %4157
      %4159 = vrot.lane.b32.xlu0 %v4065, 72
      %v4160 = vpop.permute.xlu0 %4159
      %4161 = vrot.lane.b32.xlu0 %v4066, 72
      %v4162 = vpop.permute.xlu0 %4161
      %vm4195 = vcmask 622144
      %4196 = vst.msk [vmem:[#allocation5] sm:$0xff] %vm4195, %v4100
      %4197 = vst.msk [vmem:[#allocation5 + $0x8] sm:$0xff] %vm4195, %v4102
      %4198 = vst.msk [vmem:[#allocation5 + $0x10] sm:$0xff] %vm4195, %v4104
      %4199 = vst.msk [vmem:[#allocation5 + $0x18] sm:$0xff] %vm4195, %v4106
      %4200 = vst.msk [vmem:[#allocation5 + $0x20] sm:$0xff] %vm4195, %v4108
      %4201 = vst.msk [vmem:[#allocation5 + $0x28] sm:$0xff] %vm4195, %v4110
      %4202 = vst.msk [vmem:[#allocation5 + $0x30] sm:$0xff] %vm4195, %v4112
      %4203 = vst.msk [vmem:[#allocation5 + $0x38] sm:$0xff] %vm4195, %v4114
      %4204 = vst.msk [vmem:[#allocation5 + $0x40] sm:$0xff] %vm4195, %v4116
      %4205 = vst.msk [vmem:[#allocation5 + $0x48] sm:$0xff] %vm4195, %v4118
      %4206 = vst.msk [vmem:[#allocation5 + $0x50] sm:$0xff] %vm4195, %v4120
      %4207 = vst.msk [vmem:[#allocation5 + $0x58] sm:$0xff] %vm4195, %v4122
      %4208 = vst.msk [vmem:[#allocation5 + $0x60] sm:$0xff] %vm4195, %v4124
      %4209 = vst.msk [vmem:[#allocation5 + $0x68] sm:$0xff] %vm4195, %v4126
      %4210 = vst.msk [vmem:[#allocation5 + $0x70] sm:$0xff] %vm4195, %v4128
      %4211 = vst.msk [vmem:[#allocation5 + $0x78] sm:$0xff] %vm4195, %v4130
      %4212 = vst.msk [vmem:[#allocation5 + $0x80] sm:$0xff] %vm4195, %v4132
      %4213 = vst.msk [vmem:[#allocation5 + $0x88] sm:$0xff] %vm4195, %v4134
      %4214 = vst.msk [vmem:[#allocation5 + $0x90] sm:$0xff] %vm4195, %v4136
      %4215 = vst.msk [vmem:[#allocation5 + $0x98] sm:$0xff] %vm4195, %v4138
      %4216 = vst.msk [vmem:[#allocation5 + $0xa0] sm:$0xff] %vm4195, %v4140
      %4217 = vst.msk [vmem:[#allocation5 + $0xa8] sm:$0xff] %vm4195, %v4142
      %4218 = vst.msk [vmem:[#allocation5 + $0xb0] sm:$0xff] %vm4195, %v4144
      %4219 = vst.msk [vmem:[#allocation5 + $0xb8] sm:$0xff] %vm4195, %v4146
      %4220 = vst.msk [vmem:[#allocation5 + $0xc0] sm:$0xff] %vm4195, %v4148
      %4221 = vst.msk [vmem:[#allocation5 + $0xc8] sm:$0xff] %vm4195, %v4150
      %4222 = vst.msk [vmem:[#allocation5 + $0xd0] sm:$0xff] %vm4195, %v4152
      %4223 = vst.msk [vmem:[#allocation5 + $0xd8] sm:$0xff] %vm4195, %v4154
      %4224 = vst.msk [vmem:[#allocation5 + $0xe0] sm:$0xff] %vm4195, %v4156
      %4225 = vst.msk [vmem:[#allocation5 + $0xe8] sm:$0xff] %vm4195, %v4158
      %4226 = vst.msk [vmem:[#allocation5 + $0xf0] sm:$0xff] %vm4195, %v4160
      %4227 = vst.msk [vmem:[#allocation5 + $0xf8] sm:$0xff] %vm4195, %v4162
      %v4228 = vld [vmem:[#allocation5] sm:$0xff]
      %v4229 = vld [vmem:[#allocation5 + $0x8] sm:$0xff]
      %v4230 = vld [vmem:[#allocation5 + $0x10] sm:$0xff]
      %v4231 = vld [vmem:[#allocation5 + $0x18] sm:$0xff]
      %v4232 = vld [vmem:[#allocation5 + $0x20] sm:$0xff]
      %v4233 = vld [vmem:[#allocation5 + $0x28] sm:$0xff]
      %v4234 = vld [vmem:[#allocation5 + $0x30] sm:$0xff]
      %v4235 = vld [vmem:[#allocation5 + $0x38] sm:$0xff]
      %v4236 = vld [vmem:[#allocation5 + $0x40] sm:$0xff]
      %v4237 = vld [vmem:[#allocation5 + $0x48] sm:$0xff]
      %v4238 = vld [vmem:[#allocation5 + $0x50] sm:$0xff]
      %v4239 = vld [vmem:[#allocation5 + $0x58] sm:$0xff]
      %v4240 = vld [vmem:[#allocation5 + $0x60] sm:$0xff]
      %v4241 = vld [vmem:[#allocation5 + $0x68] sm:$0xff]
      %v4242 = vld [vmem:[#allocation5 + $0x70] sm:$0xff]
      %v4243 = vld [vmem:[#allocation5 + $0x78] sm:$0xff]
      %v4244 = vld [vmem:[#allocation5 + $0x80] sm:$0xff]
      %v4245 = vld [vmem:[#allocation5 + $0x88] sm:$0xff]
      %v4246 = vld [vmem:[#allocation5 + $0x90] sm:$0xff]
      %v4247 = vld [vmem:[#allocation5 + $0x98] sm:$0xff]
      %v4248 = vld [vmem:[#allocation5 + $0xa0] sm:$0xff]
      %v4249 = vld [vmem:[#allocation5 + $0xa8] sm:$0xff]
      %v4250 = vld [vmem:[#allocation5 + $0xb0] sm:$0xff]
      %v4251 = vld [vmem:[#allocation5 + $0xb8] sm:$0xff]
      %v4252 = vld [vmem:[#allocation5 + $0xc0] sm:$0xff]
      %v4253 = vld [vmem:[#allocation5 + $0xc8] sm:$0xff]
      %v4254 = vld [vmem:[#allocation5 + $0xd0] sm:$0xff]
      %v4255 = vld [vmem:[#allocation5 + $0xd8] sm:$0xff]
      %v4256 = vld [vmem:[#allocation5 + $0xe0] sm:$0xff]
      %v4257 = vld [vmem:[#allocation5 + $0xe8] sm:$0xff]
      %v4258 = vld [vmem:[#allocation5 + $0xf0] sm:$0xff]
      %v4259 = vld [vmem:[#allocation5 + $0xf8] sm:$0xff]
      %v4260 = vld [vmem:[%s3] sm:$0xff]
      %v4261 = vld [vmem:[%s3 + $0x8] sm:$0xff]
      %v4262 = vld [vmem:[%s3 + $0x10] sm:$0xff]
      %v4263 = vld [vmem:[%s3 + $0x18] sm:$0xff]
      %v4264 = vld [vmem:[%s3 + $0x20] sm:$0xff]
      %v4265 = vld [vmem:[%s3 + $0x28] sm:$0xff]
      %v4266 = vld [vmem:[%s3 + $0x30] sm:$0xff]
      %v4267 = vld [vmem:[%s3 + $0x38] sm:$0xff]
      %v4268 = vld [vmem:[%s3 + $0x40] sm:$0xff]
      %v4269 = vld [vmem:[%s3 + $0x48] sm:$0xf]
      %v4270 = vld [vmem:[%s4] sm:$0x1]
      %v4272 = vlaneseq
      %v4273 = vshrl.u32 %v4272, 7
      %v4274 = vsub.s32 0, %v4273
      %v4275 = vrot.slane %v4270, %v4274
      %vm4277 = vcmask 621568
      %v4279 = vsel %vm4277, %v4228, 0
      %v4282 = vsel %vm4277, %v4229, 0
      %v4285 = vsel %vm4277, %v4230, 0
      %v4288 = vsel %vm4277, %v4231, 0
      %v4291 = vsel %vm4277, %v4232, 0
      %v4294 = vsel %vm4277, %v4233, 0
      %v4297 = vsel %vm4277, %v4234, 0
      %v4300 = vsel %vm4277, %v4235, 0
      %v4303 = vsel %vm4277, %v4236, 0
      %v4306 = vsel %vm4277, %v4237, 0
      %v4309 = vsel %vm4277, %v4238, 0
      %v4312 = vsel %vm4277, %v4239, 0
      %v4315 = vsel %vm4277, %v4240, 0
      %v4318 = vsel %vm4277, %v4241, 0
      %v4321 = vsel %vm4277, %v4242, 0
      %v4324 = vsel %vm4277, %v4243, 0
      %v4327 = vsel %vm4277, %v4244, 0
      %v4330 = vsel %vm4277, %v4245, 0
      %v4333 = vsel %vm4277, %v4246, 0
      %v4336 = vsel %vm4277, %v4247, 0
      %v4339 = vsel %vm4277, %v4248, 0
      %v4342 = vsel %vm4277, %v4249, 0
      %v4345 = vsel %vm4277, %v4250, 0
      %v4348 = vsel %vm4277, %v4251, 0
      %v4351 = vsel %vm4277, %v4252, 0
      %v4354 = vsel %vm4277, %v4253, 0
      %v4357 = vsel %vm4277, %v4254, 0
      %v4360 = vsel %vm4277, %v4255, 0
      %v4363 = vsel %vm4277, %v4256, 0
      %v4366 = vsel %vm4277, %v4257, 0
      %v4369 = vsel %vm4277, %v4258, 0
      %v4372 = vsel %vm4277, %v4259, 0
      %v4375 = vsel %vm2132, %v4269, 0
      %4377 = vmatprep.subr.mxu0 0.0
      %4378 = vmatpush1.msra.mxu0 0.0
      %4379 = vmatprep.subr.mxu0 0.0
      %4380 = vmatpush1.msra.mxu0 0.0
      %4381 = vmatprep.subr.mxu0 0.0
      %4382 = vmatpush1.msra.mxu0 0.0
      %4383 = vmatprep.subr.mxu0 0.0
      %4384 = vmatpush1.msra.mxu0 0.0
      %4385 = vmatprep.subr.mxu0 0.0
      %4386 = vmatpush1.msra.mxu0 0.0
      %4387 = vmatprep.subr.mxu0 0.0
      %4388 = vmatpush1.msra.mxu0 0.0
      %4389 = vmatprep.subr.mxu0 0.0
      %4390 = vmatpush1.msra.mxu0 %v4375
      %4391 = vmatprep.subr.mxu0 0.0
      %4392 = vmatpush1.msra.mxu0 %v4268
      %4393 = vmatprep.subr.mxu0 0.0
      %4394 = vmatpush1.msra.mxu0 %v4267
      %4395 = vmatprep.subr.mxu0 0.0
      %4396 = vmatpush1.msra.mxu0 %v4266
      %4397 = vmatprep.subr.mxu0 0.0
      %4398 = vmatpush1.msra.mxu0 %v4265
      %4399 = vmatprep.subr.mxu0 0.0
      %4400 = vmatpush1.msra.mxu0 %v4264
      %4401 = vmatprep.subr.mxu0 0.0
      %4402 = vmatpush1.msra.mxu0 %v4263
      %4403 = vmatprep.subr.mxu0 0.0
      %4404 = vmatpush1.msra.mxu0 %v4262
      %4405 = vmatprep.subr.mxu0 0.0
      %4406 = vmatpush1.msra.mxu0 %v4261
      %4407 = vmatprep.subr.mxu0 0.0
      %4408 = vmatpush1.msra.mxu0 %v4260
      %4409 = vmatprep.subr.mxu0 0.0
      %4410 = vmatpush2.msra.mxu0 0.0
      %4411 = vmatprep.subr.mxu0 0.0
      %4412 = vmatpush2.msra.mxu0 0.0
      %4413 = vmatprep.subr.mxu0 0.0
      %4414 = vmatpush2.msra.mxu0 0.0
      %4415 = vmatprep.subr.mxu0 0.0
      %4416 = vmatpush2.msra.mxu0 0.0
      %4417 = vmatprep.subr.mxu0 0.0
      %4418 = vmatpush2.msra.mxu0 0.0
      %4419 = vmatprep.subr.mxu0 0.0
      %4420 = vmatpush2.msra.mxu0 0.0
      %4421 = vmatprep.subr.mxu0 0.0
      %4422 = vmatpush2.msra.mxu0 0.0
      %4423 = vmatprep.subr.mxu0 0.0
      %4424 = vmatpush2.msra.mxu0 0.0
      %4425 = vmatprep.subr.mxu0 0.0
      %4426 = vmatpush2.msra.mxu0 0.0
      %4427 = vmatprep.subr.mxu0 0.0
      %4428 = vmatpush2.msra.mxu0 0.0
      %4429 = vmatprep.subr.mxu0 0.0
      %4430 = vmatpush2.msra.mxu0 0.0
      %4431 = vmatprep.subr.mxu0 0.0
      %4432 = vmatpush2.msra.mxu0 0.0
      %4433 = vmatprep.subr.mxu0 0.0
      %4434 = vmatpush2.msra.mxu0 0.0
      %4435 = vmatprep.subr.mxu0 0.0
      %4436 = vmatpush2.msra.mxu0 0.0
      %4437 = vmatprep.subr.mxu0 0.0
      %4438 = vmatpush2.msra.mxu0 0.0
      %4439 = vmatprep.subr.mxu0 0.0
      %4440 = vmatpush2.msra.mxu0 0.0
      %4441 = vmatprep.mubr.f32.mxu0 0.0
      %4442 = vmatmul.mubr.f32.gmra.mxu0 %v4279
      %v4443 = vpop.f32.mrf.mxu0
      %v4444 = vadd.f32 %v4275, %v4443
      %v4445 = vpop.f32.mrf.mxu0
      %4446 = vmatprep.mubr.f32.mxu0 0.0
      %4447 = vmatmul.mubr.f32.gmra.mxu0 %v4282
      %v4448 = vpop.f32.mrf.mxu0
      %v4449 = vadd.f32 %v4275, %v4448
      %v4450 = vpop.f32.mrf.mxu0
      %4451 = vmatprep.mubr.f32.mxu0 0.0
      %4452 = vmatmul.mubr.f32.gmra.mxu0 %v4285
      %v4453 = vpop.f32.mrf.mxu0
      %v4454 = vadd.f32 %v4275, %v4453
      %v4455 = vpop.f32.mrf.mxu0
      %4456 = vmatprep.mubr.f32.mxu0 0.0
      %4457 = vmatmul.mubr.f32.gmra.mxu0 %v4288
      %v4458 = vpop.f32.mrf.mxu0
      %v4459 = vadd.f32 %v4275, %v4458
      %v4460 = vpop.f32.mrf.mxu0
      %4461 = vmatprep.mubr.f32.mxu0 0.0
      %4462 = vmatmul.mubr.f32.gmra.mxu0 %v4291
      %v4463 = vpop.f32.mrf.mxu0
      %v4464 = vadd.f32 %v4275, %v4463
      %v4465 = vpop.f32.mrf.mxu0
      %4466 = vmatprep.mubr.f32.mxu0 0.0
      %4467 = vmatmul.mubr.f32.gmra.mxu0 %v4294
      %v4468 = vpop.f32.mrf.mxu0
      %v4469 = vadd.f32 %v4275, %v4468
      %v4470 = vpop.f32.mrf.mxu0
      %4471 = vmatprep.mubr.f32.mxu0 0.0
      %4472 = vmatmul.mubr.f32.gmra.mxu0 %v4297
      %v4473 = vpop.f32.mrf.mxu0
      %v4474 = vadd.f32 %v4275, %v4473
      %v4475 = vpop.f32.mrf.mxu0
      %4476 = vmatprep.mubr.f32.mxu0 0.0
      %4477 = vmatmul.mubr.f32.gmra.mxu0 %v4300
      %v4478 = vpop.f32.mrf.mxu0
      %v4479 = vadd.f32 %v4275, %v4478
      %v4480 = vpop.f32.mrf.mxu0
      %4481 = vmatprep.mubr.f32.mxu0 0.0
      %4482 = vmatmul.mubr.f32.gmra.mxu0 %v4303
      %v4483 = vpop.f32.mrf.mxu0
      %v4484 = vadd.f32 %v4275, %v4483
      %v4485 = vpop.f32.mrf.mxu0
      %4486 = vmatprep.mubr.f32.mxu0 0.0
      %4487 = vmatmul.mubr.f32.gmra.mxu0 %v4306
      %v4488 = vpop.f32.mrf.mxu0
      %v4489 = vadd.f32 %v4275, %v4488
      %v4490 = vpop.f32.mrf.mxu0
      %4491 = vmatprep.mubr.f32.mxu0 0.0
      %4492 = vmatmul.mubr.f32.gmra.mxu0 %v4309
      %v4493 = vpop.f32.mrf.mxu0
      %v4494 = vadd.f32 %v4275, %v4493
      %v4495 = vpop.f32.mrf.mxu0
      %4496 = vmatprep.mubr.f32.mxu0 0.0
      %4497 = vmatmul.mubr.f32.gmra.mxu0 %v4312
      %v4498 = vpop.f32.mrf.mxu0
      %v4499 = vadd.f32 %v4275, %v4498
      %v4500 = vpop.f32.mrf.mxu0
      %4501 = vmatprep.mubr.f32.mxu0 0.0
      %4502 = vmatmul.mubr.f32.gmra.mxu0 %v4315
      %v4503 = vpop.f32.mrf.mxu0
      %v4504 = vadd.f32 %v4275, %v4503
      %v4505 = vpop.f32.mrf.mxu0
      %4506 = vmatprep.mubr.f32.mxu0 0.0
      %4507 = vmatmul.mubr.f32.gmra.mxu0 %v4318
      %v4508 = vpop.f32.mrf.mxu0
      %v4509 = vadd.f32 %v4275, %v4508
      %v4510 = vpop.f32.mrf.mxu0
      %4511 = vmatprep.mubr.f32.mxu0 0.0
      %4512 = vmatmul.mubr.f32.gmra.mxu0 %v4321
      %v4513 = vpop.f32.mrf.mxu0
      %v4514 = vadd.f32 %v4275, %v4513
      %v4515 = vpop.f32.mrf.mxu0
      %4516 = vmatprep.mubr.f32.mxu0 0.0
      %4517 = vmatmul.mubr.f32.gmra.mxu0 %v4324
      %v4518 = vpop.f32.mrf.mxu0
      %v4519 = vadd.f32 %v4275, %v4518
      %v4520 = vpop.f32.mrf.mxu0
      %4521 = vmatprep.mubr.f32.mxu0 0.0
      %4522 = vmatmul.mubr.f32.gmra.mxu0 %v4327
      %v4523 = vpop.f32.mrf.mxu0
      %v4524 = vadd.f32 %v4275, %v4523
      %v4525 = vpop.f32.mrf.mxu0
      %4526 = vmatprep.mubr.f32.mxu0 0.0
      %4527 = vmatmul.mubr.f32.gmra.mxu0 %v4330
      %v4528 = vpop.f32.mrf.mxu0
      %v4529 = vadd.f32 %v4275, %v4528
      %v4530 = vpop.f32.mrf.mxu0
      %4531 = vmatprep.mubr.f32.mxu0 0.0
      %4532 = vmatmul.mubr.f32.gmra.mxu0 %v4333
      %v4533 = vpop.f32.mrf.mxu0
      %v4534 = vadd.f32 %v4275, %v4533
      %v4535 = vpop.f32.mrf.mxu0
      %4536 = vmatprep.mubr.f32.mxu0 0.0
      %4537 = vmatmul.mubr.f32.gmra.mxu0 %v4336
      %v4538 = vpop.f32.mrf.mxu0
      %v4539 = vadd.f32 %v4275, %v4538
      %v4540 = vpop.f32.mrf.mxu0
      %4541 = vmatprep.mubr.f32.mxu0 0.0
      %4542 = vmatmul.mubr.f32.gmra.mxu0 %v4339
      %v4543 = vpop.f32.mrf.mxu0
      %v4544 = vadd.f32 %v4275, %v4543
      %v4545 = vpop.f32.mrf.mxu0
      %4546 = vmatprep.mubr.f32.mxu0 0.0
      %4547 = vmatmul.mubr.f32.gmra.mxu0 %v4342
      %v4548 = vpop.f32.mrf.mxu0
      %v4549 = vadd.f32 %v4275, %v4548
      %v4550 = vpop.f32.mrf.mxu0
      %4551 = vmatprep.mubr.f32.mxu0 0.0
      %4552 = vmatmul.mubr.f32.gmra.mxu0 %v4345
      %v4553 = vpop.f32.mrf.mxu0
      %v4554 = vadd.f32 %v4275, %v4553
      %v4555 = vpop.f32.mrf.mxu0
      %4556 = vmatprep.mubr.f32.mxu0 0.0
      %4557 = vmatmul.mubr.f32.gmra.mxu0 %v4348
      %v4558 = vpop.f32.mrf.mxu0
      %v4559 = vadd.f32 %v4275, %v4558
      %v4560 = vpop.f32.mrf.mxu0
      %4561 = vmatprep.mubr.f32.mxu0 0.0
      %4562 = vmatmul.mubr.f32.gmra.mxu0 %v4351
      %v4563 = vpop.f32.mrf.mxu0
      %v4564 = vadd.f32 %v4275, %v4563
      %v4565 = vpop.f32.mrf.mxu0
      %4566 = vmatprep.mubr.f32.mxu0 0.0
      %4567 = vmatmul.mubr.f32.gmra.mxu0 %v4354
      %v4568 = vpop.f32.mrf.mxu0
      %v4569 = vadd.f32 %v4275, %v4568
      %v4570 = vpop.f32.mrf.mxu0
      %4571 = vmatprep.mubr.f32.mxu0 0.0
      %4572 = vmatmul.mubr.f32.gmra.mxu0 %v4357
      %v4573 = vpop.f32.mrf.mxu0
      %v4574 = vadd.f32 %v4275, %v4573
      %v4575 = vpop.f32.mrf.mxu0
      %4576 = vmatprep.mubr.f32.mxu0 0.0
      %4577 = vmatmul.mubr.f32.gmra.mxu0 %v4360
      %v4578 = vpop.f32.mrf.mxu0
      %v4579 = vadd.f32 %v4275, %v4578
      %v4580 = vpop.f32.mrf.mxu0
      %4581 = vmatprep.mubr.f32.mxu0 0.0
      %4582 = vmatmul.mubr.f32.gmra.mxu0 %v4363
      %v4583 = vpop.f32.mrf.mxu0
      %v4584 = vadd.f32 %v4275, %v4583
      %v4585 = vpop.f32.mrf.mxu0
      %4586 = vmatprep.mubr.f32.mxu0 0.0
      %4587 = vmatmul.mubr.f32.gmra.mxu0 %v4366
      %v4588 = vpop.f32.mrf.mxu0
      %v4589 = vadd.f32 %v4275, %v4588
      %v4590 = vpop.f32.mrf.mxu0
      %4591 = vmatprep.mubr.f32.mxu0 0.0
      %4592 = vmatmul.mubr.f32.gmra.mxu0 %v4369
      %v4593 = vpop.f32.mrf.mxu0
      %v4594 = vadd.f32 %v4275, %v4593
      %v4595 = vpop.f32.mrf.mxu0
      %4596 = vmatprep.mubr.f32.mxu0 0.0
      %4597 = vmatmul.mubr.f32.gmra.mxu0 %v4372
      %v4598 = vpop.f32.mrf.mxu0
      %v4599 = vadd.f32 %v4275, %v4598
      %v4600 = vpop.f32.mrf.mxu0
      %4601 = vdwg.mxu0
      %v4602 = vmax.f32 %v4444, 0.0
      %v4603 = vmax.f32 %v4449, 0.0
      %v4604 = vmax.f32 %v4454, 0.0
      %v4605 = vmax.f32 %v4459, 0.0
      %v4606 = vmax.f32 %v4464, 0.0
      %v4607 = vmax.f32 %v4469, 0.0
      %v4608 = vmax.f32 %v4474, 0.0
      %v4609 = vmax.f32 %v4479, 0.0
      %v4610 = vmax.f32 %v4484, 0.0
      %v4611 = vmax.f32 %v4489, 0.0
      %v4612 = vmax.f32 %v4494, 0.0
      %v4613 = vmax.f32 %v4499, 0.0
      %v4614 = vmax.f32 %v4504, 0.0
      %v4615 = vmax.f32 %v4509, 0.0
      %v4616 = vmax.f32 %v4514, 0.0
      %v4617 = vmax.f32 %v4519, 0.0
      %v4618 = vmax.f32 %v4524, 0.0
      %v4619 = vmax.f32 %v4529, 0.0
      %v4620 = vmax.f32 %v4534, 0.0
      %v4621 = vmax.f32 %v4539, 0.0
      %v4622 = vmax.f32 %v4544, 0.0
      %v4623 = vmax.f32 %v4549, 0.0
      %v4624 = vmax.f32 %v4554, 0.0
      %v4625 = vmax.f32 %v4559, 0.0
      %v4626 = vmax.f32 %v4564, 0.0
      %v4627 = vmax.f32 %v4569, 0.0
      %v4628 = vmax.f32 %v4574, 0.0
      %v4629 = vmax.f32 %v4579, 0.0
      %v4630 = vmax.f32 %v4584, 0.0
      %v4631 = vmax.f32 %v4589, 0.0
      %v4632 = vmax.f32 %v4594, 0.0
      %v4633 = vmax.f32 %v4599, 0.0
      %v4634 = vsel %vm271, %v4602, -inf
      %v4635 = vsel %vm271, %v4604, -inf
      %v4636 = vmax.f32 %v4634, %v4635
      %v4637 = vsel %vm271, %v4603, -inf
      %v4638 = vsel %vm271, %v4605, -inf
      %v4639 = vmax.f32 %v4637, %v4638
      %v4640 = vsel %vm271, %v4606, -inf
      %v4641 = vsel %vm271, %v4608, -inf
      %v4642 = vmax.f32 %v4640, %v4641
      %v4643 = vsel %vm271, %v4607, -inf
      %v4644 = vsel %vm271, %v4609, -inf
      %v4645 = vmax.f32 %v4643, %v4644
      %v4646 = vsel %vm271, %v4610, -inf
      %v4647 = vsel %vm271, %v4612, -inf
      %v4648 = vmax.f32 %v4646, %v4647
      %v4649 = vsel %vm271, %v4611, -inf
      %v4650 = vsel %vm271, %v4613, -inf
      %v4651 = vmax.f32 %v4649, %v4650
      %v4652 = vsel %vm271, %v4614, -inf
      %v4653 = vsel %vm271, %v4616, -inf
      %v4654 = vmax.f32 %v4652, %v4653
      %v4655 = vsel %vm271, %v4615, -inf
      %v4656 = vsel %vm271, %v4617, -inf
      %v4657 = vmax.f32 %v4655, %v4656
      %v4658 = vsel %vm271, %v4618, -inf
      %v4659 = vsel %vm271, %v4620, -inf
      %v4660 = vmax.f32 %v4658, %v4659
      %v4661 = vsel %vm271, %v4619, -inf
      %v4662 = vsel %vm271, %v4621, -inf
      %v4663 = vmax.f32 %v4661, %v4662
      %v4664 = vsel %vm271, %v4622, -inf
      %v4665 = vsel %vm271, %v4624, -inf
      %v4666 = vmax.f32 %v4664, %v4665
      %v4667 = vsel %vm271, %v4623, -inf
      %v4668 = vsel %vm271, %v4625, -inf
      %v4669 = vmax.f32 %v4667, %v4668
      %v4670 = vsel %vm271, %v4626, -inf
      %v4671 = vsel %vm271, %v4628, -inf
      %v4672 = vmax.f32 %v4670, %v4671
      %v4673 = vsel %vm271, %v4627, -inf
      %v4674 = vsel %vm271, %v4629, -inf
      %v4675 = vmax.f32 %v4673, %v4674
      %v4676 = vsel %vm271, %v4630, -inf
      %v4677 = vsel %vm271, %v4632, -inf
      %v4678 = vmax.f32 %v4676, %v4677
      %v4679 = vsel %vm271, %v4631, -inf
      %v4680 = vsel %vm271, %v4633, -inf
      %v4681 = vmax.f32 %v4679, %v4680
      %v4698 = vcombine.high %v4636, %v4636
      %v4700 = vunpack.c.l.s4 1983009808
      %v4701 = vunpack.c.0.s8 %v4700
      %v4702 = vlaneseq
      %v4703 = vshrl.u32 %v4702, 7
      %v4704 = vsub.s32 %v4701, %v4703
      %v4705 = vrot.slane %v4636, %v4704
      %v4707 = vunpack.c.l.s4 1983009808
      %v4708 = vunpack.c.0.s8 %v4707
      %v4709 = vlaneseq
      %v4710 = vshrl.u32 %v4709, 7
      %v4711 = vsub.s32 %v4708, %v4710
      %v4712 = vrot.slane %v4698, %v4711
      %v4713 = vcombine.high %v4705, %v4705
      %v4714 = vcombine.high %v4712, %v4712
      %v4715 = vcombine.high %v4639, %v4639
      %v4717 = vunpack.c.l.s4 1983009808
      %v4718 = vunpack.c.0.s8 %v4717
      %v4719 = vlaneseq
      %v4720 = vshrl.u32 %v4719, 7
      %v4721 = vsub.s32 %v4718, %v4720
      %v4722 = vrot.slane %v4639, %v4721
      %v4724 = vunpack.c.l.s4 1983009808
      %v4725 = vunpack.c.0.s8 %v4724
      %v4726 = vlaneseq
      %v4727 = vshrl.u32 %v4726, 7
      %v4728 = vsub.s32 %v4725, %v4727
      %v4729 = vrot.slane %v4715, %v4728
      %v4730 = vcombine.high %v4722, %v4722
      %v4731 = vcombine.high %v4729, %v4729
      %v4732 = vcombine.high %v4642, %v4642
      %v4734 = vunpack.c.l.s4 1983009808
      %v4735 = vunpack.c.0.s8 %v4734
      %v4736 = vlaneseq
      %v4737 = vshrl.u32 %v4736, 7
      %v4738 = vsub.s32 %v4735, %v4737
      %v4739 = vrot.slane %v4642, %v4738
      %v4741 = vunpack.c.l.s4 1983009808
      %v4742 = vunpack.c.0.s8 %v4741
      %v4743 = vlaneseq
      %v4744 = vshrl.u32 %v4743, 7
      %v4745 = vsub.s32 %v4742, %v4744
      %v4746 = vrot.slane %v4732, %v4745
      %v4747 = vcombine.high %v4739, %v4739
      %v4748 = vcombine.high %v4746, %v4746
      %v4749 = vcombine.high %v4645, %v4645
      %v4751 = vunpack.c.l.s4 1983009808
      %v4752 = vunpack.c.0.s8 %v4751
      %v4753 = vlaneseq
      %v4754 = vshrl.u32 %v4753, 7
      %v4755 = vsub.s32 %v4752, %v4754
      %v4756 = vrot.slane %v4645, %v4755
      %v4758 = vunpack.c.l.s4 1983009808
      %v4759 = vunpack.c.0.s8 %v4758
      %v4760 = vlaneseq
      %v4761 = vshrl.u32 %v4760, 7
      %v4762 = vsub.s32 %v4759, %v4761
      %v4763 = vrot.slane %v4749, %v4762
      %v4764 = vcombine.high %v4756, %v4756
      %v4765 = vcombine.high %v4763, %v4763
      %v4766 = vcombine.high %v4648, %v4648
      %v4768 = vunpack.c.l.s4 1983009808
      %v4769 = vunpack.c.0.s8 %v4768
      %v4770 = vlaneseq
      %v4771 = vshrl.u32 %v4770, 7
      %v4772 = vsub.s32 %v4769, %v4771
      %v4773 = vrot.slane %v4648, %v4772
      %v4775 = vunpack.c.l.s4 1983009808
      %v4776 = vunpack.c.0.s8 %v4775
      %v4777 = vlaneseq
      %v4778 = vshrl.u32 %v4777, 7
      %v4779 = vsub.s32 %v4776, %v4778
      %v4780 = vrot.slane %v4766, %v4779
      %v4781 = vcombine.high %v4773, %v4773
      %v4782 = vcombine.high %v4780, %v4780
      %v4783 = vcombine.high %v4651, %v4651
      %v4785 = vunpack.c.l.s4 1983009808
      %v4786 = vunpack.c.0.s8 %v4785
      %v4787 = vlaneseq
      %v4788 = vshrl.u32 %v4787, 7
      %v4789 = vsub.s32 %v4786, %v4788
      %v4790 = vrot.slane %v4651, %v4789
      %v4792 = vunpack.c.l.s4 1983009808
      %v4793 = vunpack.c.0.s8 %v4792
      %v4794 = vlaneseq
      %v4795 = vshrl.u32 %v4794, 7
      %v4796 = vsub.s32 %v4793, %v4795
      %v4797 = vrot.slane %v4783, %v4796
      %v4798 = vcombine.high %v4790, %v4790
      %v4799 = vcombine.high %v4797, %v4797
      %v4800 = vcombine.high %v4654, %v4654
      %v4802 = vunpack.c.l.s4 1983009808
      %v4803 = vunpack.c.0.s8 %v4802
      %v4804 = vlaneseq
      %v4805 = vshrl.u32 %v4804, 7
      %v4806 = vsub.s32 %v4803, %v4805
      %v4807 = vrot.slane %v4654, %v4806
      %v4809 = vunpack.c.l.s4 1983009808
      %v4810 = vunpack.c.0.s8 %v4809
      %v4811 = vlaneseq
      %v4812 = vshrl.u32 %v4811, 7
      %v4813 = vsub.s32 %v4810, %v4812
      %v4814 = vrot.slane %v4800, %v4813
      %v4815 = vcombine.high %v4807, %v4807
      %v4816 = vcombine.high %v4814, %v4814
      %v4817 = vcombine.high %v4657, %v4657
      %v4819 = vunpack.c.l.s4 1983009808
      %v4820 = vunpack.c.0.s8 %v4819
      %v4821 = vlaneseq
      %v4822 = vshrl.u32 %v4821, 7
      %v4823 = vsub.s32 %v4820, %v4822
      %v4824 = vrot.slane %v4657, %v4823
      %v4826 = vunpack.c.l.s4 1983009808
      %v4827 = vunpack.c.0.s8 %v4826
      %v4828 = vlaneseq
      %v4829 = vshrl.u32 %v4828, 7
      %v4830 = vsub.s32 %v4827, %v4829
      %v4831 = vrot.slane %v4817, %v4830
      %v4832 = vcombine.high %v4824, %v4824
      %v4833 = vcombine.high %v4831, %v4831
      %v4834 = vcombine.high %v4660, %v4660
      %v4836 = vunpack.c.l.s4 1983009808
      %v4837 = vunpack.c.0.s8 %v4836
      %v4838 = vlaneseq
      %v4839 = vshrl.u32 %v4838, 7
      %v4840 = vsub.s32 %v4837, %v4839
      %v4841 = vrot.slane %v4660, %v4840
      %v4843 = vunpack.c.l.s4 1983009808
      %v4844 = vunpack.c.0.s8 %v4843
      %v4845 = vlaneseq
      %v4846 = vshrl.u32 %v4845, 7
      %v4847 = vsub.s32 %v4844, %v4846
      %v4848 = vrot.slane %v4834, %v4847
      %v4849 = vcombine.high %v4841, %v4841
      %v4850 = vcombine.high %v4848, %v4848
      %v4851 = vcombine.high %v4663, %v4663
      %v4853 = vunpack.c.l.s4 1983009808
      %v4854 = vunpack.c.0.s8 %v4853
      %v4855 = vlaneseq
      %v4856 = vshrl.u32 %v4855, 7
      %v4857 = vsub.s32 %v4854, %v4856
      %v4858 = vrot.slane %v4663, %v4857
      %v4860 = vunpack.c.l.s4 1983009808
      %v4861 = vunpack.c.0.s8 %v4860
      %v4862 = vlaneseq
      %v4863 = vshrl.u32 %v4862, 7
      %v4864 = vsub.s32 %v4861, %v4863
      %v4865 = vrot.slane %v4851, %v4864
      %v4866 = vcombine.high %v4858, %v4858
      %v4867 = vcombine.high %v4865, %v4865
      %v4868 = vcombine.high %v4666, %v4666
      %v4870 = vunpack.c.l.s4 1983009808
      %v4871 = vunpack.c.0.s8 %v4870
      %v4872 = vlaneseq
      %v4873 = vshrl.u32 %v4872, 7
      %v4874 = vsub.s32 %v4871, %v4873
      %v4875 = vrot.slane %v4666, %v4874
      %v4877 = vunpack.c.l.s4 1983009808
      %v4878 = vunpack.c.0.s8 %v4877
      %v4879 = vlaneseq
      %v4880 = vshrl.u32 %v4879, 7
      %v4881 = vsub.s32 %v4878, %v4880
      %v4882 = vrot.slane %v4868, %v4881
      %v4883 = vcombine.high %v4875, %v4875
      %v4884 = vcombine.high %v4882, %v4882
      %v4885 = vcombine.high %v4669, %v4669
      %v4887 = vunpack.c.l.s4 1983009808
      %v4888 = vunpack.c.0.s8 %v4887
      %v4889 = vlaneseq
      %v4890 = vshrl.u32 %v4889, 7
      %v4891 = vsub.s32 %v4888, %v4890
      %v4892 = vrot.slane %v4669, %v4891
      %v4894 = vunpack.c.l.s4 1983009808
      %v4895 = vunpack.c.0.s8 %v4894
      %v4896 = vlaneseq
      %v4897 = vshrl.u32 %v4896, 7
      %v4898 = vsub.s32 %v4895, %v4897
      %v4899 = vrot.slane %v4885, %v4898
      %v4900 = vcombine.high %v4892, %v4892
      %v4901 = vcombine.high %v4899, %v4899
      %v4902 = vcombine.high %v4672, %v4672
      %v4904 = vunpack.c.l.s4 1983009808
      %v4905 = vunpack.c.0.s8 %v4904
      %v4906 = vlaneseq
      %v4907 = vshrl.u32 %v4906, 7
      %v4908 = vsub.s32 %v4905, %v4907
      %v4909 = vrot.slane %v4672, %v4908
      %v4911 = vunpack.c.l.s4 1983009808
      %v4912 = vunpack.c.0.s8 %v4911
      %v4913 = vlaneseq
      %v4914 = vshrl.u32 %v4913, 7
      %v4915 = vsub.s32 %v4912, %v4914
      %v4916 = vrot.slane %v4902, %v4915
      %v4917 = vcombine.high %v4909, %v4909
      %v4918 = vcombine.high %v4916, %v4916
      %v4919 = vcombine.high %v4675, %v4675
      %v4921 = vunpack.c.l.s4 1983009808
      %v4922 = vunpack.c.0.s8 %v4921
      %v4923 = vlaneseq
      %v4924 = vshrl.u32 %v4923, 7
      %v4925 = vsub.s32 %v4922, %v4924
      %v4926 = vrot.slane %v4675, %v4925
      %v4928 = vunpack.c.l.s4 1983009808
      %v4929 = vunpack.c.0.s8 %v4928
      %v4930 = vlaneseq
      %v4931 = vshrl.u32 %v4930, 7
      %v4932 = vsub.s32 %v4929, %v4931
      %v4933 = vrot.slane %v4919, %v4932
      %v4934 = vcombine.high %v4926, %v4926
      %v4935 = vcombine.high %v4933, %v4933
      %v4936 = vcombine.high %v4678, %v4678
      %v4938 = vunpack.c.l.s4 1983009808
      %v4939 = vunpack.c.0.s8 %v4938
      %v4940 = vlaneseq
      %v4941 = vshrl.u32 %v4940, 7
      %v4942 = vsub.s32 %v4939, %v4941
      %v4943 = vrot.slane %v4678, %v4942
      %v4945 = vunpack.c.l.s4 1983009808
      %v4946 = vunpack.c.0.s8 %v4945
      %v4947 = vlaneseq
      %v4948 = vshrl.u32 %v4947, 7
      %v4949 = vsub.s32 %v4946, %v4948
      %v4950 = vrot.slane %v4936, %v4949
      %v4951 = vcombine.high %v4943, %v4943
      %v4952 = vcombine.high %v4950, %v4950
      %v4953 = vcombine.high %v4681, %v4681
      %v4955 = vunpack.c.l.s4 1983009808
      %v4956 = vunpack.c.0.s8 %v4955
      %v4957 = vlaneseq
      %v4958 = vshrl.u32 %v4957, 7
      %v4959 = vsub.s32 %v4956, %v4958
      %v4960 = vrot.slane %v4681, %v4959
      %v4962 = vunpack.c.l.s4 1983009808
      %v4963 = vunpack.c.0.s8 %v4962
      %v4964 = vlaneseq
      %v4965 = vshrl.u32 %v4964, 7
      %v4966 = vsub.s32 %v4963, %v4965
      %v4967 = vrot.slane %v4953, %v4966
      %v4968 = vcombine.high %v4960, %v4960
      %v4969 = vcombine.high %v4967, %v4967
      %v5034 = vsel %vm274, %v4705, -inf
      %v5035 = vrot.slane %v5034, 4
      %v5036 = vmax.f32 %v5034, %v5035
      %v5037 = vrot.slane %v5036, 2
      %v5038 = vmax.f32 %v5036, %v5037
      %v5039 = vrot.slane %v5038, 1
      %v5040 = vmax.f32 %v5038, %v5039
      %v5041 = vsel %vm274, %v4713, -inf
      %v5042 = vrot.slane %v5041, 4
      %v5043 = vmax.f32 %v5041, %v5042
      %v5044 = vrot.slane %v5043, 2
      %v5045 = vmax.f32 %v5043, %v5044
      %v5046 = vrot.slane %v5045, 1
      %v5047 = vmax.f32 %v5045, %v5046
      %v5048 = vsel %vm274, %v4712, -inf
      %v5049 = vrot.slane %v5048, 4
      %v5050 = vmax.f32 %v5048, %v5049
      %v5051 = vrot.slane %v5050, 2
      %v5052 = vmax.f32 %v5050, %v5051
      %v5053 = vrot.slane %v5052, 1
      %v5054 = vmax.f32 %v5052, %v5053
      %v5055 = vsel %vm274, %v4714, -inf
      %v5056 = vrot.slane %v5055, 4
      %v5057 = vmax.f32 %v5055, %v5056
      %v5058 = vrot.slane %v5057, 2
      %v5059 = vmax.f32 %v5057, %v5058
      %v5060 = vrot.slane %v5059, 1
      %v5061 = vmax.f32 %v5059, %v5060
      %v5062 = vsel %vm274, %v4722, -inf
      %v5063 = vrot.slane %v5062, 4
      %v5064 = vmax.f32 %v5062, %v5063
      %v5065 = vrot.slane %v5064, 2
      %v5066 = vmax.f32 %v5064, %v5065
      %v5067 = vrot.slane %v5066, 1
      %v5068 = vmax.f32 %v5066, %v5067
      %v5069 = vsel %vm274, %v4730, -inf
      %v5070 = vrot.slane %v5069, 4
      %v5071 = vmax.f32 %v5069, %v5070
      %v5072 = vrot.slane %v5071, 2
      %v5073 = vmax.f32 %v5071, %v5072
      %v5074 = vrot.slane %v5073, 1
      %v5075 = vmax.f32 %v5073, %v5074
      %v5076 = vsel %vm274, %v4729, -inf
      %v5077 = vrot.slane %v5076, 4
      %v5078 = vmax.f32 %v5076, %v5077
      %v5079 = vrot.slane %v5078, 2
      %v5080 = vmax.f32 %v5078, %v5079
      %v5081 = vrot.slane %v5080, 1
      %v5082 = vmax.f32 %v5080, %v5081
      %v5083 = vsel %vm274, %v4731, -inf
      %v5084 = vrot.slane %v5083, 4
      %v5085 = vmax.f32 %v5083, %v5084
      %v5086 = vrot.slane %v5085, 2
      %v5087 = vmax.f32 %v5085, %v5086
      %v5088 = vrot.slane %v5087, 1
      %v5089 = vmax.f32 %v5087, %v5088
      %v5090 = vsel %vm274, %v4739, -inf
      %v5091 = vrot.slane %v5090, 4
      %v5092 = vmax.f32 %v5090, %v5091
      %v5093 = vrot.slane %v5092, 2
      %v5094 = vmax.f32 %v5092, %v5093
      %v5095 = vrot.slane %v5094, 1
      %v5096 = vmax.f32 %v5094, %v5095
      %v5097 = vsel %vm274, %v4747, -inf
      %v5098 = vrot.slane %v5097, 4
      %v5099 = vmax.f32 %v5097, %v5098
      %v5100 = vrot.slane %v5099, 2
      %v5101 = vmax.f32 %v5099, %v5100
      %v5102 = vrot.slane %v5101, 1
      %v5103 = vmax.f32 %v5101, %v5102
      %v5104 = vsel %vm274, %v4746, -inf
      %v5105 = vrot.slane %v5104, 4
      %v5106 = vmax.f32 %v5104, %v5105
      %v5107 = vrot.slane %v5106, 2
      %v5108 = vmax.f32 %v5106, %v5107
      %v5109 = vrot.slane %v5108, 1
      %v5110 = vmax.f32 %v5108, %v5109
      %v5111 = vsel %vm274, %v4748, -inf
      %v5112 = vrot.slane %v5111, 4
      %v5113 = vmax.f32 %v5111, %v5112
      %v5114 = vrot.slane %v5113, 2
      %v5115 = vmax.f32 %v5113, %v5114
      %v5116 = vrot.slane %v5115, 1
      %v5117 = vmax.f32 %v5115, %v5116
      %v5118 = vsel %vm274, %v4756, -inf
      %v5119 = vrot.slane %v5118, 4
      %v5120 = vmax.f32 %v5118, %v5119
      %v5121 = vrot.slane %v5120, 2
      %v5122 = vmax.f32 %v5120, %v5121
      %v5123 = vrot.slane %v5122, 1
      %v5124 = vmax.f32 %v5122, %v5123
      %v5125 = vsel %vm274, %v4764, -inf
      %v5126 = vrot.slane %v5125, 4
      %v5127 = vmax.f32 %v5125, %v5126
      %v5128 = vrot.slane %v5127, 2
      %v5129 = vmax.f32 %v5127, %v5128
      %v5130 = vrot.slane %v5129, 1
      %v5131 = vmax.f32 %v5129, %v5130
      %v5132 = vsel %vm274, %v4763, -inf
      %v5133 = vrot.slane %v5132, 4
      %v5134 = vmax.f32 %v5132, %v5133
      %v5135 = vrot.slane %v5134, 2
      %v5136 = vmax.f32 %v5134, %v5135
      %v5137 = vrot.slane %v5136, 1
      %v5138 = vmax.f32 %v5136, %v5137
      %v5139 = vsel %vm274, %v4765, -inf
      %v5140 = vrot.slane %v5139, 4
      %v5141 = vmax.f32 %v5139, %v5140
      %v5142 = vrot.slane %v5141, 2
      %v5143 = vmax.f32 %v5141, %v5142
      %v5144 = vrot.slane %v5143, 1
      %v5145 = vmax.f32 %v5143, %v5144
      %v5146 = vsel %vm274, %v4773, -inf
      %v5147 = vrot.slane %v5146, 4
      %v5148 = vmax.f32 %v5146, %v5147
      %v5149 = vrot.slane %v5148, 2
      %v5150 = vmax.f32 %v5148, %v5149
      %v5151 = vrot.slane %v5150, 1
      %v5152 = vmax.f32 %v5150, %v5151
      %v5153 = vsel %vm274, %v4781, -inf
      %v5154 = vrot.slane %v5153, 4
      %v5155 = vmax.f32 %v5153, %v5154
      %v5156 = vrot.slane %v5155, 2
      %v5157 = vmax.f32 %v5155, %v5156
      %v5158 = vrot.slane %v5157, 1
      %v5159 = vmax.f32 %v5157, %v5158
      %v5160 = vsel %vm274, %v4780, -inf
      %v5161 = vrot.slane %v5160, 4
      %v5162 = vmax.f32 %v5160, %v5161
      %v5163 = vrot.slane %v5162, 2
      %v5164 = vmax.f32 %v5162, %v5163
      %v5165 = vrot.slane %v5164, 1
      %v5166 = vmax.f32 %v5164, %v5165
      %v5167 = vsel %vm274, %v4782, -inf
      %v5168 = vrot.slane %v5167, 4
      %v5169 = vmax.f32 %v5167, %v5168
      %v5170 = vrot.slane %v5169, 2
      %v5171 = vmax.f32 %v5169, %v5170
      %v5172 = vrot.slane %v5171, 1
      %v5173 = vmax.f32 %v5171, %v5172
      %v5174 = vsel %vm274, %v4790, -inf
      %v5175 = vrot.slane %v5174, 4
      %v5176 = vmax.f32 %v5174, %v5175
      %v5177 = vrot.slane %v5176, 2
      %v5178 = vmax.f32 %v5176, %v5177
      %v5179 = vrot.slane %v5178, 1
      %v5180 = vmax.f32 %v5178, %v5179
      %v5181 = vsel %vm274, %v4798, -inf
      %v5182 = vrot.slane %v5181, 4
      %v5183 = vmax.f32 %v5181, %v5182
      %v5184 = vrot.slane %v5183, 2
      %v5185 = vmax.f32 %v5183, %v5184
      %v5186 = vrot.slane %v5185, 1
      %v5187 = vmax.f32 %v5185, %v5186
      %v5188 = vsel %vm274, %v4797, -inf
      %v5189 = vrot.slane %v5188, 4
      %v5190 = vmax.f32 %v5188, %v5189
      %v5191 = vrot.slane %v5190, 2
      %v5192 = vmax.f32 %v5190, %v5191
      %v5193 = vrot.slane %v5192, 1
      %v5194 = vmax.f32 %v5192, %v5193
      %v5195 = vsel %vm274, %v4799, -inf
      %v5196 = vrot.slane %v5195, 4
      %v5197 = vmax.f32 %v5195, %v5196
      %v5198 = vrot.slane %v5197, 2
      %v5199 = vmax.f32 %v5197, %v5198
      %v5200 = vrot.slane %v5199, 1
      %v5201 = vmax.f32 %v5199, %v5200
      %v5202 = vsel %vm274, %v4807, -inf
      %v5203 = vrot.slane %v5202, 4
      %v5204 = vmax.f32 %v5202, %v5203
      %v5205 = vrot.slane %v5204, 2
      %v5206 = vmax.f32 %v5204, %v5205
      %v5207 = vrot.slane %v5206, 1
      %v5208 = vmax.f32 %v5206, %v5207
      %v5209 = vsel %vm274, %v4815, -inf
      %v5210 = vrot.slane %v5209, 4
      %v5211 = vmax.f32 %v5209, %v5210
      %v5212 = vrot.slane %v5211, 2
      %v5213 = vmax.f32 %v5211, %v5212
      %v5214 = vrot.slane %v5213, 1
      %v5215 = vmax.f32 %v5213, %v5214
      %v5216 = vsel %vm274, %v4814, -inf
      %v5217 = vrot.slane %v5216, 4
      %v5218 = vmax.f32 %v5216, %v5217
      %v5219 = vrot.slane %v5218, 2
      %v5220 = vmax.f32 %v5218, %v5219
      %v5221 = vrot.slane %v5220, 1
      %v5222 = vmax.f32 %v5220, %v5221
      %v5223 = vsel %vm274, %v4816, -inf
      %v5224 = vrot.slane %v5223, 4
      %v5225 = vmax.f32 %v5223, %v5224
      %v5226 = vrot.slane %v5225, 2
      %v5227 = vmax.f32 %v5225, %v5226
      %v5228 = vrot.slane %v5227, 1
      %v5229 = vmax.f32 %v5227, %v5228
      %v5230 = vsel %vm274, %v4824, -inf
      %v5231 = vrot.slane %v5230, 4
      %v5232 = vmax.f32 %v5230, %v5231
      %v5233 = vrot.slane %v5232, 2
      %v5234 = vmax.f32 %v5232, %v5233
      %v5235 = vrot.slane %v5234, 1
      %v5236 = vmax.f32 %v5234, %v5235
      %v5237 = vsel %vm274, %v4832, -inf
      %v5238 = vrot.slane %v5237, 4
      %v5239 = vmax.f32 %v5237, %v5238
      %v5240 = vrot.slane %v5239, 2
      %v5241 = vmax.f32 %v5239, %v5240
      %v5242 = vrot.slane %v5241, 1
      %v5243 = vmax.f32 %v5241, %v5242
      %v5244 = vsel %vm274, %v4831, -inf
      %v5245 = vrot.slane %v5244, 4
      %v5246 = vmax.f32 %v5244, %v5245
      %v5247 = vrot.slane %v5246, 2
      %v5248 = vmax.f32 %v5246, %v5247
      %v5249 = vrot.slane %v5248, 1
      %v5250 = vmax.f32 %v5248, %v5249
      %v5251 = vsel %vm274, %v4833, -inf
      %v5252 = vrot.slane %v5251, 4
      %v5253 = vmax.f32 %v5251, %v5252
      %v5254 = vrot.slane %v5253, 2
      %v5255 = vmax.f32 %v5253, %v5254
      %v5256 = vrot.slane %v5255, 1
      %v5257 = vmax.f32 %v5255, %v5256
      %v5258 = vsel %vm274, %v4841, -inf
      %v5259 = vrot.slane %v5258, 4
      %v5260 = vmax.f32 %v5258, %v5259
      %v5261 = vrot.slane %v5260, 2
      %v5262 = vmax.f32 %v5260, %v5261
      %v5263 = vrot.slane %v5262, 1
      %v5264 = vmax.f32 %v5262, %v5263
      %v5265 = vsel %vm274, %v4849, -inf
      %v5266 = vrot.slane %v5265, 4
      %v5267 = vmax.f32 %v5265, %v5266
      %v5268 = vrot.slane %v5267, 2
      %v5269 = vmax.f32 %v5267, %v5268
      %v5270 = vrot.slane %v5269, 1
      %v5271 = vmax.f32 %v5269, %v5270
      %v5272 = vsel %vm274, %v4848, -inf
      %v5273 = vrot.slane %v5272, 4
      %v5274 = vmax.f32 %v5272, %v5273
      %v5275 = vrot.slane %v5274, 2
      %v5276 = vmax.f32 %v5274, %v5275
      %v5277 = vrot.slane %v5276, 1
      %v5278 = vmax.f32 %v5276, %v5277
      %v5279 = vsel %vm274, %v4850, -inf
      %v5280 = vrot.slane %v5279, 4
      %v5281 = vmax.f32 %v5279, %v5280
      %v5282 = vrot.slane %v5281, 2
      %v5283 = vmax.f32 %v5281, %v5282
      %v5284 = vrot.slane %v5283, 1
      %v5285 = vmax.f32 %v5283, %v5284
      %v5286 = vsel %vm274, %v4858, -inf
      %v5287 = vrot.slane %v5286, 4
      %v5288 = vmax.f32 %v5286, %v5287
      %v5289 = vrot.slane %v5288, 2
      %v5290 = vmax.f32 %v5288, %v5289
      %v5291 = vrot.slane %v5290, 1
      %v5292 = vmax.f32 %v5290, %v5291
      %v5293 = vsel %vm274, %v4866, -inf
      %v5294 = vrot.slane %v5293, 4
      %v5295 = vmax.f32 %v5293, %v5294
      %v5296 = vrot.slane %v5295, 2
      %v5297 = vmax.f32 %v5295, %v5296
      %v5298 = vrot.slane %v5297, 1
      %v5299 = vmax.f32 %v5297, %v5298
      %v5300 = vsel %vm274, %v4865, -inf
      %v5301 = vrot.slane %v5300, 4
      %v5302 = vmax.f32 %v5300, %v5301
      %v5303 = vrot.slane %v5302, 2
      %v5304 = vmax.f32 %v5302, %v5303
      %v5305 = vrot.slane %v5304, 1
      %v5306 = vmax.f32 %v5304, %v5305
      %v5307 = vsel %vm274, %v4867, -inf
      %v5308 = vrot.slane %v5307, 4
      %v5309 = vmax.f32 %v5307, %v5308
      %v5310 = vrot.slane %v5309, 2
      %v5311 = vmax.f32 %v5309, %v5310
      %v5312 = vrot.slane %v5311, 1
      %v5313 = vmax.f32 %v5311, %v5312
      %v5314 = vsel %vm274, %v4875, -inf
      %v5315 = vrot.slane %v5314, 4
      %v5316 = vmax.f32 %v5314, %v5315
      %v5317 = vrot.slane %v5316, 2
      %v5318 = vmax.f32 %v5316, %v5317
      %v5319 = vrot.slane %v5318, 1
      %v5320 = vmax.f32 %v5318, %v5319
      %v5321 = vsel %vm274, %v4883, -inf
      %v5322 = vrot.slane %v5321, 4
      %v5323 = vmax.f32 %v5321, %v5322
      %v5324 = vrot.slane %v5323, 2
      %v5325 = vmax.f32 %v5323, %v5324
      %v5326 = vrot.slane %v5325, 1
      %v5327 = vmax.f32 %v5325, %v5326
      %v5328 = vsel %vm274, %v4882, -inf
      %v5329 = vrot.slane %v5328, 4
      %v5330 = vmax.f32 %v5328, %v5329
      %v5331 = vrot.slane %v5330, 2
      %v5332 = vmax.f32 %v5330, %v5331
      %v5333 = vrot.slane %v5332, 1
      %v5334 = vmax.f32 %v5332, %v5333
      %v5335 = vsel %vm274, %v4884, -inf
      %v5336 = vrot.slane %v5335, 4
      %v5337 = vmax.f32 %v5335, %v5336
      %v5338 = vrot.slane %v5337, 2
      %v5339 = vmax.f32 %v5337, %v5338
      %v5340 = vrot.slane %v5339, 1
      %v5341 = vmax.f32 %v5339, %v5340
      %v5342 = vsel %vm274, %v4892, -inf
      %v5343 = vrot.slane %v5342, 4
      %v5344 = vmax.f32 %v5342, %v5343
      %v5345 = vrot.slane %v5344, 2
      %v5346 = vmax.f32 %v5344, %v5345
      %v5347 = vrot.slane %v5346, 1
      %v5348 = vmax.f32 %v5346, %v5347
      %v5349 = vsel %vm274, %v4900, -inf
      %v5350 = vrot.slane %v5349, 4
      %v5351 = vmax.f32 %v5349, %v5350
      %v5352 = vrot.slane %v5351, 2
      %v5353 = vmax.f32 %v5351, %v5352
      %v5354 = vrot.slane %v5353, 1
      %v5355 = vmax.f32 %v5353, %v5354
      %v5356 = vsel %vm274, %v4899, -inf
      %v5357 = vrot.slane %v5356, 4
      %v5358 = vmax.f32 %v5356, %v5357
      %v5359 = vrot.slane %v5358, 2
      %v5360 = vmax.f32 %v5358, %v5359
      %v5361 = vrot.slane %v5360, 1
      %v5362 = vmax.f32 %v5360, %v5361
      %v5363 = vsel %vm274, %v4901, -inf
      %v5364 = vrot.slane %v5363, 4
      %v5365 = vmax.f32 %v5363, %v5364
      %v5366 = vrot.slane %v5365, 2
      %v5367 = vmax.f32 %v5365, %v5366
      %v5368 = vrot.slane %v5367, 1
      %v5369 = vmax.f32 %v5367, %v5368
      %v5370 = vsel %vm274, %v4909, -inf
      %v5371 = vrot.slane %v5370, 4
      %v5372 = vmax.f32 %v5370, %v5371
      %v5373 = vrot.slane %v5372, 2
      %v5374 = vmax.f32 %v5372, %v5373
      %v5375 = vrot.slane %v5374, 1
      %v5376 = vmax.f32 %v5374, %v5375
      %v5377 = vsel %vm274, %v4917, -inf
      %v5378 = vrot.slane %v5377, 4
      %v5379 = vmax.f32 %v5377, %v5378
      %v5380 = vrot.slane %v5379, 2
      %v5381 = vmax.f32 %v5379, %v5380
      %v5382 = vrot.slane %v5381, 1
      %v5383 = vmax.f32 %v5381, %v5382
      %v5384 = vsel %vm274, %v4916, -inf
      %v5385 = vrot.slane %v5384, 4
      %v5386 = vmax.f32 %v5384, %v5385
      %v5387 = vrot.slane %v5386, 2
      %v5388 = vmax.f32 %v5386, %v5387
      %v5389 = vrot.slane %v5388, 1
      %v5390 = vmax.f32 %v5388, %v5389
      %v5391 = vsel %vm274, %v4918, -inf
      %v5392 = vrot.slane %v5391, 4
      %v5393 = vmax.f32 %v5391, %v5392
      %v5394 = vrot.slane %v5393, 2
      %v5395 = vmax.f32 %v5393, %v5394
      %v5396 = vrot.slane %v5395, 1
      %v5397 = vmax.f32 %v5395, %v5396
      %v5398 = vsel %vm274, %v4926, -inf
      %v5399 = vrot.slane %v5398, 4
      %v5400 = vmax.f32 %v5398, %v5399
      %v5401 = vrot.slane %v5400, 2
      %v5402 = vmax.f32 %v5400, %v5401
      %v5403 = vrot.slane %v5402, 1
      %v5404 = vmax.f32 %v5402, %v5403
      %v5405 = vsel %vm274, %v4934, -inf
      %v5406 = vrot.slane %v5405, 4
      %v5407 = vmax.f32 %v5405, %v5406
      %v5408 = vrot.slane %v5407, 2
      %v5409 = vmax.f32 %v5407, %v5408
      %v5410 = vrot.slane %v5409, 1
      %v5411 = vmax.f32 %v5409, %v5410
      %v5412 = vsel %vm274, %v4933, -inf
      %v5413 = vrot.slane %v5412, 4
      %v5414 = vmax.f32 %v5412, %v5413
      %v5415 = vrot.slane %v5414, 2
      %v5416 = vmax.f32 %v5414, %v5415
      %v5417 = vrot.slane %v5416, 1
      %v5418 = vmax.f32 %v5416, %v5417
      %v5419 = vsel %vm274, %v4935, -inf
      %v5420 = vrot.slane %v5419, 4
      %v5421 = vmax.f32 %v5419, %v5420
      %v5422 = vrot.slane %v5421, 2
      %v5423 = vmax.f32 %v5421, %v5422
      %v5424 = vrot.slane %v5423, 1
      %v5425 = vmax.f32 %v5423, %v5424
      %v5426 = vsel %vm274, %v4943, -inf
      %v5427 = vrot.slane %v5426, 4
      %v5428 = vmax.f32 %v5426, %v5427
      %v5429 = vrot.slane %v5428, 2
      %v5430 = vmax.f32 %v5428, %v5429
      %v5431 = vrot.slane %v5430, 1
      %v5432 = vmax.f32 %v5430, %v5431
      %v5433 = vsel %vm274, %v4951, -inf
      %v5434 = vrot.slane %v5433, 4
      %v5435 = vmax.f32 %v5433, %v5434
      %v5436 = vrot.slane %v5435, 2
      %v5437 = vmax.f32 %v5435, %v5436
      %v5438 = vrot.slane %v5437, 1
      %v5439 = vmax.f32 %v5437, %v5438
      %v5440 = vsel %vm274, %v4950, -inf
      %v5441 = vrot.slane %v5440, 4
      %v5442 = vmax.f32 %v5440, %v5441
      %v5443 = vrot.slane %v5442, 2
      %v5444 = vmax.f32 %v5442, %v5443
      %v5445 = vrot.slane %v5444, 1
      %v5446 = vmax.f32 %v5444, %v5445
      %v5447 = vsel %vm274, %v4952, -inf
      %v5448 = vrot.slane %v5447, 4
      %v5449 = vmax.f32 %v5447, %v5448
      %v5450 = vrot.slane %v5449, 2
      %v5451 = vmax.f32 %v5449, %v5450
      %v5452 = vrot.slane %v5451, 1
      %v5453 = vmax.f32 %v5451, %v5452
      %v5454 = vsel %vm274, %v4960, -inf
      %v5455 = vrot.slane %v5454, 4
      %v5456 = vmax.f32 %v5454, %v5455
      %v5457 = vrot.slane %v5456, 2
      %v5458 = vmax.f32 %v5456, %v5457
      %v5459 = vrot.slane %v5458, 1
      %v5460 = vmax.f32 %v5458, %v5459
      %v5461 = vsel %vm274, %v4968, -inf
      %v5462 = vrot.slane %v5461, 4
      %v5463 = vmax.f32 %v5461, %v5462
      %v5464 = vrot.slane %v5463, 2
      %v5465 = vmax.f32 %v5463, %v5464
      %v5466 = vrot.slane %v5465, 1
      %v5467 = vmax.f32 %v5465, %v5466
      %v5468 = vsel %vm274, %v4967, -inf
      %v5469 = vrot.slane %v5468, 4
      %v5470 = vmax.f32 %v5468, %v5469
      %v5471 = vrot.slane %v5470, 2
      %v5472 = vmax.f32 %v5470, %v5471
      %v5473 = vrot.slane %v5472, 1
      %v5474 = vmax.f32 %v5472, %v5473
      %v5475 = vsel %vm274, %v4969, -inf
      %v5476 = vrot.slane %v5475, 4
      %v5477 = vmax.f32 %v5475, %v5476
      %v5478 = vrot.slane %v5477, 2
      %v5479 = vmax.f32 %v5477, %v5478
      %v5480 = vrot.slane %v5479, 1
      %v5481 = vmax.f32 %v5479, %v5480
      %vm5546 = vcmask 1041409
      %v5547 = vsel %vm5546, %v5047, %v5040
      %vm5548 = vcmask 1042434
      %v5549 = vsel %vm5548, %v5054, %v5547
      %vm5550 = vcmask 1043459
      %v5551 = vsel %vm5550, %v5061, %v5549
      %vm5552 = vcmask 1044484
      %v5553 = vsel %vm5552, %v5068, %v5551
      %vm5554 = vcmask 1045509
      %v5555 = vsel %vm5554, %v5075, %v5553
      %vm5556 = vcmask 1046534
      %v5557 = vsel %vm5556, %v5082, %v5555
      %vm5558 = vcmask 1047559
      %v5559 = vsel %vm5558, %v5089, %v5557
      %v5560 = vsel %vm5546, %v5103, %v5096
      %v5561 = vsel %vm5548, %v5110, %v5560
      %v5562 = vsel %vm5550, %v5117, %v5561
      %v5563 = vsel %vm5552, %v5124, %v5562
      %v5564 = vsel %vm5554, %v5131, %v5563
      %v5565 = vsel %vm5556, %v5138, %v5564
      %v5566 = vsel %vm5558, %v5145, %v5565
      %v5567 = vsel %vm5546, %v5159, %v5152
      %v5568 = vsel %vm5548, %v5166, %v5567
      %v5569 = vsel %vm5550, %v5173, %v5568
      %v5570 = vsel %vm5552, %v5180, %v5569
      %v5571 = vsel %vm5554, %v5187, %v5570
      %v5572 = vsel %vm5556, %v5194, %v5571
      %v5573 = vsel %vm5558, %v5201, %v5572
      %v5574 = vsel %vm5546, %v5215, %v5208
      %v5575 = vsel %vm5548, %v5222, %v5574
      %v5576 = vsel %vm5550, %v5229, %v5575
      %v5577 = vsel %vm5552, %v5236, %v5576
      %v5578 = vsel %vm5554, %v5243, %v5577
      %v5579 = vsel %vm5556, %v5250, %v5578
      %v5580 = vsel %vm5558, %v5257, %v5579
      %v5581 = vsel %vm5546, %v5271, %v5264
      %v5582 = vsel %vm5548, %v5278, %v5581
      %v5583 = vsel %vm5550, %v5285, %v5582
      %v5584 = vsel %vm5552, %v5292, %v5583
      %v5585 = vsel %vm5554, %v5299, %v5584
      %v5586 = vsel %vm5556, %v5306, %v5585
      %v5587 = vsel %vm5558, %v5313, %v5586
      %v5588 = vsel %vm5546, %v5327, %v5320
      %v5589 = vsel %vm5548, %v5334, %v5588
      %v5590 = vsel %vm5550, %v5341, %v5589
      %v5591 = vsel %vm5552, %v5348, %v5590
      %v5592 = vsel %vm5554, %v5355, %v5591
      %v5593 = vsel %vm5556, %v5362, %v5592
      %v5594 = vsel %vm5558, %v5369, %v5593
      %v5595 = vsel %vm5546, %v5383, %v5376
      %v5596 = vsel %vm5548, %v5390, %v5595
      %v5597 = vsel %vm5550, %v5397, %v5596
      %v5598 = vsel %vm5552, %v5404, %v5597
      %v5599 = vsel %vm5554, %v5411, %v5598
      %v5600 = vsel %vm5556, %v5418, %v5599
      %v5601 = vsel %vm5558, %v5425, %v5600
      %v5602 = vsel %vm5546, %v5439, %v5432
      %v5603 = vsel %vm5548, %v5446, %v5602
      %v5604 = vsel %vm5550, %v5453, %v5603
      %v5605 = vsel %vm5552, %v5460, %v5604
      %v5606 = vsel %vm5554, %v5467, %v5605
      %v5607 = vsel %vm5556, %v5474, %v5606
      %v5608 = vsel %vm5558, %v5481, %v5607
      %5617 = vst.msk [vmem:[%s224] sm:$0xff] %vm271, %v5559
      %5618 = vst.msk [vmem:[%s224 + $0x8] sm:$0xff] %vm271, %v5566
      %5619 = vst.msk [vmem:[%s224 + $0x10] sm:$0xff] %vm271, %v5573
      %5620 = vst.msk [vmem:[%s224 + $0x18] sm:$0xff] %vm271, %v5580
      %5621 = vst.msk [vmem:[%s224 + $0x20] sm:$0xff] %vm271, %v5587
      %5622 = vst.msk [vmem:[%s224 + $0x28] sm:$0xff] %vm271, %v5594
      %5623 = vst.msk [vmem:[%s224 + $0x30] sm:$0xff] %vm271, %v5601
      %5624 = vst.msk [vmem:[%s224 + $0x38] sm:$0xff] %vm271, %v5608
      %p5625 = scmp.lt.s32.totalorder %s16, 1
      %s5626 = scalar_select %p5625, %s16, 1
      %s5627 = smul.addr %s5626, 8
      %s5628 = smul.addr %s5627, 8
      %s5629 = scalar_lea.vmem %s5, %s5628
      // Predicated region
      $region41: #{features_downsample.1} parent=39 // pred_check
        %p5630 = pneg %p144
      $region42: #{features_downsample.1} parent=39 // pred_check_branch
        %5632 = sbr.rel (%p5630) target = $region44
      $region43: #{features_downsample.1} parent=39 // pred_region
        _
      $region44: #{features_downsample.1} parent=39 // pred_fallthru
        _
    $region40: #{features_downsample.1} parent=5 // pred_fallthru
      _
    %p5633 = scmp.le.s32.totalorder 2, %s11
    // Predicated region
    $region45: #{features_downsample.1} parent=5 // pred_check
      %p5634 = pneg %p5633
    $region46: #{features_downsample.1} parent=5 // pred_check_branch
      %5636 = sbr.rel (%p5634) target = $region48
    $region47: #{features_downsample.1} parent=5 // pred_region
      %s5637 = ssub.s32 %s11, 2
      // Predicated region
      $region49: #{features_downsample.1} parent=47 // pred_check
        %p5638 = pneg %p150
      $region50: #{features_downsample.1} parent=47 // pred_check_branch
        %5640 = sbr.rel (%p5638) target = $region52
      $region51: #{features_downsample.1} parent=47 // pred_region
        %p5641 = scmp.lt.s32.totalorder %s17, 1
        %s5642 = scalar_select %p5641, %s17, 1
        %s5643 = smul.addr %s5642, 8
        %s5644 = smul.addr %s5643, 8
        %s5645 = scalar_lea.vmem %s5, %s5644
      $region52: #{features_downsample.1} parent=47 // pred_fallthru
        _
    $region48: #{features_downsample.1} parent=5 // pred_fallthru
      _
  $region6: #{features_downsample.1} parent=0 // loop_footer
    %s15 = sadd.s32 1, %s11
  $region7: #{features_downsample.1} parent=0 // loop_footer_branch
    %10 = sbr.rel target = $region3
  $region8: #{features_downsample.1} parent=0 // loop_exit
    _

</llo_original>
